<compile_context>
chip_gen: v7x
topology: tpu7x:2x2x1
jax: 0.10.0
libtpu: 0.0.40
codegen_flags: <defaults>
</compile_context>

<pallas_src>
import math
import functools

import jax
import jax.numpy as jnp
from jax.experimental import pallas as pl
from jax.experimental.pallas import tpu as pltpu


def _scale_gated_block_kernel(x_ref, w1g_ref, w1v_ref, b1g_ref, b1v_ref,
                              w2g_ref, w2v_ref, b2g_ref, b2v_ref,
                              gamma_ref, beta_ref, out_ref,
                              xpad_ref, h1pad_ref,
                              *, K, dil, pad, Tt, Ts, Cin, Cout, eps):
    """Fused: gated conv1 -> relu -> gated conv2 -> relu -> sqrt(.5)*(x+res) -> relu -> layernorm.

    x_ref      : (Tt, Ts, Cin)                 unpadded input tile for this batch element
    w*g/w*v    : (taps*C, Cout)                im2col gate / value weight halves (causal taps only)
    b*g/b*v    : (1, Cout)                     gate / value bias halves
    gamma/beta : (1, Cout)                     layer-norm affine params
    out_ref    : (Tt, Ts, Cout)
    xpad_ref   : (Tt+pad, Ts+2*pad, Cin)       VMEM scratch: padded input (input dtype)
    h1pad_ref  : (Tt+pad, Ts+2*pad, Cout)      VMEM scratch: padded conv1 output (input dtype)
    """
    scale = jnp.float32(math.sqrt(0.5))
    ktaps = K // 2 + 1            # causal: taps ki > K//2 are zero in MaskedConv2d -> skipped
    Sp = Ts + 2 * pad

    def refresh_pad(dst_ref, interior, c):
        # Zero only the thin pad border (the interior is fully rewritten every step).  Done every
        # grid step so it stays correct when the "parallel" batch axis is sharded across cores.
        if pad > 0:
            dst_ref[pl.ds(0, pad), :, :] = jnp.zeros((pad, Sp, c), dst_ref.dtype)
            dst_ref[pl.ds(pad, Tt), pl.ds(0, pad), :] = jnp.zeros((Tt, pad, c), dst_ref.dtype)
            dst_ref[pl.ds(pad, Tt), pl.ds(pad + Ts, pad), :] = jnp.zeros((Tt, pad, c), dst_ref.dtype)
        dst_ref[pl.ds(pad, Tt), pl.ds(pad, Ts), :] = interior

    def gated_conv(src_ref, csrc, wg_ref, wv_ref, bg_ref, bv_ref):
        # im2col over the non-zero (causal) taps only -> one big MXU contraction of size ktaps*K*csrc.
        cols = []
        for ki in range(ktaps):
            for kj in range(K):
                cols.append(src_ref[pl.ds(ki * dil, Tt), pl.ds(kj * dil, Ts), :])
        patches = jnp.concatenate(cols, axis=-1).reshape(Tt * Ts, ktaps * K * csrc)
        # Operands stay in their native dtype (bf16 models hit the bf16 MXU path); acc is f32.
        gate = jnp.dot(patches, wg_ref[...], preferred_element_type=jnp.float32)
        gate = gate + bg_ref[...].astype(jnp.float32)
        val = jnp.dot(patches, wv_ref[...], preferred_element_type=jnp.float32)
        val = val + bv_ref[...].astype(jnp.float32)
        return val * jax.nn.sigmoid(gate)                       # (Tt*Ts, Cout), f32

    x_val = x_ref[...]                                          # (Tt, Ts, Cin)

    # ---- gated conv 1 + ReLU ----
    refresh_pad(xpad_ref, x_val, Cin)
    h1 = jnp.maximum(gated_conv(xpad_ref, Cin, w1g_ref, w1v_ref, b1g_ref, b1v_ref), 0.0)

    # ---- gated conv 2 + ReLU (conv1 output staged in padded VMEM scratch, input dtype) ----
    refresh_pad(h1pad_ref, h1.reshape(Tt, Ts, Cout).astype(h1pad_ref.dtype), Cout)
    h2 = jnp.maximum(gated_conv(h1pad_ref, Cout, w2g_ref, w2v_ref, b2g_ref, b2v_ref), 0.0)

    # ---- residual + sqrt(0.5) scale + ReLU ----
    res = x_val.reshape(Tt * Ts, Cin).astype(jnp.float32)
    y = jnp.maximum(scale * (h2 + res), 0.0)

    # ---- layer norm over channels: (y - mean) / (unbiased_std + eps) * gamma + beta ----
    mu = jnp.mean(y, axis=-1, keepdims=True)
    d = y - mu
    var = jnp.sum(d * d, axis=-1, keepdims=True) / (Cout - 1)   # torch.std() is unbiased
    inv = pl.reciprocal(jnp.sqrt(var) + eps, approx=False)      # divide on the EUP, not the VPU
    outv = d * inv * gamma_ref[...].astype(jnp.float32) + beta_ref[...].astype(jnp.float32)

    out_ref[...] = outv.reshape(Tt, Ts, Cout).astype(out_ref.dtype)


def scale_gated_block(x_nchw, params, *, kernel_size, dilation=1, groups=1,
                      drop_rate=0.0, eps=1e-3):
    """Wrapper: accepts PyTorch NCHW (N, C, Tt, Ts) and HWIO conv weights, returns NCHW."""
    assert groups == 1, "TODO(synk): grouped conv not implemented in the Pallas kernel"
    assert kernel_size % 2 == 1, "even kernel_size needs asymmetric 'same' padding (not implemented)"
    w1, b1, w2, b2, gamma, beta = params     # w*: (K, K, Cin, 2*Cout) HWIO, b*: (2*Cout,)
    N, C, Tt, Ts = x_nchw.shape
    K = kernel_size
    dil = dilation
    Cout = gamma.shape[-1]
    assert C == Cout, "residual add requires in_channels == out_channels"
    pad = dil * (K - 1) // 2
    Sp = Ts + 2 * pad
    Hp = Tt + pad                 # causal conv never reads the bottom pad rows
    ktaps = K // 2 + 1

    # glue: NCHW -> NHWC (no jnp.pad round trip; padding happens in-kernel into VMEM scratch)
    x = jnp.transpose(x_nchw, (0, 2, 3, 1))

    def split_gated(w, b, cin):
        # Enforce the MaskedConv2d causal mask by keeping only taps ki <= K//2, then im2col-fold
        # (ki, kj, cin) into one contraction axis and split the gate / value output halves.
        wm = w[:ktaps].reshape(ktaps * K * cin, 2 * Cout)
        return wm[:, :Cout], wm[:, Cout:], b[:Cout].reshape(1, Cout), b[Cout:].reshape(1, Cout)

    w1g, w1v, b1g, b1v = split_gated(w1, b1, C)
    w2g, w2v, b2g, b2v = split_gated(w2, b2, Cout)
    gamma2 = gamma.reshape(1, Cout)
    beta2 = beta.reshape(1, Cout)

    kern = functools.partial(_scale_gated_block_kernel, K=K, dil=dil, pad=pad,
                             Tt=Tt, Ts=Ts, Cin=C, Cout=Cout, eps=eps)

    # VMEM budget: 2x(in tile) + 2x(out tile) + 2x(constants) + scratches + compute headroom.
    itemsize = x.dtype.itemsize
    consts = (w1g, w1v, b1g, b1v, w2g, w2v, b2g, b2v, gamma2, beta2)
    const_bytes = sum(int(a.size) * a.dtype.itemsize for a in consts)
    block_bytes = (Tt * Ts * C + Tt * Ts * Cout) * itemsize
    scratch_bytes = (Hp * Sp * C + Hp * Sp * Cout) * itemsize
    patch_bytes = Tt * Ts * ktaps * K * max(C, Cout) * 4
    est = 2 * block_bytes + 2 * const_bytes + scratch_bytes + 2 * patch_bytes + (4 << 20)
    vmem_limit = int(min(64 << 20, max(32 << 20, est)))   # 64 MiB = v7x physical ceiling

    out_nhwc = pl.pallas_call(
        kern,
        out_shape=jax.ShapeDtypeStruct((N, Tt, Ts, Cout), x.dtype),
        grid_spec=pltpu.PrefetchScalarGridSpec(
            num_scalar_prefetch=0,
            grid=(N,),
            in_specs=[
                pl.BlockSpec((pl.Squeezed(), Tt, Ts, C), lambda n: (n, 0, 0, 0)),
                pl.BlockSpec(w1g.shape, lambda n: (0, 0)),
                pl.BlockSpec(w1v.shape, lambda n: (0, 0)),
                pl.BlockSpec(b1g.shape, lambda n: (0, 0)),
                pl.BlockSpec(b1v.shape, lambda n: (0, 0)),
                pl.BlockSpec(w2g.shape, lambda n: (0, 0)),
                pl.BlockSpec(w2v.shape, lambda n: (0, 0)),
                pl.BlockSpec(b2g.shape, lambda n: (0, 0)),
                pl.BlockSpec(b2v.shape, lambda n: (0, 0)),
                pl.BlockSpec(gamma2.shape, lambda n: (0, 0)),
                pl.BlockSpec(beta2.shape, lambda n: (0, 0)),
            ],
            out_specs=pl.BlockSpec((pl.Squeezed(), Tt, Ts, Cout), lambda n: (n, 0, 0, 0)),
            scratch_shapes=[pltpu.VMEM((Hp, Sp, C), x.dtype),
                            pltpu.VMEM((Hp, Sp, Cout), x.dtype)],
        ),
        compiler_params=pltpu.CompilerParams(
            dimension_semantics=("parallel",),
            vmem_limit_bytes=vmem_limit),
    )(x, w1g, w1v, b1g, b1v, w2g, w2v, b2g, b2v, gamma2, beta2)

    # F.dropout(training=False) is identity; drop_rate only matters in training mode.
    del drop_rate
    return jnp.transpose(out_nhwc, (0, 3, 1, 2))            # back to NCHW


if __name__ == "__main__":
    key = jax.random.PRNGKey(0)
    N, C, Tt, Ts = 2, 32, 16, 16
    K, dilation, groups, drop_rate = 3, 1, 1, 0.0

    ks = jax.random.split(key, 5)
    x = jax.random.normal(ks[0], (N, C, Tt, Ts), jnp.float32)

    fan_in = C * K * K
    std = 1.0 / math.sqrt(fan_in)

    # HWIO conv weights; the MaskedConv2d causal row mask (taps below the center row are zero)
    # is enforced structurally inside the wrapper, so unmasked weights are handled correctly.
    w1 = std * jax.random.normal(ks[1], (K, K, C, 2 * C), jnp.float32)
    w2 = std * jax.random.normal(ks[2], (K, K, C, 2 * C), jnp.float32)
    b1 = std * jax.random.normal(ks[3], (2 * C,), jnp.float32)
    b2 = std * jax.random.normal(ks[4], (2 * C,), jnp.float32)
    gamma = jnp.ones((C,), jnp.float32)   # LayerNormalization.a_2
    beta = jnp.zeros((C,), jnp.float32)   # LayerNormalization.b_2

    out = scale_gated_block(x, (w1, b1, w2, b2, gamma, beta),
                            kernel_size=K, dilation=dilation, groups=groups,
                            drop_rate=drop_rate)
    jax.block_until_ready(out)
    assert out.shape == (N, C, Tt, Ts)
    assert bool(jnp.all(jnp.isfinite(out)))
    print("KERNEL_OK")
</pallas_src>

<mosaic_0001>
module attributes {stable_mosaic.version = 11 : i64} {
  func.func @_scale_gated_block_kernel(%arg0: i32, %arg1: memref<1x16x16x32xf32, #tpu.memory_space<vmem>>, %arg2: memref<192x32xf32, #tpu.memory_space<vmem>>, %arg3: memref<192x32xf32, #tpu.memory_space<vmem>>, %arg4: memref<1x32xf32, #tpu.memory_space<vmem>>, %arg5: memref<1x32xf32, #tpu.memory_space<vmem>>, %arg6: memref<192x32xf32, #tpu.memory_space<vmem>>, %arg7: memref<192x32xf32, #tpu.memory_space<vmem>>, %arg8: memref<1x32xf32, #tpu.memory_space<vmem>>, %arg9: memref<1x32xf32, #tpu.memory_space<vmem>>, %arg10: memref<1x32xf32, #tpu.memory_space<vmem>>, %arg11: memref<1x32xf32, #tpu.memory_space<vmem>>, %arg12: memref<1x16x16x32xf32, #tpu.memory_space<vmem>>, %arg13: memref<17x18x32xf32, #tpu.memory_space<vmem>>, %arg14: memref<17x18x32xf32, #tpu.memory_space<vmem>>) attributes {dimension_semantics = [#tpu.dimension_semantics<parallel>], iteration_bounds = array<i64: 2>, scalar_prefetch = 0 : i64, scratch_operands = 2 : i64, tpu.core_type = #tpu.core_type<tc>, window_params = [{transform_indices = @transform_0, window_bounds = array<i64: 1, 16, 16, 32>}, {pipeline_mode = #tpu.pipeline_mode<synchronous>, transform_indices = @transform_1, window_bounds = array<i64: 192, 32>}, {pipeline_mode = #tpu.pipeline_mode<synchronous>, transform_indices = @transform_2, window_bounds = array<i64: 192, 32>}, {pipeline_mode = #tpu.pipeline_mode<synchronous>, transform_indices = @transform_3, window_bounds = array<i64: 1, 32>}, {pipeline_mode = #tpu.pipeline_mode<synchronous>, transform_indices = @transform_4, window_bounds = array<i64: 1, 32>}, {pipeline_mode = #tpu.pipeline_mode<synchronous>, transform_indices = @transform_5, window_bounds = array<i64: 192, 32>}, {pipeline_mode = #tpu.pipeline_mode<synchronous>, transform_indices = @transform_6, window_bounds = array<i64: 192, 32>}, {pipeline_mode = #tpu.pipeline_mode<synchronous>, transform_indices = @transform_7, window_bounds = array<i64: 1, 32>}, {pipeline_mode = #tpu.pipeline_mode<synchronous>, transform_indices = @transform_8, window_bounds = array<i64: 1, 32>}, {pipeline_mode = #tpu.pipeline_mode<synchronous>, transform_indices = @transform_9, window_bounds = array<i64: 1, 32>}, {pipeline_mode = #tpu.pipeline_mode<synchronous>, transform_indices = @transform_10, window_bounds = array<i64: 1, 32>}, {transform_indices = @transform_11, window_bounds = array<i64: 1, 16, 16, 32>}]} {
    %c0 = arith.constant 0 : index
    %c0_0 = arith.constant 0 : index
    %c0_1 = arith.constant 0 : index
    %c0_2 = arith.constant 0 : index
    %0 = vector.load %arg1[%c0, %c0_0, %c0_1, %c0_2] : memref<1x16x16x32xf32, #tpu.memory_space<vmem>>, vector<1x16x16x32xf32>
    %1 = vector.shape_cast %0 : vector<1x16x16x32xf32> to vector<16x16x32xf32>
    %cst = arith.constant 0.000000e+00 : f32
    %2 = vector.broadcast %cst : f32 to vector<1x18x32xf32>
    %c0_3 = arith.constant 0 : index
    %c0_4 = arith.constant 0 : index
    %c0_5 = arith.constant 0 : index
    %3 = vector.load %arg13[%c0_3, %c0_4, %c0_5] : memref<17x18x32xf32, #tpu.memory_space<vmem>>, vector<1x18x32xf32>
    tpu.vector_store %arg13[%c0_3, %c0_4, %c0_5], %2 {strides = array<i32>} : memref<17x18x32xf32, #tpu.memory_space<vmem>>, vector<1x18x32xf32>,
    %cst_6 = arith.constant 0.000000e+00 : f32
    %4 = vector.broadcast %cst_6 : f32 to vector<16x1x32xf32>
    %c1 = arith.constant 1 : index
    %c0_7 = arith.constant 0 : index
    %c0_8 = arith.constant 0 : index
    %5 = vector.load %arg13[%c1, %c0_7, %c0_8] : memref<17x18x32xf32, #tpu.memory_space<vmem>>, vector<16x1x32xf32>
    tpu.vector_store %arg13[%c1, %c0_7, %c0_8], %4 {strides = array<i32>} : memref<17x18x32xf32, #tpu.memory_space<vmem>>, vector<16x1x32xf32>,
    %cst_9 = arith.constant 0.000000e+00 : f32
    %6 = vector.broadcast %cst_9 : f32 to vector<16x1x32xf32>
    %c1_10 = arith.constant 1 : index
    %c17 = arith.constant 17 : index
    %c0_11 = arith.constant 0 : index
    %7 = vector.load %arg13[%c1_10, %c17, %c0_11] : memref<17x18x32xf32, #tpu.memory_space<vmem>>, vector<16x1x32xf32>
    tpu.vector_store %arg13[%c1_10, %c17, %c0_11], %6 {strides = array<i32>} : memref<17x18x32xf32, #tpu.memory_space<vmem>>, vector<16x1x32xf32>,
    %c1_12 = arith.constant 1 : index
    %c1_13 = arith.constant 1 : index
    %c0_14 = arith.constant 0 : index
    %8 = vector.load %arg13[%c1_12, %c1_13, %c0_14] : memref<17x18x32xf32, #tpu.memory_space<vmem>>, vector<16x16x32xf32>
    tpu.vector_store %arg13[%c1_12, %c1_13, %c0_14], %1 {strides = array<i32>} : memref<17x18x32xf32, #tpu.memory_space<vmem>>, vector<16x16x32xf32>,
    %c0_15 = arith.constant 0 : index
    %c0_16 = arith.constant 0 : index
    %c0_17 = arith.constant 0 : index
    %9 = vector.load %arg13[%c0_15, %c0_16, %c0_17] : memref<17x18x32xf32, #tpu.memory_space<vmem>>, vector<16x16x32xf32>
    %c0_18 = arith.constant 0 : index
    %c1_19 = arith.constant 1 : index
    %c0_20 = arith.constant 0 : index
    %10 = vector.load %arg13[%c0_18, %c1_19, %c0_20] : memref<17x18x32xf32, #tpu.memory_space<vmem>>, vector<16x16x32xf32>
    %c0_21 = arith.constant 0 : index
    %c2 = arith.constant 2 : index
    %c0_22 = arith.constant 0 : index
    %11 = vector.load %arg13[%c0_21, %c2, %c0_22] : memref<17x18x32xf32, #tpu.memory_space<vmem>>, vector<16x16x32xf32>
    %c1_23 = arith.constant 1 : index
    %c0_24 = arith.constant 0 : index
    %c0_25 = arith.constant 0 : index
    %12 = vector.load %arg13[%c1_23, %c0_24, %c0_25] : memref<17x18x32xf32, #tpu.memory_space<vmem>>, vector<16x16x32xf32>
    %c1_26 = arith.constant 1 : index
    %c1_27 = arith.constant 1 : index
    %c0_28 = arith.constant 0 : index
    %13 = vector.load %arg13[%c1_26, %c1_27, %c0_28] : memref<17x18x32xf32, #tpu.memory_space<vmem>>, vector<16x16x32xf32>
    %c1_29 = arith.constant 1 : index
    %c2_30 = arith.constant 2 : index
    %c0_31 = arith.constant 0 : index
    %14 = vector.load %arg13[%c1_29, %c2_30, %c0_31] : memref<17x18x32xf32, #tpu.memory_space<vmem>>, vector<16x16x32xf32>
    %15 = tpu.concatenate %9, %10, %11, %12, %13, %14 in 2 : vector<16x16x32xf32>, vector<16x16x32xf32>, vector<16x16x32xf32>, vector<16x16x32xf32>, vector<16x16x32xf32>, vector<16x16x32xf32> -> vector<16x16x192xf32>
    %16 = vector.shape_cast %15 : vector<16x16x192xf32> to vector<256x192xf32>
    %c0_32 = arith.constant 0 : index
    %c0_33 = arith.constant 0 : index
    %17 = vector.load %arg2[%c0_32, %c0_33] : memref<192x32xf32, #tpu.memory_space<vmem>>, vector<192x32xf32>
    %cst_34 = arith.constant dense<0.000000e+00> : vector<256x32xf32>
    %18 = tpu.matmul %16, %17, %cst_34 {dimension_numbers = #tpu.dot_dimension_numbers<[1], [0], [0], [1], [0, 0, 1, 1], [], []>} : vector<256x192xf32>, vector<192x32xf32>, vector<256x32xf32> -> vector<256x32xf32>
    %c0_35 = arith.constant 0 : index
    %c0_36 = arith.constant 0 : index
    %19 = vector.load %arg4[%c0_35, %c0_36] : memref<1x32xf32, #tpu.memory_space<vmem>>, vector<1x32xf32>
    %20 = vector.broadcast %19 : vector<1x32xf32> to vector<256x32xf32>
    %21 = arith.addf %18, %20 : vector<256x32xf32>
    %c0_37 = arith.constant 0 : index
    %c0_38 = arith.constant 0 : index
    %22 = vector.load %arg3[%c0_37, %c0_38] : memref<192x32xf32, #tpu.memory_space<vmem>>, vector<192x32xf32>
    %cst_39 = arith.constant dense<0.000000e+00> : vector<256x32xf32>
    %23 = tpu.matmul %16, %22, %cst_39 {dimension_numbers = #tpu.dot_dimension_numbers<[1], [0], [0], [1], [0, 0, 1, 1], [], []>} : vector<256x192xf32>, vector<192x32xf32>, vector<256x32xf32> -> vector<256x32xf32>
    %c0_40 = arith.constant 0 : index
    %c0_41 = arith.constant 0 : index
    %24 = vector.load %arg5[%c0_40, %c0_41] : memref<1x32xf32, #tpu.memory_space<vmem>>, vector<1x32xf32>
    %25 = vector.broadcast %24 : vector<1x32xf32> to vector<256x32xf32>
    %26 = arith.addf %23, %25 : vector<256x32xf32>
    %27 = arith.negf %21 : vector<256x32xf32>
    %28 = math.exp %27 : vector<256x32xf32>
    %cst_42 = arith.constant 1.000000e+00 : f32
    %29 = vector.broadcast %cst_42 : f32 to vector<256x32xf32>
    %30 = arith.addf %29, %28 : vector<256x32xf32>
    %31 = arith.divf %29, %30 : vector<256x32xf32>
    %32 = arith.mulf %26, %31 : vector<256x32xf32>
    %cst_43 = arith.constant 0.000000e+00 : f32
    %33 = vector.broadcast %cst_43 : f32 to vector<256x32xf32>
    %34 = arith.maximumf %32, %33 : vector<256x32xf32>
    %35 = vector.shape_cast %34 : vector<256x32xf32> to vector<16x16x32xf32>
    %cst_44 = arith.constant 0.000000e+00 : f32
    %36 = vector.broadcast %cst_44 : f32 to vector<1x18x32xf32>
    %c0_45 = arith.constant 0 : index
    %c0_46 = arith.constant 0 : index
    %c0_47 = arith.constant 0 : index
    %37 = vector.load %arg14[%c0_45, %c0_46, %c0_47] : memref<17x18x32xf32, #tpu.memory_space<vmem>>, vector<1x18x32xf32>
    tpu.vector_store %arg14[%c0_45, %c0_46, %c0_47], %36 {strides = array<i32>} : memref<17x18x32xf32, #tpu.memory_space<vmem>>, vector<1x18x32xf32>,
    %cst_48 = arith.constant 0.000000e+00 : f32
    %38 = vector.broadcast %cst_48 : f32 to vector<16x1x32xf32>
    %c1_49 = arith.constant 1 : index
    %c0_50 = arith.constant 0 : index
    %c0_51 = arith.constant 0 : index
    %39 = vector.load %arg14[%c1_49, %c0_50, %c0_51] : memref<17x18x32xf32, #tpu.memory_space<vmem>>, vector<16x1x32xf32>
    tpu.vector_store %arg14[%c1_49, %c0_50, %c0_51], %38 {strides = array<i32>} : memref<17x18x32xf32, #tpu.memory_space<vmem>>, vector<16x1x32xf32>,
    %cst_52 = arith.constant 0.000000e+00 : f32
    %40 = vector.broadcast %cst_52 : f32 to vector<16x1x32xf32>
    %c1_53 = arith.constant 1 : index
    %c17_54 = arith.constant 17 : index
    %c0_55 = arith.constant 0 : index
    %41 = vector.load %arg14[%c1_53, %c17_54, %c0_55] : memref<17x18x32xf32, #tpu.memory_space<vmem>>, vector<16x1x32xf32>
    tpu.vector_store %arg14[%c1_53, %c17_54, %c0_55], %40 {strides = array<i32>} : memref<17x18x32xf32, #tpu.memory_space<vmem>>, vector<16x1x32xf32>,
    %c1_56 = arith.constant 1 : index
    %c1_57 = arith.constant 1 : index
    %c0_58 = arith.constant 0 : index
    %42 = vector.load %arg14[%c1_56, %c1_57, %c0_58] : memref<17x18x32xf32, #tpu.memory_space<vmem>>, vector<16x16x32xf32>
    tpu.vector_store %arg14[%c1_56, %c1_57, %c0_58], %35 {strides = array<i32>} : memref<17x18x32xf32, #tpu.memory_space<vmem>>, vector<16x16x32xf32>,
    %c0_59 = arith.constant 0 : index
    %c0_60 = arith.constant 0 : index
    %c0_61 = arith.constant 0 : index
    %43 = vector.load %arg14[%c0_59, %c0_60, %c0_61] : memref<17x18x32xf32, #tpu.memory_space<vmem>>, vector<16x16x32xf32>
    %c0_62 = arith.constant 0 : index
    %c1_63 = arith.constant 1 : index
    %c0_64 = arith.constant 0 : index
    %44 = vector.load %arg14[%c0_62, %c1_63, %c0_64] : memref<17x18x32xf32, #tpu.memory_space<vmem>>, vector<16x16x32xf32>
    %c0_65 = arith.constant 0 : index
    %c2_66 = arith.constant 2 : index
    %c0_67 = arith.constant 0 : index
    %45 = vector.load %arg14[%c0_65, %c2_66, %c0_67] : memref<17x18x32xf32, #tpu.memory_space<vmem>>, vector<16x16x32xf32>
    %c1_68 = arith.constant 1 : index
    %c0_69 = arith.constant 0 : index
    %c0_70 = arith.constant 0 : index
    %46 = vector.load %arg14[%c1_68, %c0_69, %c0_70] : memref<17x18x32xf32, #tpu.memory_space<vmem>>, vector<16x16x32xf32>
    %c1_71 = arith.constant 1 : index
    %c1_72 = arith.constant 1 : index
    %c0_73 = arith.constant 0 : index
    %47 = vector.load %arg14[%c1_71, %c1_72, %c0_73] : memref<17x18x32xf32, #tpu.memory_space<vmem>>, vector<16x16x32xf32>
    %c1_74 = arith.constant 1 : index
    %c2_75 = arith.constant 2 : index
    %c0_76 = arith.constant 0 : index
    %48 = vector.load %arg14[%c1_74, %c2_75, %c0_76] : memref<17x18x32xf32, #tpu.memory_space<vmem>>, vector<16x16x32xf32>
    %49 = tpu.concatenate %43, %44, %45, %46, %47, %48 in 2 : vector<16x16x32xf32>, vector<16x16x32xf32>, vector<16x16x32xf32>, vector<16x16x32xf32>, vector<16x16x32xf32>, vector<16x16x32xf32> -> vector<16x16x192xf32>
    %50 = vector.shape_cast %49 : vector<16x16x192xf32> to vector<256x192xf32>
    %c0_77 = arith.constant 0 : index
    %c0_78 = arith.constant 0 : index
    %51 = vector.load %arg6[%c0_77, %c0_78] : memref<192x32xf32, #tpu.memory_space<vmem>>, vector<192x32xf32>
    %cst_79 = arith.constant dense<0.000000e+00> : vector<256x32xf32>
    %52 = tpu.matmul %50, %51, %cst_79 {dimension_numbers = #tpu.dot_dimension_numbers<[1], [0], [0], [1], [0, 0, 1, 1], [], []>} : vector<256x192xf32>, vector<192x32xf32>, vector<256x32xf32> -> vector<256x32xf32>
    %c0_80 = arith.constant 0 : index
    %c0_81 = arith.constant 0 : index
    %53 = vector.load %arg8[%c0_80, %c0_81] : memref<1x32xf32, #tpu.memory_space<vmem>>, vector<1x32xf32>
    %54 = vector.broadcast %53 : vector<1x32xf32> to vector<256x32xf32>
    %55 = arith.addf %52, %54 : vector<256x32xf32>
    %c0_82 = arith.constant 0 : index
    %c0_83 = arith.constant 0 : index
    %56 = vector.load %arg7[%c0_82, %c0_83] : memref<192x32xf32, #tpu.memory_space<vmem>>, vector<192x32xf32>
    %cst_84 = arith.constant dense<0.000000e+00> : vector<256x32xf32>
    %57 = tpu.matmul %50, %56, %cst_84 {dimension_numbers = #tpu.dot_dimension_numbers<[1], [0], [0], [1], [0, 0, 1, 1], [], []>} : vector<256x192xf32>, vector<192x32xf32>, vector<256x32xf32> -> vector<256x32xf32>
    %c0_85 = arith.constant 0 : index
    %c0_86 = arith.constant 0 : index
    %58 = vector.load %arg9[%c0_85, %c0_86] : memref<1x32xf32, #tpu.memory_space<vmem>>, vector<1x32xf32>
    %59 = vector.broadcast %58 : vector<1x32xf32> to vector<256x32xf32>
    %60 = arith.addf %57, %59 : vector<256x32xf32>
    %61 = arith.negf %55 : vector<256x32xf32>
    %62 = math.exp %61 : vector<256x32xf32>
    %cst_87 = arith.constant 1.000000e+00 : f32
    %63 = vector.broadcast %cst_87 : f32 to vector<256x32xf32>
    %64 = arith.addf %63, %62 : vector<256x32xf32>
    %65 = arith.divf %63, %64 : vector<256x32xf32>
    %66 = arith.mulf %60, %65 : vector<256x32xf32>
    %cst_88 = arith.constant 0.000000e+00 : f32
    %67 = vector.broadcast %cst_88 : f32 to vector<256x32xf32>
    %68 = arith.maximumf %66, %67 : vector<256x32xf32>
    %69 = vector.shape_cast %1 : vector<16x16x32xf32> to vector<256x32xf32>
    %70 = arith.addf %68, %69 : vector<256x32xf32>
    %cst_89 = arith.constant 0.707106769 : f32
    %71 = vector.broadcast %cst_89 : f32 to vector<256x32xf32>
    %72 = arith.mulf %71, %70 : vector<256x32xf32>
    %cst_90 = arith.constant 0.000000e+00 : f32
    %73 = vector.broadcast %cst_90 : f32 to vector<256x32xf32>
    %74 = arith.maximumf %72, %73 : vector<256x32xf32>
    %cst_91 = arith.constant dense<0.000000e+00> : vector<256xf32>
    %75 = vector.multi_reduction <add>, %74, %cst_91 [1] : vector<256x32xf32> to vector<256xf32>
    %76 = vector.shape_cast %75 : vector<256xf32> to vector<256x1xf32>
    %cst_92 = arith.constant 3.200000e+01 : f32
    %77 = vector.broadcast %cst_92 : f32 to vector<256x1xf32>
    %78 = arith.divf %76, %77 : vector<256x1xf32>
    %79 = vector.broadcast %78 : vector<256x1xf32> to vector<256x32xf32>
    %80 = arith.subf %74, %79 : vector<256x32xf32>
    %81 = arith.mulf %80, %80 : vector<256x32xf32>
    %cst_93 = arith.constant dense<0.000000e+00> : vector<256xf32>
    %82 = vector.multi_reduction <add>, %81, %cst_93 [1] : vector<256x32xf32> to vector<256xf32>
    %83 = vector.shape_cast %82 : vector<256xf32> to vector<256x1xf32>
    %cst_94 = arith.constant 3.100000e+01 : f32
    %84 = vector.broadcast %cst_94 : f32 to vector<256x1xf32>
    %85 = arith.divf %83, %84 : vector<256x1xf32>
    %86 = math.sqrt %85 : vector<256x1xf32>
    %cst_95 = arith.constant 1.000000e-03 : f32
    %87 = vector.broadcast %cst_95 : f32 to vector<256x1xf32>
    %88 = arith.addf %86, %87 : vector<256x1xf32>
    %89 = tpu.reciprocal %88 : vector<256x1xf32> -> vector<256x1xf32>
    %90 = vector.broadcast %89 : vector<256x1xf32> to vector<256x32xf32>
    %91 = arith.mulf %80, %90 : vector<256x32xf32>
    %c0_96 = arith.constant 0 : index
    %c0_97 = arith.constant 0 : index
    %92 = vector.load %arg10[%c0_96, %c0_97] : memref<1x32xf32, #tpu.memory_space<vmem>>, vector<1x32xf32>
    %93 = vector.broadcast %92 : vector<1x32xf32> to vector<256x32xf32>
    %94 = arith.mulf %91, %93 : vector<256x32xf32>
    %c0_98 = arith.constant 0 : index
    %c0_99 = arith.constant 0 : index
    %95 = vector.load %arg11[%c0_98, %c0_99] : memref<1x32xf32, #tpu.memory_space<vmem>>, vector<1x32xf32>
    %96 = vector.broadcast %95 : vector<1x32xf32> to vector<256x32xf32>
    %97 = arith.addf %94, %96 : vector<256x32xf32>
    %98 = vector.shape_cast %97 : vector<256x32xf32> to vector<16x16x32xf32>
    %c0_100 = arith.constant 0 : index
    %c0_101 = arith.constant 0 : index
    %c0_102 = arith.constant 0 : index
    %c0_103 = arith.constant 0 : index
    %99 = vector.load %arg12[%c0_100, %c0_101, %c0_102, %c0_103] : memref<1x16x16x32xf32, #tpu.memory_space<vmem>>, vector<1x16x16x32xf32>
    %100 = vector.shape_cast %99 : vector<1x16x16x32xf32> to vector<16x16x32xf32>
    %101 = vector.shape_cast %98 : vector<16x16x32xf32> to vector<1x16x16x32xf32>
    tpu.vector_store %arg12[%c0_100, %c0_101, %c0_102, %c0_103], %101 {strides = array<i32>} : memref<1x16x16x32xf32, #tpu.memory_space<vmem>>, vector<1x16x16x32xf32>,
    return
  }
  func.func @transform_0(%arg0: i32) -> (i32, i32, i32, i32) {
    %c0_i32 = arith.constant 0 : i32
    %c0_i32_0 = arith.constant 0 : i32
    %c0_i32_1 = arith.constant 0 : i32
    %c0_i32_2 = arith.constant 0 : i32
    return %arg0, %c0_i32, %c0_i32_0, %c0_i32_1 : i32, i32, i32, i32
  }
  func.func @transform_1(%arg0: i32) -> (i32, i32) {
    %c0_i32 = arith.constant 0 : i32
    %c0_i32_0 = arith.constant 0 : i32
    %c0_i32_1 = arith.constant 0 : i32
    return %c0_i32, %c0_i32_0 : i32, i32
  }
  func.func @transform_2(%arg0: i32) -> (i32, i32) {
    %c0_i32 = arith.constant 0 : i32
    %c0_i32_0 = arith.constant 0 : i32
    %c0_i32_1 = arith.constant 0 : i32
    return %c0_i32, %c0_i32_0 : i32, i32
  }
  func.func @transform_3(%arg0: i32) -> (i32, i32) {
    %c0_i32 = arith.constant 0 : i32
    %c0_i32_0 = arith.constant 0 : i32
    %c0_i32_1 = arith.constant 0 : i32
    return %c0_i32, %c0_i32_0 : i32, i32
  }
  func.func @transform_4(%arg0: i32) -> (i32, i32) {
    %c0_i32 = arith.constant 0 : i32
    %c0_i32_0 = arith.constant 0 : i32
    %c0_i32_1 = arith.constant 0 : i32
    return %c0_i32, %c0_i32_0 : i32, i32
  }
  func.func @transform_5(%arg0: i32) -> (i32, i32) {
    %c0_i32 = arith.constant 0 : i32
    %c0_i32_0 = arith.constant 0 : i32
    %c0_i32_1 = arith.constant 0 : i32
    return %c0_i32, %c0_i32_0 : i32, i32
  }
  func.func @transform_6(%arg0: i32) -> (i32, i32) {
    %c0_i32 = arith.constant 0 : i32
    %c0_i32_0 = arith.constant 0 : i32
    %c0_i32_1 = arith.constant 0 : i32
    return %c0_i32, %c0_i32_0 : i32, i32
  }
  func.func @transform_7(%arg0: i32) -> (i32, i32) {
    %c0_i32 = arith.constant 0 : i32
    %c0_i32_0 = arith.constant 0 : i32
    %c0_i32_1 = arith.constant 0 : i32
    return %c0_i32, %c0_i32_0 : i32, i32
  }
  func.func @transform_8(%arg0: i32) -> (i32, i32) {
    %c0_i32 = arith.constant 0 : i32
    %c0_i32_0 = arith.constant 0 : i32
    %c0_i32_1 = arith.constant 0 : i32
    return %c0_i32, %c0_i32_0 : i32, i32
  }
  func.func @transform_9(%arg0: i32) -> (i32, i32) {
    %c0_i32 = arith.constant 0 : i32
    %c0_i32_0 = arith.constant 0 : i32
    %c0_i32_1 = arith.constant 0 : i32
    return %c0_i32, %c0_i32_0 : i32, i32
  }
  func.func @transform_10(%arg0: i32) -> (i32, i32) {
    %c0_i32 = arith.constant 0 : i32
    %c0_i32_0 = arith.constant 0 : i32
    %c0_i32_1 = arith.constant 0 : i32
    return %c0_i32, %c0_i32_0 : i32, i32
  }
  func.func @transform_11(%arg0: i32) -> (i32, i32, i32, i32) {
    %c0_i32 = arith.constant 0 : i32
    %c0_i32_0 = arith.constant 0 : i32
    %c0_i32_1 = arith.constant 0 : i32
    %c0_i32_2 = arith.constant 0 : i32
    return %arg0, %c0_i32, %c0_i32_0, %c0_i32_1 : i32, i32, i32, i32
  }
}

</mosaic_0001>

<llo_original>
// kernel: tpu_custom_call.1
$region0: #{tpu_custom_call.1}
  #allocation0 [shape = 'u32[]', space=smem, size = 0x4, offset = 0x4, fixed_abs, tag = 'smem constant byte address 0x4 - core index']
  #allocation1 [shape = 'u32[144,128]{1,0:T(1,128)}', space=vmem, size = 0x12000, scoped, tag = 'internal scratch']
  #allocation2 [shape = 'f32[17,18,32]{2,1,0:T(8,128)}', space=vmem, size = 0x33000, scoped, tag = 'scratch operand']
  #allocation3 [shape = 'f32[17,18,32]{2,1,0:T(8,128)}', space=vmem, size = 0x33000, scoped, tag = 'scratch operand']
  %s0 = inlined_call_operand.vmem [shape: f32[2,16,16,32], index: 0, kind: input, shape index: {}]
  %s1 = inlined_call_operand.vmem [shape: f32[192,32], index: 1, kind: input, shape index: {}]
  %s2 = inlined_call_operand.vmem [shape: f32[192,32], index: 2, kind: input, shape index: {}]
  %s3 = inlined_call_operand.vmem [shape: f32[1,32], index: 3, kind: input, shape index: {}]
  %s4 = inlined_call_operand.vmem [shape: f32[1,32], index: 4, kind: input, shape index: {}]
  %s5 = inlined_call_operand.vmem [shape: f32[192,32], index: 5, kind: input, shape index: {}]
  %s6 = inlined_call_operand.vmem [shape: f32[192,32], index: 6, kind: input, shape index: {}]
  %s7 = inlined_call_operand.vmem [shape: f32[1,32], index: 7, kind: input, shape index: {}]
  %s8 = inlined_call_operand.vmem [shape: f32[1,32], index: 8, kind: input, shape index: {}]
  %s9 = inlined_call_operand.vmem [shape: f32[1,32], index: 9, kind: input, shape index: {}]
  %s10 = inlined_call_operand.vmem [shape: f32[1,32], index: 10, kind: input, shape index: {}]
  %s11 = inlined_call_operand.hbm [shape: f32[2,16,16,32], index: 11, kind: output, shape index: {}]
  %s12 = sld [smem:[#allocation0]]
  $region77: #{tpu_custom_call.1} parent=0
    _
  %s14 = ssub.s32 1, %s12
  %s15 = scalar_select 0, %s14, %s12
  $region1: #{tpu_custom_call.1} parent=0
    #allocation4 [shape = 'u8[262144]{0}', space=vmem, size = 0x40000, scoped, tag = 'output window, operand 0']
    #allocation5 [shape = 's32[2]{0}', space=sflag, size = 0x8, scoped, tag = 'scoped memory for tpu_custom_call.1']
    %16 = vsyncpa [#allocation5], 0
    %s17 = scalar_lea.sflag [#allocation5], 1
    %18 = vsyncpa %s17, 0
    loop: start=0, step=1, limit=4
    $region2: #{tpu_custom_call.1} parent=1 // loop_pre_header
      _
    $region3: #{tpu_custom_call.1} parent=1 // loop_header
      %s20 = sphi 0, %s24
      %p21 = scmp.ge.s32.totalorder %s20, 4
      %s30 = sphi 0, %s32
      %s33 = sphi 0, %s30
      %s34 = sphi 0, %s33
      %s50 = sphi 0, %s34
      %s54 = sphi 0, %s54
      %s56 = sphi 0, %s54
      %s57 = sphi 0, %s56
      %s71 = sphi 0, %s57
      %s75 = sphi 0, %s75
      %s77 = sphi 0, %s75
      %s78 = sphi 0, %s77
      %s92 = sphi 0, %s78
      %s96 = sphi 0, %s96
      %s98 = sphi 0, %s96
      %s99 = sphi 0, %s98
      %s113 = sphi 0, %s99
      %s117 = sphi 0, %s117
      %s119 = sphi 0, %s117
      %s120 = sphi 0, %s119
      %s134 = sphi 0, %s120
      %s138 = sphi 0, %s138
      %s140 = sphi 0, %s138
      %s141 = sphi 0, %s140
      %s155 = sphi 0, %s141
      %s159 = sphi 0, %s159
      %s161 = sphi 0, %s159
      %s162 = sphi 0, %s161
      %s176 = sphi 0, %s162
      %s180 = sphi 0, %s180
      %s182 = sphi 0, %s180
      %s183 = sphi 0, %s182
      %s197 = sphi 0, %s183
      %s201 = sphi 0, %s201
      %s203 = sphi 0, %s201
      %s204 = sphi 0, %s203
      %s218 = sphi 0, %s204
      %s222 = sphi 0, %s222
      %s224 = sphi 0, %s222
      %s225 = sphi 0, %s224
      %s239 = sphi 0, %s225
      %s243 = sphi 0, %s243
      %s245 = sphi 0, %s243
      %s246 = sphi 0, %s245
      %s260 = sphi 0, %s246
      %s266 = sphi 0, %s268
      %s269 = sphi 0, %s266
      %s270 = sphi 0, %s269
      %s286 = sphi 0, %s270
    $region4: #{tpu_custom_call.1} parent=1 // loop_header_branch
      %23 = sbr.rel (%p21) target = $region8
    $region5: #{tpu_custom_call.1} parent=1 // loop_body
      %s25 = ssub.s32 %s20, 1
      %s26 = ssub.s32 %s20, 2
      %s27 = sadd.s32 %s20, 1
      %s28 = ssub.s32 %s20, %s27
      %p29 = scmp.eq.s32.totalorder %s28, 0
      %s31 = sadd.s32 %s30, 1
      %s32 = scalar_select %p29, %s30, %s31
      %p35 = pneg %p29
      %p36 = scmp.eq.s32.totalorder %s20, 1
      %p37 = por %p35, %p36
      %p38 = scmp.ne.s32.totalorder %s30, %s33
      %p39 = scmp.eq.s32.totalorder %s20, 0
      %p40 = por %p38, %p39
      %p41 = scmp.ne.s32.totalorder %s30, %s33
      %p42 = scmp.eq.s32.totalorder %s25, 1
      %p43 = por %p41, %p42
      %p44 = scmp.ne.s32.totalorder %s33, %s34
      %p45 = scmp.eq.s32.totalorder %s25, 0
      %p46 = por %p44, %p45
      %p47 = scmp.ne.s32.totalorder %s33, %s34
      %p48 = scmp.eq.s32.totalorder %s26, 1
      %p49 = por %p47, %p48
      %p51 = scmp.ne.s32.totalorder %s34, %s50
      %p52 = scmp.eq.s32.totalorder %s26, 0
      %p53 = por %p51, %p52
      %s55 = sadd.s32 %s54, 1
      %p58 = scmp.eq.s32.totalorder %s20, 1
      %p59 = scmp.ne.s32.totalorder %s54, %s56
      %p60 = scmp.eq.s32.totalorder %s20, 0
      %p61 = por %p59, %p60
      %p62 = scmp.ne.s32.totalorder %s54, %s56
      %p63 = scmp.eq.s32.totalorder %s25, 1
      %p64 = por %p62, %p63
      %p65 = scmp.ne.s32.totalorder %s56, %s57
      %p66 = scmp.eq.s32.totalorder %s25, 0
      %p67 = por %p65, %p66
      %p68 = scmp.ne.s32.totalorder %s56, %s57
      %p69 = scmp.eq.s32.totalorder %s26, 1
      %p70 = por %p68, %p69
      %p72 = scmp.ne.s32.totalorder %s57, %s71
      %p73 = scmp.eq.s32.totalorder %s26, 0
      %p74 = por %p72, %p73
      %s76 = sadd.s32 %s75, 1
      %p79 = scmp.eq.s32.totalorder %s20, 1
      %p80 = scmp.ne.s32.totalorder %s75, %s77
      %p81 = scmp.eq.s32.totalorder %s20, 0
      %p82 = por %p80, %p81
      %p83 = scmp.ne.s32.totalorder %s75, %s77
      %p84 = scmp.eq.s32.totalorder %s25, 1
      %p85 = por %p83, %p84
      %p86 = scmp.ne.s32.totalorder %s77, %s78
      %p87 = scmp.eq.s32.totalorder %s25, 0
      %p88 = por %p86, %p87
      %p89 = scmp.ne.s32.totalorder %s77, %s78
      %p90 = scmp.eq.s32.totalorder %s26, 1
      %p91 = por %p89, %p90
      %p93 = scmp.ne.s32.totalorder %s78, %s92
      %p94 = scmp.eq.s32.totalorder %s26, 0
      %p95 = por %p93, %p94
      %s97 = sadd.s32 %s96, 1
      %p100 = scmp.eq.s32.totalorder %s20, 1
      %p101 = scmp.ne.s32.totalorder %s96, %s98
      %p102 = scmp.eq.s32.totalorder %s20, 0
      %p103 = por %p101, %p102
      %p104 = scmp.ne.s32.totalorder %s96, %s98
      %p105 = scmp.eq.s32.totalorder %s25, 1
      %p106 = por %p104, %p105
      %p107 = scmp.ne.s32.totalorder %s98, %s99
      %p108 = scmp.eq.s32.totalorder %s25, 0
      %p109 = por %p107, %p108
      %p110 = scmp.ne.s32.totalorder %s98, %s99
      %p111 = scmp.eq.s32.totalorder %s26, 1
      %p112 = por %p110, %p111
      %p114 = scmp.ne.s32.totalorder %s99, %s113
      %p115 = scmp.eq.s32.totalorder %s26, 0
      %p116 = por %p114, %p115
      %s118 = sadd.s32 %s117, 1
      %p121 = scmp.eq.s32.totalorder %s20, 1
      %p122 = scmp.ne.s32.totalorder %s117, %s119
      %p123 = scmp.eq.s32.totalorder %s20, 0
      %p124 = por %p122, %p123
      %p125 = scmp.ne.s32.totalorder %s117, %s119
      %p126 = scmp.eq.s32.totalorder %s25, 1
      %p127 = por %p125, %p126
      %p128 = scmp.ne.s32.totalorder %s119, %s120
      %p129 = scmp.eq.s32.totalorder %s25, 0
      %p130 = por %p128, %p129
      %p131 = scmp.ne.s32.totalorder %s119, %s120
      %p132 = scmp.eq.s32.totalorder %s26, 1
      %p133 = por %p131, %p132
      %p135 = scmp.ne.s32.totalorder %s120, %s134
      %p136 = scmp.eq.s32.totalorder %s26, 0
      %p137 = por %p135, %p136
      %s139 = sadd.s32 %s138, 1
      %p142 = scmp.eq.s32.totalorder %s20, 1
      %p143 = scmp.ne.s32.totalorder %s138, %s140
      %p144 = scmp.eq.s32.totalorder %s20, 0
      %p145 = por %p143, %p144
      %p146 = scmp.ne.s32.totalorder %s138, %s140
      %p147 = scmp.eq.s32.totalorder %s25, 1
      %p148 = por %p146, %p147
      %p149 = scmp.ne.s32.totalorder %s140, %s141
      %p150 = scmp.eq.s32.totalorder %s25, 0
      %p151 = por %p149, %p150
      %p152 = scmp.ne.s32.totalorder %s140, %s141
      %p153 = scmp.eq.s32.totalorder %s26, 1
      %p154 = por %p152, %p153
      %p156 = scmp.ne.s32.totalorder %s141, %s155
      %p157 = scmp.eq.s32.totalorder %s26, 0
      %p158 = por %p156, %p157
      %s160 = sadd.s32 %s159, 1
      %p163 = scmp.eq.s32.totalorder %s20, 1
      %p164 = scmp.ne.s32.totalorder %s159, %s161
      %p165 = scmp.eq.s32.totalorder %s20, 0
      %p166 = por %p164, %p165
      %p167 = scmp.ne.s32.totalorder %s159, %s161
      %p168 = scmp.eq.s32.totalorder %s25, 1
      %p169 = por %p167, %p168
      %p170 = scmp.ne.s32.totalorder %s161, %s162
      %p171 = scmp.eq.s32.totalorder %s25, 0
      %p172 = por %p170, %p171
      %p173 = scmp.ne.s32.totalorder %s161, %s162
      %p174 = scmp.eq.s32.totalorder %s26, 1
      %p175 = por %p173, %p174
      %p177 = scmp.ne.s32.totalorder %s162, %s176
      %p178 = scmp.eq.s32.totalorder %s26, 0
      %p179 = por %p177, %p178
      %s181 = sadd.s32 %s180, 1
      %p184 = scmp.eq.s32.totalorder %s20, 1
      %p185 = scmp.ne.s32.totalorder %s180, %s182
      %p186 = scmp.eq.s32.totalorder %s20, 0
      %p187 = por %p185, %p186
      %p188 = scmp.ne.s32.totalorder %s180, %s182
      %p189 = scmp.eq.s32.totalorder %s25, 1
      %p190 = por %p188, %p189
      %p191 = scmp.ne.s32.totalorder %s182, %s183
      %p192 = scmp.eq.s32.totalorder %s25, 0
      %p193 = por %p191, %p192
      %p194 = scmp.ne.s32.totalorder %s182, %s183
      %p195 = scmp.eq.s32.totalorder %s26, 1
      %p196 = por %p194, %p195
      %p198 = scmp.ne.s32.totalorder %s183, %s197
      %p199 = scmp.eq.s32.totalorder %s26, 0
      %p200 = por %p198, %p199
      %s202 = sadd.s32 %s201, 1
      %p205 = scmp.eq.s32.totalorder %s20, 1
      %p206 = scmp.ne.s32.totalorder %s201, %s203
      %p207 = scmp.eq.s32.totalorder %s20, 0
      %p208 = por %p206, %p207
      %p209 = scmp.ne.s32.totalorder %s201, %s203
      %p210 = scmp.eq.s32.totalorder %s25, 1
      %p211 = por %p209, %p210
      %p212 = scmp.ne.s32.totalorder %s203, %s204
      %p213 = scmp.eq.s32.totalorder %s25, 0
      %p214 = por %p212, %p213
      %p215 = scmp.ne.s32.totalorder %s203, %s204
      %p216 = scmp.eq.s32.totalorder %s26, 1
      %p217 = por %p215, %p216
      %p219 = scmp.ne.s32.totalorder %s204, %s218
      %p220 = scmp.eq.s32.totalorder %s26, 0
      %p221 = por %p219, %p220
      %s223 = sadd.s32 %s222, 1
      %p226 = scmp.eq.s32.totalorder %s20, 1
      %p227 = scmp.ne.s32.totalorder %s222, %s224
      %p228 = scmp.eq.s32.totalorder %s20, 0
      %p229 = por %p227, %p228
      %p230 = scmp.ne.s32.totalorder %s222, %s224
      %p231 = scmp.eq.s32.totalorder %s25, 1
      %p232 = por %p230, %p231
      %p233 = scmp.ne.s32.totalorder %s224, %s225
      %p234 = scmp.eq.s32.totalorder %s25, 0
      %p235 = por %p233, %p234
      %p236 = scmp.ne.s32.totalorder %s224, %s225
      %p237 = scmp.eq.s32.totalorder %s26, 1
      %p238 = por %p236, %p237
      %p240 = scmp.ne.s32.totalorder %s225, %s239
      %p241 = scmp.eq.s32.totalorder %s26, 0
      %p242 = por %p240, %p241
      %s244 = sadd.s32 %s243, 1
      %p247 = scmp.eq.s32.totalorder %s20, 1
      %p248 = scmp.ne.s32.totalorder %s243, %s245
      %p249 = scmp.eq.s32.totalorder %s20, 0
      %p250 = por %p248, %p249
      %p251 = scmp.ne.s32.totalorder %s243, %s245
      %p252 = scmp.eq.s32.totalorder %s25, 1
      %p253 = por %p251, %p252
      %p254 = scmp.ne.s32.totalorder %s245, %s246
      %p255 = scmp.eq.s32.totalorder %s25, 0
      %p256 = por %p254, %p255
      %p257 = scmp.ne.s32.totalorder %s245, %s246
      %p258 = scmp.eq.s32.totalorder %s26, 1
      %p259 = por %p257, %p258
      %p261 = scmp.ne.s32.totalorder %s246, %s260
      %p262 = scmp.eq.s32.totalorder %s26, 0
      %p263 = por %p261, %p262
      %s264 = ssub.s32 %s20, %s27
      %p265 = scmp.eq.s32.totalorder %s264, 0
      %s267 = sadd.s32 %s266, 1
      %s268 = scalar_select %p265, %s266, %s267
      %p271 = pneg %p265
      %p272 = scmp.eq.s32.totalorder %s20, 1
      %p273 = por %p271, %p272
      %p274 = scmp.ne.s32.totalorder %s266, %s269
      %p275 = scmp.eq.s32.totalorder %s20, 0
      %p276 = por %p274, %p275
      %p277 = scmp.ne.s32.totalorder %s266, %s269
      %p278 = scmp.eq.s32.totalorder %s25, 1
      %p279 = por %p277, %p278
      %p280 = scmp.ne.s32.totalorder %s269, %s270
      %p281 = scmp.eq.s32.totalorder %s25, 0
      %p282 = por %p280, %p281
      %p283 = scmp.ne.s32.totalorder %s269, %s270
      %p284 = scmp.eq.s32.totalorder %s26, 1
      %p285 = por %p283, %p284
      %p287 = scmp.ne.s32.totalorder %s270, %s286
      %p288 = scmp.eq.s32.totalorder %s26, 0
      %p289 = por %p287, %p288
      %p290 = scmp.le.s32.totalorder 1, %s20
      %p291 = scmp.lt.s32.totalorder %s20, 3
      %p292 = pnand %p290, %p291
      %p293 = pneg %p292
      // Predicated region
      $region9: #{tpu_custom_call.1} parent=5 // pred_check
        _
      $region10: #{tpu_custom_call.1} parent=5 // pred_check_branch
        %295 = sbr.rel (%p292) target = $region12
      $region11: #{tpu_custom_call.1} parent=5 // pred_region
        %s296 = ssub.s32 %s20, 1
        // Predicated region
        $region13: #{tpu_custom_call.1} parent=11 // pred_check
          %p297 = pneg %p67
        $region14: #{tpu_custom_call.1} parent=11 // pred_check_branch
          %299 = sbr.rel (%p297) target = $region16
        $region15: #{tpu_custom_call.1} parent=11 // pred_region
          _
        $region16: #{tpu_custom_call.1} parent=11 // pred_fallthru
          _
        // Predicated region
        $region17: #{tpu_custom_call.1} parent=11 // pred_check
          %p300 = pneg %p88
        $region18: #{tpu_custom_call.1} parent=11 // pred_check_branch
          %302 = sbr.rel (%p300) target = $region20
        $region19: #{tpu_custom_call.1} parent=11 // pred_region
          _
        $region20: #{tpu_custom_call.1} parent=11 // pred_fallthru
          _
        // Predicated region
        $region21: #{tpu_custom_call.1} parent=11 // pred_check
          %p303 = pneg %p109
        $region22: #{tpu_custom_call.1} parent=11 // pred_check_branch
          %305 = sbr.rel (%p303) target = $region24
        $region23: #{tpu_custom_call.1} parent=11 // pred_region
          _
        $region24: #{tpu_custom_call.1} parent=11 // pred_fallthru
          _
        // Predicated region
        $region25: #{tpu_custom_call.1} parent=11 // pred_check
          %p306 = pneg %p130
        $region26: #{tpu_custom_call.1} parent=11 // pred_check_branch
          %308 = sbr.rel (%p306) target = $region28
        $region27: #{tpu_custom_call.1} parent=11 // pred_region
          _
        $region28: #{tpu_custom_call.1} parent=11 // pred_fallthru
          _
        // Predicated region
        $region29: #{tpu_custom_call.1} parent=11 // pred_check
          %p309 = pneg %p151
        $region30: #{tpu_custom_call.1} parent=11 // pred_check_branch
          %311 = sbr.rel (%p309) target = $region32
        $region31: #{tpu_custom_call.1} parent=11 // pred_region
          _
        $region32: #{tpu_custom_call.1} parent=11 // pred_fallthru
          _
        // Predicated region
        $region33: #{tpu_custom_call.1} parent=11 // pred_check
          %p312 = pneg %p172
        $region34: #{tpu_custom_call.1} parent=11 // pred_check_branch
          %314 = sbr.rel (%p312) target = $region36
        $region35: #{tpu_custom_call.1} parent=11 // pred_region
          _
        $region36: #{tpu_custom_call.1} parent=11 // pred_fallthru
          _
        // Predicated region
        $region37: #{tpu_custom_call.1} parent=11 // pred_check
          %p315 = pneg %p193
        $region38: #{tpu_custom_call.1} parent=11 // pred_check_branch
          %317 = sbr.rel (%p315) target = $region40
        $region39: #{tpu_custom_call.1} parent=11 // pred_region
          _
        $region40: #{tpu_custom_call.1} parent=11 // pred_fallthru
          _
        // Predicated region
        $region41: #{tpu_custom_call.1} parent=11 // pred_check
          %p318 = pneg %p214
        $region42: #{tpu_custom_call.1} parent=11 // pred_check_branch
          %320 = sbr.rel (%p318) target = $region44
        $region43: #{tpu_custom_call.1} parent=11 // pred_region
          _
        $region44: #{tpu_custom_call.1} parent=11 // pred_fallthru
          _
        // Predicated region
        $region45: #{tpu_custom_call.1} parent=11 // pred_check
          %p321 = pneg %p235
        $region46: #{tpu_custom_call.1} parent=11 // pred_check_branch
          %323 = sbr.rel (%p321) target = $region48
        $region47: #{tpu_custom_call.1} parent=11 // pred_region
          _
        $region48: #{tpu_custom_call.1} parent=11 // pred_fallthru
          _
        // Predicated region
        $region49: #{tpu_custom_call.1} parent=11 // pred_check
          %p324 = pneg %p256
        $region50: #{tpu_custom_call.1} parent=11 // pred_check_branch
          %326 = sbr.rel (%p324) target = $region52
        $region51: #{tpu_custom_call.1} parent=11 // pred_region
          _
        $region52: #{tpu_custom_call.1} parent=11 // pred_fallthru
          _
      $region12: #{tpu_custom_call.1} parent=5 // pred_fallthru
        _
      %p327 = scmp.lt.s32.totalorder %s20, 2
      // Predicated region
      $region53: #{tpu_custom_call.1} parent=5 // pred_check
        %p328 = pneg %p327
      $region54: #{tpu_custom_call.1} parent=5 // pred_check_branch
        %330 = sbr.rel (%p328) target = $region56
      $region55: #{tpu_custom_call.1} parent=5 // pred_region
        // Predicated region
        $region57: #{tpu_custom_call.1} parent=55 // pred_check
          %p331 = pneg %p40
        $region58: #{tpu_custom_call.1} parent=55 // pred_check_branch
          %333 = sbr.rel (%p331) target = $region60
        $region59: #{tpu_custom_call.1} parent=55 // pred_region
          %p334 = scmp.lt.s32.totalorder %s20, 1
          %s335 = scalar_select %p334, %s20, 1
          %s336 = smul.addr %s335, 32
          %s337 = smul.addr %s336, 8
          %s338 = scalar_lea.vmem %s0, %s337
        $region60: #{tpu_custom_call.1} parent=55 // pred_fallthru
          _
      $region56: #{tpu_custom_call.1} parent=5 // pred_fallthru
        _
      %p339 = scmp.le.s32.totalorder 1, %s20
      %p340 = scmp.lt.s32.totalorder %s20, 3
      %p341 = pnand %p339, %p340
      %p342 = pneg %p341
      // Predicated region
      $region61: #{tpu_custom_call.1} parent=5 // pred_check
        _
      $region62: #{tpu_custom_call.1} parent=5 // pred_check_branch
        %344 = sbr.rel (%p341) target = $region64
      $region63: #{tpu_custom_call.1} parent=5 // pred_region
        %s345 = ssub.s32 %s20, 1
        %p346 = scmp.lt.s32.totalorder %s25, 1
        %s347 = scalar_select %p346, %s25, 1
        %s348 = smul.addr %s347, 32
        %s349 = smul.addr %s348, 8
        %s350 = scalar_lea.vmem %s0, %s349
        %p351 = pneg %p46
        %p352 = pneg %p43
        %p353 = pneg %p67
        %p354 = pneg %p64
        %p355 = pneg %p88
        %p356 = pneg %p85
        %p357 = pneg %p109
        %p358 = pneg %p106
        %p359 = pneg %p130
        %p360 = pneg %p127
        %p361 = pneg %p151
        %p362 = pneg %p148
        %p363 = pneg %p172
        %p364 = pneg %p169
        %p365 = pneg %p193
        %p366 = pneg %p190
        %p367 = pneg %p214
        %p368 = pneg %p211
        %p369 = pneg %p235
        %p370 = pneg %p232
        %p371 = pneg %p256
        %p372 = pneg %p253
        %p373 = pneg %p282
        %p374 = pneg %p279
        %s375 = sand.u32 %s269, 1
        %s376 = scalar_lea.sflag [#allocation5], %s375
        %s377 = sand.u32 %s269, 1
        %s378 = smul.addr %s377, 256
        %s379 = scalar_lea.vmem [#allocation4], %s378
        %p380 = scmp.lt.s32.totalorder %s25, 1
        %s381 = scalar_select %p380, %s25, 1
        %s382 = smul.addr %s381, 32
        %s383 = smul.addr %s382, 8
        %s384 = scalar_lea.vmem %s0, %s383
        %v385 = vld [vmem:[%s384] sm:$0xff]
        %v386 = vld [vmem:[%s384 + $0x8] sm:$0xff]
        %v387 = vld [vmem:[%s384 + $0x10] sm:$0xff]
        %v388 = vld [vmem:[%s384 + $0x18] sm:$0xff]
        %v389 = vld [vmem:[%s384 + $0x20] sm:$0xff]
        %v390 = vld [vmem:[%s384 + $0x28] sm:$0xff]
        %v391 = vld [vmem:[%s384 + $0x30] sm:$0xff]
        %v392 = vld [vmem:[%s384 + $0x38] sm:$0xff]
        %v393 = vld [vmem:[%s384 + $0x40] sm:$0xff]
        %v394 = vld [vmem:[%s384 + $0x48] sm:$0xff]
        %v395 = vld [vmem:[%s384 + $0x50] sm:$0xff]
        %v396 = vld [vmem:[%s384 + $0x58] sm:$0xff]
        %v397 = vld [vmem:[%s384 + $0x60] sm:$0xff]
        %v398 = vld [vmem:[%s384 + $0x68] sm:$0xff]
        %v399 = vld [vmem:[%s384 + $0x70] sm:$0xff]
        %v400 = vld [vmem:[%s384 + $0x78] sm:$0xff]
        %v401 = vld [vmem:[%s384 + $0x80] sm:$0xff]
        %v402 = vld [vmem:[%s384 + $0x88] sm:$0xff]
        %v403 = vld [vmem:[%s384 + $0x90] sm:$0xff]
        %v404 = vld [vmem:[%s384 + $0x98] sm:$0xff]
        %v405 = vld [vmem:[%s384 + $0xa0] sm:$0xff]
        %v406 = vld [vmem:[%s384 + $0xa8] sm:$0xff]
        %v407 = vld [vmem:[%s384 + $0xb0] sm:$0xff]
        %v408 = vld [vmem:[%s384 + $0xb8] sm:$0xff]
        %v409 = vld [vmem:[%s384 + $0xc0] sm:$0xff]
        %v410 = vld [vmem:[%s384 + $0xc8] sm:$0xff]
        %v411 = vld [vmem:[%s384 + $0xd0] sm:$0xff]
        %v412 = vld [vmem:[%s384 + $0xd8] sm:$0xff]
        %v413 = vld [vmem:[%s384 + $0xe0] sm:$0xff]
        %v414 = vld [vmem:[%s384 + $0xe8] sm:$0xff]
        %v415 = vld [vmem:[%s384 + $0xf0] sm:$0xff]
        %v416 = vld [vmem:[%s384 + $0xf8] sm:$0xff]
        %vm417 = vcmask 261120
        %418 = vst.msk [vmem:[#allocation2] sm:$0xff] %vm417, 0.0
        %419 = vst.msk [vmem:[#allocation2 + $0x8] sm:$0xff] %vm417, 0.0
        %vm420 = vcmask 254976
        %421 = vst.msk [vmem:[#allocation2 + $0x10] sm:$0x3] %vm420, 0.0
        %s422 = scalar_lea.vmem [#allocation2], 24
        %vm423 = vcmask 253952
        %424 = vst.msk [vmem:[%s422] sm:$0x1] %vm423, 0.0
        %425 = vst.msk [vmem:[%s422 + $0x18] sm:$0x1] %vm423, 0.0
        %426 = vst.msk [vmem:[%s422 + $0x30] sm:$0x1] %vm423, 0.0
        %427 = vst.msk [vmem:[%s422 + $0x48] sm:$0x1] %vm423, 0.0
        %428 = vst.msk [vmem:[%s422 + $0x60] sm:$0x1] %vm423, 0.0
        %429 = vst.msk [vmem:[%s422 + $0x78] sm:$0x1] %vm423, 0.0
        %430 = vst.msk [vmem:[%s422 + $0x90] sm:$0x1] %vm423, 0.0
        %431 = vst.msk [vmem:[%s422 + $0xa8] sm:$0x1] %vm423, 0.0
        %432 = vst.msk [vmem:[%s422 + $0xc0] sm:$0x1] %vm423, 0.0
        %433 = vst.msk [vmem:[%s422 + $0xd8] sm:$0x1] %vm423, 0.0
        %434 = vst.msk [vmem:[%s422 + $0xf0] sm:$0x1] %vm423, 0.0
        %435 = vst.msk [vmem:[%s422 + $0x108] sm:$0x1] %vm423, 0.0
        %436 = vst.msk [vmem:[%s422 + $0x120] sm:$0x1] %vm423, 0.0
        %437 = vst.msk [vmem:[%s422 + $0x138] sm:$0x1] %vm423, 0.0
        %438 = vst.msk [vmem:[%s422 + $0x150] sm:$0x1] %vm423, 0.0
        %439 = vst.msk [vmem:[%s422 + $0x168] sm:$0x1] %vm423, 0.0
        %440 = vst.msk [vmem:[%s422 + $0x11] sm:$0x1] %vm423, 0.0
        %441 = vst.msk [vmem:[%s422 + $0x29] sm:$0x1] %vm423, 0.0
        %442 = vst.msk [vmem:[%s422 + $0x41] sm:$0x1] %vm423, 0.0
        %443 = vst.msk [vmem:[%s422 + $0x59] sm:$0x1] %vm423, 0.0
        %444 = vst.msk [vmem:[%s422 + $0x71] sm:$0x1] %vm423, 0.0
        %445 = vst.msk [vmem:[%s422 + $0x89] sm:$0x1] %vm423, 0.0
        %446 = vst.msk [vmem:[%s422 + $0xa1] sm:$0x1] %vm423, 0.0
        %447 = vst.msk [vmem:[%s422 + $0xb9] sm:$0x1] %vm423, 0.0
        %448 = vst.msk [vmem:[%s422 + $0xd1] sm:$0x1] %vm423, 0.0
        %449 = vst.msk [vmem:[%s422 + $0xe9] sm:$0x1] %vm423, 0.0
        %450 = vst.msk [vmem:[%s422 + $0x101] sm:$0x1] %vm423, 0.0
        %451 = vst.msk [vmem:[%s422 + $0x119] sm:$0x1] %vm423, 0.0
        %452 = vst.msk [vmem:[%s422 + $0x131] sm:$0x1] %vm423, 0.0
        %453 = vst.msk [vmem:[%s422 + $0x149] sm:$0x1] %vm423, 0.0
        %454 = vst.msk [vmem:[%s422 + $0x161] sm:$0x1] %vm423, 0.0
        %455 = vst.msk [vmem:[%s422 + $0x179] sm:$0x1] %vm423, 0.0
        %456 = vst.msk [vmem:[%s422 + $0x1] sm:$0xff] %vm417, %v385
        %457 = vst.msk [vmem:[%s422 + $0x9] sm:$0xff] %vm417, %v386
        %458 = vst.msk [vmem:[%s422 + $0x19] sm:$0xff] %vm417, %v387
        %459 = vst.msk [vmem:[%s422 + $0x21] sm:$0xff] %vm417, %v388
        %460 = vst.msk [vmem:[%s422 + $0x31] sm:$0xff] %vm417, %v389
        %461 = vst.msk [vmem:[%s422 + $0x39] sm:$0xff] %vm417, %v390
        %462 = vst.msk [vmem:[%s422 + $0x49] sm:$0xff] %vm417, %v391
        %463 = vst.msk [vmem:[%s422 + $0x51] sm:$0xff] %vm417, %v392
        %464 = vst.msk [vmem:[%s422 + $0x61] sm:$0xff] %vm417, %v393
        %465 = vst.msk [vmem:[%s422 + $0x69] sm:$0xff] %vm417, %v394
        %466 = vst.msk [vmem:[%s422 + $0x79] sm:$0xff] %vm417, %v395
        %467 = vst.msk [vmem:[%s422 + $0x81] sm:$0xff] %vm417, %v396
        %468 = vst.msk [vmem:[%s422 + $0x91] sm:$0xff] %vm417, %v397
        %469 = vst.msk [vmem:[%s422 + $0x99] sm:$0xff] %vm417, %v398
        %470 = vst.msk [vmem:[%s422 + $0xa9] sm:$0xff] %vm417, %v399
        %471 = vst.msk [vmem:[%s422 + $0xb1] sm:$0xff] %vm417, %v400
        %472 = vst.msk [vmem:[%s422 + $0xc1] sm:$0xff] %vm417, %v401
        %473 = vst.msk [vmem:[%s422 + $0xc9] sm:$0xff] %vm417, %v402
        %474 = vst.msk [vmem:[%s422 + $0xd9] sm:$0xff] %vm417, %v403
        %475 = vst.msk [vmem:[%s422 + $0xe1] sm:$0xff] %vm417, %v404
        %476 = vst.msk [vmem:[%s422 + $0xf1] sm:$0xff] %vm417, %v405
        %477 = vst.msk [vmem:[%s422 + $0xf9] sm:$0xff] %vm417, %v406
        %478 = vst.msk [vmem:[%s422 + $0x109] sm:$0xff] %vm417, %v407
        %479 = vst.msk [vmem:[%s422 + $0x111] sm:$0xff] %vm417, %v408
        %480 = vst.msk [vmem:[%s422 + $0x121] sm:$0xff] %vm417, %v409
        %481 = vst.msk [vmem:[%s422 + $0x129] sm:$0xff] %vm417, %v410
        %482 = vst.msk [vmem:[%s422 + $0x139] sm:$0xff] %vm417, %v411
        %483 = vst.msk [vmem:[%s422 + $0x141] sm:$0xff] %vm417, %v412
        %484 = vst.msk [vmem:[%s422 + $0x151] sm:$0xff] %vm417, %v413
        %485 = vst.msk [vmem:[%s422 + $0x159] sm:$0xff] %vm417, %v414
        %486 = vst.msk [vmem:[%s422 + $0x169] sm:$0xff] %vm417, %v415
        %487 = vst.msk [vmem:[%s422 + $0x171] sm:$0xff] %vm417, %v416
        %v488 = vld [vmem:[#allocation2] sm:$0xff]
        %v489 = vld [vmem:[#allocation2 + $0x8] sm:$0xff]
        %v490 = vld [vmem:[#allocation2 + $0x18] sm:$0xff]
        %v491 = vld [vmem:[#allocation2 + $0x20] sm:$0xff]
        %v492 = vld [vmem:[#allocation2 + $0x30] sm:$0xff]
        %v493 = vld [vmem:[#allocation2 + $0x38] sm:$0xff]
        %v494 = vld [vmem:[#allocation2 + $0x48] sm:$0xff]
        %v495 = vld [vmem:[#allocation2 + $0x50] sm:$0xff]
        %v496 = vld [vmem:[#allocation2 + $0x60] sm:$0xff]
        %v497 = vld [vmem:[#allocation2 + $0x68] sm:$0xff]
        %v498 = vld [vmem:[#allocation2 + $0x78] sm:$0xff]
        %v499 = vld [vmem:[#allocation2 + $0x80] sm:$0xff]
        %v500 = vld [vmem:[#allocation2 + $0x90] sm:$0xff]
        %v501 = vld [vmem:[#allocation2 + $0x98] sm:$0xff]
        %v502 = vld [vmem:[#allocation2 + $0xa8] sm:$0xff]
        %v503 = vld [vmem:[#allocation2 + $0xb0] sm:$0xff]
        %v504 = vld [vmem:[#allocation2 + $0xc0] sm:$0xff]
        %v505 = vld [vmem:[#allocation2 + $0xc8] sm:$0xff]
        %v506 = vld [vmem:[#allocation2 + $0xd8] sm:$0xff]
        %v507 = vld [vmem:[#allocation2 + $0xe0] sm:$0xff]
        %v508 = vld [vmem:[#allocation2 + $0xf0] sm:$0xff]
        %v509 = vld [vmem:[#allocation2 + $0xf8] sm:$0xff]
        %v510 = vld [vmem:[#allocation2 + $0x108] sm:$0xff]
        %v511 = vld [vmem:[#allocation2 + $0x110] sm:$0xff]
        %v512 = vld [vmem:[#allocation2 + $0x120] sm:$0xff]
        %v513 = vld [vmem:[#allocation2 + $0x128] sm:$0xff]
        %v514 = vld [vmem:[#allocation2 + $0x138] sm:$0xff]
        %v515 = vld [vmem:[#allocation2 + $0x140] sm:$0xff]
        %v516 = vld [vmem:[#allocation2 + $0x150] sm:$0xff]
        %v517 = vld [vmem:[#allocation2 + $0x158] sm:$0xff]
        %v518 = vld [vmem:[#allocation2 + $0x168] sm:$0xff]
        %v519 = vld [vmem:[#allocation2 + $0x170] sm:$0xff]
        %v520 = vld [vmem:[#allocation2 + $0x1] sm:$0xff]
        %v521 = vld [vmem:[#allocation2 + $0x9] sm:$0xff]
        %v522 = vld [vmem:[#allocation2 + $0x19] sm:$0xff]
        %v523 = vld [vmem:[#allocation2 + $0x21] sm:$0xff]
        %v524 = vld [vmem:[#allocation2 + $0x31] sm:$0xff]
        %v525 = vld [vmem:[#allocation2 + $0x39] sm:$0xff]
        %v526 = vld [vmem:[#allocation2 + $0x49] sm:$0xff]
        %v527 = vld [vmem:[#allocation2 + $0x51] sm:$0xff]
        %v528 = vld [vmem:[#allocation2 + $0x61] sm:$0xff]
        %v529 = vld [vmem:[#allocation2 + $0x69] sm:$0xff]
        %v530 = vld [vmem:[#allocation2 + $0x79] sm:$0xff]
        %v531 = vld [vmem:[#allocation2 + $0x81] sm:$0xff]
        %v532 = vld [vmem:[#allocation2 + $0x91] sm:$0xff]
        %v533 = vld [vmem:[#allocation2 + $0x99] sm:$0xff]
        %v534 = vld [vmem:[#allocation2 + $0xa9] sm:$0xff]
        %v535 = vld [vmem:[#allocation2 + $0xb1] sm:$0xff]
        %v536 = vld [vmem:[#allocation2 + $0xc1] sm:$0xff]
        %v537 = vld [vmem:[#allocation2 + $0xc9] sm:$0xff]
        %v538 = vld [vmem:[#allocation2 + $0xd9] sm:$0xff]
        %v539 = vld [vmem:[#allocation2 + $0xe1] sm:$0xff]
        %v540 = vld [vmem:[#allocation2 + $0xf1] sm:$0xff]
        %v541 = vld [vmem:[#allocation2 + $0xf9] sm:$0xff]
        %v542 = vld [vmem:[#allocation2 + $0x109] sm:$0xff]
        %v543 = vld [vmem:[#allocation2 + $0x111] sm:$0xff]
        %v544 = vld [vmem:[#allocation2 + $0x121] sm:$0xff]
        %v545 = vld [vmem:[#allocation2 + $0x129] sm:$0xff]
        %v546 = vld [vmem:[#allocation2 + $0x139] sm:$0xff]
        %v547 = vld [vmem:[#allocation2 + $0x141] sm:$0xff]
        %v548 = vld [vmem:[#allocation2 + $0x151] sm:$0xff]
        %v549 = vld [vmem:[#allocation2 + $0x159] sm:$0xff]
        %v550 = vld [vmem:[#allocation2 + $0x169] sm:$0xff]
        %v551 = vld [vmem:[#allocation2 + $0x171] sm:$0xff]
        %v552 = vld [vmem:[#allocation2 + $0x2] sm:$0xff]
        %v553 = vld [vmem:[#allocation2 + $0xa] sm:$0xff]
        %v554 = vld [vmem:[#allocation2 + $0x1a] sm:$0xff]
        %v555 = vld [vmem:[#allocation2 + $0x22] sm:$0xff]
        %v556 = vld [vmem:[#allocation2 + $0x32] sm:$0xff]
        %v557 = vld [vmem:[#allocation2 + $0x3a] sm:$0xff]
        %v558 = vld [vmem:[#allocation2 + $0x4a] sm:$0xff]
        %v559 = vld [vmem:[#allocation2 + $0x52] sm:$0xff]
        %v560 = vld [vmem:[#allocation2 + $0x62] sm:$0xff]
        %v561 = vld [vmem:[#allocation2 + $0x6a] sm:$0xff]
        %v562 = vld [vmem:[#allocation2 + $0x7a] sm:$0xff]
        %v563 = vld [vmem:[#allocation2 + $0x82] sm:$0xff]
        %v564 = vld [vmem:[#allocation2 + $0x92] sm:$0xff]
        %v565 = vld [vmem:[#allocation2 + $0x9a] sm:$0xff]
        %v566 = vld [vmem:[#allocation2 + $0xaa] sm:$0xff]
        %v567 = vld [vmem:[#allocation2 + $0xb2] sm:$0xff]
        %v568 = vld [vmem:[#allocation2 + $0xc2] sm:$0xff]
        %v569 = vld [vmem:[#allocation2 + $0xca] sm:$0xff]
        %v570 = vld [vmem:[#allocation2 + $0xda] sm:$0xff]
        %v571 = vld [vmem:[#allocation2 + $0xe2] sm:$0xff]
        %v572 = vld [vmem:[#allocation2 + $0xf2] sm:$0xff]
        %v573 = vld [vmem:[#allocation2 + $0xfa] sm:$0xff]
        %v574 = vld [vmem:[#allocation2 + $0x10a] sm:$0xff]
        %v575 = vld [vmem:[#allocation2 + $0x112] sm:$0xff]
        %v576 = vld [vmem:[#allocation2 + $0x122] sm:$0xff]
        %v577 = vld [vmem:[#allocation2 + $0x12a] sm:$0xff]
        %v578 = vld [vmem:[#allocation2 + $0x13a] sm:$0xff]
        %v579 = vld [vmem:[#allocation2 + $0x142] sm:$0xff]
        %v580 = vld [vmem:[#allocation2 + $0x152] sm:$0xff]
        %v581 = vld [vmem:[#allocation2 + $0x15a] sm:$0xff]
        %v582 = vld [vmem:[#allocation2 + $0x16a] sm:$0xff]
        %v583 = vld [vmem:[#allocation2 + $0x172] sm:$0xff]
        %v584 = vld [vmem:[%s422] sm:$0xff]
        %v585 = vld [vmem:[%s422 + $0x8] sm:$0xff]
        %v586 = vld [vmem:[%s422 + $0x18] sm:$0xff]
        %v587 = vld [vmem:[%s422 + $0x20] sm:$0xff]
        %v588 = vld [vmem:[%s422 + $0x30] sm:$0xff]
        %v589 = vld [vmem:[%s422 + $0x38] sm:$0xff]
        %v590 = vld [vmem:[%s422 + $0x48] sm:$0xff]
        %v591 = vld [vmem:[%s422 + $0x50] sm:$0xff]
        %v592 = vld [vmem:[%s422 + $0x60] sm:$0xff]
        %v593 = vld [vmem:[%s422 + $0x68] sm:$0xff]
        %v594 = vld [vmem:[%s422 + $0x78] sm:$0xff]
        %v595 = vld [vmem:[%s422 + $0x80] sm:$0xff]
        %v596 = vld [vmem:[%s422 + $0x90] sm:$0xff]
        %v597 = vld [vmem:[%s422 + $0x98] sm:$0xff]
        %v598 = vld [vmem:[%s422 + $0xa8] sm:$0xff]
        %v599 = vld [vmem:[%s422 + $0xb0] sm:$0xff]
        %v600 = vld [vmem:[%s422 + $0xc0] sm:$0xff]
        %v601 = vld [vmem:[%s422 + $0xc8] sm:$0xff]
        %v602 = vld [vmem:[%s422 + $0xd8] sm:$0xff]
        %v603 = vld [vmem:[%s422 + $0xe0] sm:$0xff]
        %v604 = vld [vmem:[%s422 + $0xf0] sm:$0xff]
        %v605 = vld [vmem:[%s422 + $0xf8] sm:$0xff]
        %v606 = vld [vmem:[%s422 + $0x108] sm:$0xff]
        %v607 = vld [vmem:[%s422 + $0x110] sm:$0xff]
        %v608 = vld [vmem:[%s422 + $0x120] sm:$0xff]
        %v609 = vld [vmem:[%s422 + $0x128] sm:$0xff]
        %v610 = vld [vmem:[%s422 + $0x138] sm:$0xff]
        %v611 = vld [vmem:[%s422 + $0x140] sm:$0xff]
        %v612 = vld [vmem:[%s422 + $0x150] sm:$0xff]
        %v613 = vld [vmem:[%s422 + $0x158] sm:$0xff]
        %v614 = vld [vmem:[%s422 + $0x168] sm:$0xff]
        %v615 = vld [vmem:[%s422 + $0x170] sm:$0xff]
        %v616 = vld [vmem:[%s422 + $0x1] sm:$0xff]
        %v617 = vld [vmem:[%s422 + $0x9] sm:$0xff]
        %v618 = vld [vmem:[%s422 + $0x19] sm:$0xff]
        %v619 = vld [vmem:[%s422 + $0x21] sm:$0xff]
        %v620 = vld [vmem:[%s422 + $0x31] sm:$0xff]
        %v621 = vld [vmem:[%s422 + $0x39] sm:$0xff]
        %v622 = vld [vmem:[%s422 + $0x49] sm:$0xff]
        %v623 = vld [vmem:[%s422 + $0x51] sm:$0xff]
        %v624 = vld [vmem:[%s422 + $0x61] sm:$0xff]
        %v625 = vld [vmem:[%s422 + $0x69] sm:$0xff]
        %v626 = vld [vmem:[%s422 + $0x79] sm:$0xff]
        %v627 = vld [vmem:[%s422 + $0x81] sm:$0xff]
        %v628 = vld [vmem:[%s422 + $0x91] sm:$0xff]
        %v629 = vld [vmem:[%s422 + $0x99] sm:$0xff]
        %v630 = vld [vmem:[%s422 + $0xa9] sm:$0xff]
        %v631 = vld [vmem:[%s422 + $0xb1] sm:$0xff]
        %v632 = vld [vmem:[%s422 + $0xc1] sm:$0xff]
        %v633 = vld [vmem:[%s422 + $0xc9] sm:$0xff]
        %v634 = vld [vmem:[%s422 + $0xd9] sm:$0xff]
        %v635 = vld [vmem:[%s422 + $0xe1] sm:$0xff]
        %v636 = vld [vmem:[%s422 + $0xf1] sm:$0xff]
        %v637 = vld [vmem:[%s422 + $0xf9] sm:$0xff]
        %v638 = vld [vmem:[%s422 + $0x109] sm:$0xff]
        %v639 = vld [vmem:[%s422 + $0x111] sm:$0xff]
        %v640 = vld [vmem:[%s422 + $0x121] sm:$0xff]
        %v641 = vld [vmem:[%s422 + $0x129] sm:$0xff]
        %v642 = vld [vmem:[%s422 + $0x139] sm:$0xff]
        %v643 = vld [vmem:[%s422 + $0x141] sm:$0xff]
        %v644 = vld [vmem:[%s422 + $0x151] sm:$0xff]
        %v645 = vld [vmem:[%s422 + $0x159] sm:$0xff]
        %v646 = vld [vmem:[%s422 + $0x169] sm:$0xff]
        %v647 = vld [vmem:[%s422 + $0x171] sm:$0xff]
        %v648 = vld [vmem:[%s422 + $0x2] sm:$0xff]
        %v649 = vld [vmem:[%s422 + $0xa] sm:$0xff]
        %v650 = vld [vmem:[%s422 + $0x1a] sm:$0xff]
        %v651 = vld [vmem:[%s422 + $0x22] sm:$0xff]
        %v652 = vld [vmem:[%s422 + $0x32] sm:$0xff]
        %v653 = vld [vmem:[%s422 + $0x3a] sm:$0xff]
        %v654 = vld [vmem:[%s422 + $0x4a] sm:$0xff]
        %v655 = vld [vmem:[%s422 + $0x52] sm:$0xff]
        %v656 = vld [vmem:[%s422 + $0x62] sm:$0xff]
        %v657 = vld [vmem:[%s422 + $0x6a] sm:$0xff]
        %v658 = vld [vmem:[%s422 + $0x7a] sm:$0xff]
        %v659 = vld [vmem:[%s422 + $0x82] sm:$0xff]
        %v660 = vld [vmem:[%s422 + $0x92] sm:$0xff]
        %v661 = vld [vmem:[%s422 + $0x9a] sm:$0xff]
        %v662 = vld [vmem:[%s422 + $0xaa] sm:$0xff]
        %v663 = vld [vmem:[%s422 + $0xb2] sm:$0xff]
        %v664 = vld [vmem:[%s422 + $0xc2] sm:$0xff]
        %v665 = vld [vmem:[%s422 + $0xca] sm:$0xff]
        %v666 = vld [vmem:[%s422 + $0xda] sm:$0xff]
        %v667 = vld [vmem:[%s422 + $0xe2] sm:$0xff]
        %v668 = vld [vmem:[%s422 + $0xf2] sm:$0xff]
        %v669 = vld [vmem:[%s422 + $0xfa] sm:$0xff]
        %v670 = vld [vmem:[%s422 + $0x10a] sm:$0xff]
        %v671 = vld [vmem:[%s422 + $0x112] sm:$0xff]
        %v672 = vld [vmem:[%s422 + $0x122] sm:$0xff]
        %v673 = vld [vmem:[%s422 + $0x12a] sm:$0xff]
        %v674 = vld [vmem:[%s422 + $0x13a] sm:$0xff]
        %v675 = vld [vmem:[%s422 + $0x142] sm:$0xff]
        %v676 = vld [vmem:[%s422 + $0x152] sm:$0xff]
        %v677 = vld [vmem:[%s422 + $0x15a] sm:$0xff]
        %v678 = vld [vmem:[%s422 + $0x16a] sm:$0xff]
        %v679 = vld [vmem:[%s422 + $0x172] sm:$0xff]
        %712 = vrot.lane.b32.xlu0 %v520, 32
        %v713 = vpop.permute.xlu0 %712
        %714 = vrot.lane.b32.xlu0 %v521, 32
        %v715 = vpop.permute.xlu0 %714
        %716 = vrot.lane.b32.xlu0 %v522, 32
        %v717 = vpop.permute.xlu0 %716
        %718 = vrot.lane.b32.xlu0 %v523, 32
        %v719 = vpop.permute.xlu0 %718
        %720 = vrot.lane.b32.xlu0 %v524, 32
        %v721 = vpop.permute.xlu0 %720
        %722 = vrot.lane.b32.xlu0 %v525, 32
        %v723 = vpop.permute.xlu0 %722
        %724 = vrot.lane.b32.xlu0 %v526, 32
        %v725 = vpop.permute.xlu0 %724
        %726 = vrot.lane.b32.xlu0 %v527, 32
        %v727 = vpop.permute.xlu0 %726
        %728 = vrot.lane.b32.xlu0 %v528, 32
        %v729 = vpop.permute.xlu0 %728
        %730 = vrot.lane.b32.xlu0 %v529, 32
        %v731 = vpop.permute.xlu0 %730
        %732 = vrot.lane.b32.xlu0 %v530, 32
        %v733 = vpop.permute.xlu0 %732
        %734 = vrot.lane.b32.xlu0 %v531, 32
        %v735 = vpop.permute.xlu0 %734
        %736 = vrot.lane.b32.xlu0 %v532, 32
        %v737 = vpop.permute.xlu0 %736
        %738 = vrot.lane.b32.xlu0 %v533, 32
        %v739 = vpop.permute.xlu0 %738
        %740 = vrot.lane.b32.xlu0 %v534, 32
        %v741 = vpop.permute.xlu0 %740
        %742 = vrot.lane.b32.xlu0 %v535, 32
        %v743 = vpop.permute.xlu0 %742
        %744 = vrot.lane.b32.xlu0 %v536, 32
        %v745 = vpop.permute.xlu0 %744
        %746 = vrot.lane.b32.xlu0 %v537, 32
        %v747 = vpop.permute.xlu0 %746
        %748 = vrot.lane.b32.xlu0 %v538, 32
        %v749 = vpop.permute.xlu0 %748
        %750 = vrot.lane.b32.xlu0 %v539, 32
        %v751 = vpop.permute.xlu0 %750
        %752 = vrot.lane.b32.xlu0 %v540, 32
        %v753 = vpop.permute.xlu0 %752
        %754 = vrot.lane.b32.xlu0 %v541, 32
        %v755 = vpop.permute.xlu0 %754
        %756 = vrot.lane.b32.xlu0 %v542, 32
        %v757 = vpop.permute.xlu0 %756
        %758 = vrot.lane.b32.xlu0 %v543, 32
        %v759 = vpop.permute.xlu0 %758
        %760 = vrot.lane.b32.xlu0 %v544, 32
        %v761 = vpop.permute.xlu0 %760
        %762 = vrot.lane.b32.xlu0 %v545, 32
        %v763 = vpop.permute.xlu0 %762
        %764 = vrot.lane.b32.xlu0 %v546, 32
        %v765 = vpop.permute.xlu0 %764
        %766 = vrot.lane.b32.xlu0 %v547, 32
        %v767 = vpop.permute.xlu0 %766
        %768 = vrot.lane.b32.xlu0 %v548, 32
        %v769 = vpop.permute.xlu0 %768
        %770 = vrot.lane.b32.xlu0 %v549, 32
        %v771 = vpop.permute.xlu0 %770
        %772 = vrot.lane.b32.xlu0 %v550, 32
        %v773 = vpop.permute.xlu0 %772
        %774 = vrot.lane.b32.xlu0 %v551, 32
        %v775 = vpop.permute.xlu0 %774
        %840 = vrot.lane.b32.xlu0 %v552, 64
        %v841 = vpop.permute.xlu0 %840
        %842 = vrot.lane.b32.xlu0 %v553, 64
        %v843 = vpop.permute.xlu0 %842
        %844 = vrot.lane.b32.xlu0 %v554, 64
        %v845 = vpop.permute.xlu0 %844
        %846 = vrot.lane.b32.xlu0 %v555, 64
        %v847 = vpop.permute.xlu0 %846
        %848 = vrot.lane.b32.xlu0 %v556, 64
        %v849 = vpop.permute.xlu0 %848
        %850 = vrot.lane.b32.xlu0 %v557, 64
        %v851 = vpop.permute.xlu0 %850
        %852 = vrot.lane.b32.xlu0 %v558, 64
        %v853 = vpop.permute.xlu0 %852
        %854 = vrot.lane.b32.xlu0 %v559, 64
        %v855 = vpop.permute.xlu0 %854
        %856 = vrot.lane.b32.xlu0 %v560, 64
        %v857 = vpop.permute.xlu0 %856
        %858 = vrot.lane.b32.xlu0 %v561, 64
        %v859 = vpop.permute.xlu0 %858
        %860 = vrot.lane.b32.xlu0 %v562, 64
        %v861 = vpop.permute.xlu0 %860
        %862 = vrot.lane.b32.xlu0 %v563, 64
        %v863 = vpop.permute.xlu0 %862
        %864 = vrot.lane.b32.xlu0 %v564, 64
        %v865 = vpop.permute.xlu0 %864
        %866 = vrot.lane.b32.xlu0 %v565, 64
        %v867 = vpop.permute.xlu0 %866
        %868 = vrot.lane.b32.xlu0 %v566, 64
        %v869 = vpop.permute.xlu0 %868
        %870 = vrot.lane.b32.xlu0 %v567, 64
        %v871 = vpop.permute.xlu0 %870
        %872 = vrot.lane.b32.xlu0 %v568, 64
        %v873 = vpop.permute.xlu0 %872
        %874 = vrot.lane.b32.xlu0 %v569, 64
        %v875 = vpop.permute.xlu0 %874
        %876 = vrot.lane.b32.xlu0 %v570, 64
        %v877 = vpop.permute.xlu0 %876
        %878 = vrot.lane.b32.xlu0 %v571, 64
        %v879 = vpop.permute.xlu0 %878
        %880 = vrot.lane.b32.xlu0 %v572, 64
        %v881 = vpop.permute.xlu0 %880
        %882 = vrot.lane.b32.xlu0 %v573, 64
        %v883 = vpop.permute.xlu0 %882
        %884 = vrot.lane.b32.xlu0 %v574, 64
        %v885 = vpop.permute.xlu0 %884
        %886 = vrot.lane.b32.xlu0 %v575, 64
        %v887 = vpop.permute.xlu0 %886
        %888 = vrot.lane.b32.xlu0 %v576, 64
        %v889 = vpop.permute.xlu0 %888
        %890 = vrot.lane.b32.xlu0 %v577, 64
        %v891 = vpop.permute.xlu0 %890
        %892 = vrot.lane.b32.xlu0 %v578, 64
        %v893 = vpop.permute.xlu0 %892
        %894 = vrot.lane.b32.xlu0 %v579, 64
        %v895 = vpop.permute.xlu0 %894
        %896 = vrot.lane.b32.xlu0 %v580, 64
        %v897 = vpop.permute.xlu0 %896
        %898 = vrot.lane.b32.xlu0 %v581, 64
        %v899 = vpop.permute.xlu0 %898
        %900 = vrot.lane.b32.xlu0 %v582, 64
        %v901 = vpop.permute.xlu0 %900
        %902 = vrot.lane.b32.xlu0 %v583, 64
        %v903 = vpop.permute.xlu0 %902
        %968 = vrot.lane.b32.xlu0 %v584, 96
        %v969 = vpop.permute.xlu0 %968
        %970 = vrot.lane.b32.xlu0 %v585, 96
        %v971 = vpop.permute.xlu0 %970
        %972 = vrot.lane.b32.xlu0 %v586, 96
        %v973 = vpop.permute.xlu0 %972
        %974 = vrot.lane.b32.xlu0 %v587, 96
        %v975 = vpop.permute.xlu0 %974
        %976 = vrot.lane.b32.xlu0 %v588, 96
        %v977 = vpop.permute.xlu0 %976
        %978 = vrot.lane.b32.xlu0 %v589, 96
        %v979 = vpop.permute.xlu0 %978
        %980 = vrot.lane.b32.xlu0 %v590, 96
        %v981 = vpop.permute.xlu0 %980
        %982 = vrot.lane.b32.xlu0 %v591, 96
        %v983 = vpop.permute.xlu0 %982
        %984 = vrot.lane.b32.xlu0 %v592, 96
        %v985 = vpop.permute.xlu0 %984
        %986 = vrot.lane.b32.xlu0 %v593, 96
        %v987 = vpop.permute.xlu0 %986
        %988 = vrot.lane.b32.xlu0 %v594, 96
        %v989 = vpop.permute.xlu0 %988
        %990 = vrot.lane.b32.xlu0 %v595, 96
        %v991 = vpop.permute.xlu0 %990
        %992 = vrot.lane.b32.xlu0 %v596, 96
        %v993 = vpop.permute.xlu0 %992
        %994 = vrot.lane.b32.xlu0 %v597, 96
        %v995 = vpop.permute.xlu0 %994
        %996 = vrot.lane.b32.xlu0 %v598, 96
        %v997 = vpop.permute.xlu0 %996
        %998 = vrot.lane.b32.xlu0 %v599, 96
        %v999 = vpop.permute.xlu0 %998
        %1000 = vrot.lane.b32.xlu0 %v600, 96
        %v1001 = vpop.permute.xlu0 %1000
        %1002 = vrot.lane.b32.xlu0 %v601, 96
        %v1003 = vpop.permute.xlu0 %1002
        %1004 = vrot.lane.b32.xlu0 %v602, 96
        %v1005 = vpop.permute.xlu0 %1004
        %1006 = vrot.lane.b32.xlu0 %v603, 96
        %v1007 = vpop.permute.xlu0 %1006
        %1008 = vrot.lane.b32.xlu0 %v604, 96
        %v1009 = vpop.permute.xlu0 %1008
        %1010 = vrot.lane.b32.xlu0 %v605, 96
        %v1011 = vpop.permute.xlu0 %1010
        %1012 = vrot.lane.b32.xlu0 %v606, 96
        %v1013 = vpop.permute.xlu0 %1012
        %1014 = vrot.lane.b32.xlu0 %v607, 96
        %v1015 = vpop.permute.xlu0 %1014
        %1016 = vrot.lane.b32.xlu0 %v608, 96
        %v1017 = vpop.permute.xlu0 %1016
        %1018 = vrot.lane.b32.xlu0 %v609, 96
        %v1019 = vpop.permute.xlu0 %1018
        %1020 = vrot.lane.b32.xlu0 %v610, 96
        %v1021 = vpop.permute.xlu0 %1020
        %1022 = vrot.lane.b32.xlu0 %v611, 96
        %v1023 = vpop.permute.xlu0 %1022
        %1024 = vrot.lane.b32.xlu0 %v612, 96
        %v1025 = vpop.permute.xlu0 %1024
        %1026 = vrot.lane.b32.xlu0 %v613, 96
        %v1027 = vpop.permute.xlu0 %1026
        %1028 = vrot.lane.b32.xlu0 %v614, 96
        %v1029 = vpop.permute.xlu0 %1028
        %1030 = vrot.lane.b32.xlu0 %v615, 96
        %v1031 = vpop.permute.xlu0 %1030
        %1096 = vrot.lane.b32.xlu0 %v648, 32
        %v1097 = vpop.permute.xlu0 %1096
        %1098 = vrot.lane.b32.xlu0 %v649, 32
        %v1099 = vpop.permute.xlu0 %1098
        %1100 = vrot.lane.b32.xlu0 %v650, 32
        %v1101 = vpop.permute.xlu0 %1100
        %1102 = vrot.lane.b32.xlu0 %v651, 32
        %v1103 = vpop.permute.xlu0 %1102
        %1104 = vrot.lane.b32.xlu0 %v652, 32
        %v1105 = vpop.permute.xlu0 %1104
        %1106 = vrot.lane.b32.xlu0 %v653, 32
        %v1107 = vpop.permute.xlu0 %1106
        %1108 = vrot.lane.b32.xlu0 %v654, 32
        %v1109 = vpop.permute.xlu0 %1108
        %1110 = vrot.lane.b32.xlu0 %v655, 32
        %v1111 = vpop.permute.xlu0 %1110
        %1112 = vrot.lane.b32.xlu0 %v656, 32
        %v1113 = vpop.permute.xlu0 %1112
        %1114 = vrot.lane.b32.xlu0 %v657, 32
        %v1115 = vpop.permute.xlu0 %1114
        %1116 = vrot.lane.b32.xlu0 %v658, 32
        %v1117 = vpop.permute.xlu0 %1116
        %1118 = vrot.lane.b32.xlu0 %v659, 32
        %v1119 = vpop.permute.xlu0 %1118
        %1120 = vrot.lane.b32.xlu0 %v660, 32
        %v1121 = vpop.permute.xlu0 %1120
        %1122 = vrot.lane.b32.xlu0 %v661, 32
        %v1123 = vpop.permute.xlu0 %1122
        %1124 = vrot.lane.b32.xlu0 %v662, 32
        %v1125 = vpop.permute.xlu0 %1124
        %1126 = vrot.lane.b32.xlu0 %v663, 32
        %v1127 = vpop.permute.xlu0 %1126
        %1128 = vrot.lane.b32.xlu0 %v664, 32
        %v1129 = vpop.permute.xlu0 %1128
        %1130 = vrot.lane.b32.xlu0 %v665, 32
        %v1131 = vpop.permute.xlu0 %1130
        %1132 = vrot.lane.b32.xlu0 %v666, 32
        %v1133 = vpop.permute.xlu0 %1132
        %1134 = vrot.lane.b32.xlu0 %v667, 32
        %v1135 = vpop.permute.xlu0 %1134
        %1136 = vrot.lane.b32.xlu0 %v668, 32
        %v1137 = vpop.permute.xlu0 %1136
        %1138 = vrot.lane.b32.xlu0 %v669, 32
        %v1139 = vpop.permute.xlu0 %1138
        %1140 = vrot.lane.b32.xlu0 %v670, 32
        %v1141 = vpop.permute.xlu0 %1140
        %1142 = vrot.lane.b32.xlu0 %v671, 32
        %v1143 = vpop.permute.xlu0 %1142
        %1144 = vrot.lane.b32.xlu0 %v672, 32
        %v1145 = vpop.permute.xlu0 %1144
        %1146 = vrot.lane.b32.xlu0 %v673, 32
        %v1147 = vpop.permute.xlu0 %1146
        %1148 = vrot.lane.b32.xlu0 %v674, 32
        %v1149 = vpop.permute.xlu0 %1148
        %1150 = vrot.lane.b32.xlu0 %v675, 32
        %v1151 = vpop.permute.xlu0 %1150
        %1152 = vrot.lane.b32.xlu0 %v676, 32
        %v1153 = vpop.permute.xlu0 %1152
        %1154 = vrot.lane.b32.xlu0 %v677, 32
        %v1155 = vpop.permute.xlu0 %1154
        %1156 = vrot.lane.b32.xlu0 %v678, 32
        %v1157 = vpop.permute.xlu0 %1156
        %1158 = vrot.lane.b32.xlu0 %v679, 32
        %v1159 = vpop.permute.xlu0 %1158
        %v1192 = vsel %vm417, %v488, %v713
        %v1193 = vsel %vm417, %v489, %v715
        %v1194 = vsel %vm417, %v490, %v717
        %v1195 = vsel %vm417, %v491, %v719
        %v1196 = vsel %vm417, %v492, %v721
        %v1197 = vsel %vm417, %v493, %v723
        %v1198 = vsel %vm417, %v494, %v725
        %v1199 = vsel %vm417, %v495, %v727
        %v1200 = vsel %vm417, %v496, %v729
        %v1201 = vsel %vm417, %v497, %v731
        %v1202 = vsel %vm417, %v498, %v733
        %v1203 = vsel %vm417, %v499, %v735
        %v1204 = vsel %vm417, %v500, %v737
        %v1205 = vsel %vm417, %v501, %v739
        %v1206 = vsel %vm417, %v502, %v741
        %v1207 = vsel %vm417, %v503, %v743
        %v1208 = vsel %vm417, %v504, %v745
        %v1209 = vsel %vm417, %v505, %v747
        %v1210 = vsel %vm417, %v506, %v749
        %v1211 = vsel %vm417, %v507, %v751
        %v1212 = vsel %vm417, %v508, %v753
        %v1213 = vsel %vm417, %v509, %v755
        %v1214 = vsel %vm417, %v510, %v757
        %v1215 = vsel %vm417, %v511, %v759
        %v1216 = vsel %vm417, %v512, %v761
        %v1217 = vsel %vm417, %v513, %v763
        %v1218 = vsel %vm417, %v514, %v765
        %v1219 = vsel %vm417, %v515, %v767
        %v1220 = vsel %vm417, %v516, %v769
        %v1221 = vsel %vm417, %v517, %v771
        %v1222 = vsel %vm417, %v518, %v773
        %v1223 = vsel %vm417, %v519, %v775
        %vm1224 = vcmask 523264
        %v1225 = vsel %vm1224, %v1192, %v841
        %v1226 = vsel %vm1224, %v1193, %v843
        %v1227 = vsel %vm1224, %v1194, %v845
        %v1228 = vsel %vm1224, %v1195, %v847
        %v1229 = vsel %vm1224, %v1196, %v849
        %v1230 = vsel %vm1224, %v1197, %v851
        %v1231 = vsel %vm1224, %v1198, %v853
        %v1232 = vsel %vm1224, %v1199, %v855
        %v1233 = vsel %vm1224, %v1200, %v857
        %v1234 = vsel %vm1224, %v1201, %v859
        %v1235 = vsel %vm1224, %v1202, %v861
        %v1236 = vsel %vm1224, %v1203, %v863
        %v1237 = vsel %vm1224, %v1204, %v865
        %v1238 = vsel %vm1224, %v1205, %v867
        %v1239 = vsel %vm1224, %v1206, %v869
        %v1240 = vsel %vm1224, %v1207, %v871
        %v1241 = vsel %vm1224, %v1208, %v873
        %v1242 = vsel %vm1224, %v1209, %v875
        %v1243 = vsel %vm1224, %v1210, %v877
        %v1244 = vsel %vm1224, %v1211, %v879
        %v1245 = vsel %vm1224, %v1212, %v881
        %v1246 = vsel %vm1224, %v1213, %v883
        %v1247 = vsel %vm1224, %v1214, %v885
        %v1248 = vsel %vm1224, %v1215, %v887
        %v1249 = vsel %vm1224, %v1216, %v889
        %v1250 = vsel %vm1224, %v1217, %v891
        %v1251 = vsel %vm1224, %v1218, %v893
        %v1252 = vsel %vm1224, %v1219, %v895
        %v1253 = vsel %vm1224, %v1220, %v897
        %v1254 = vsel %vm1224, %v1221, %v899
        %v1255 = vsel %vm1224, %v1222, %v901
        %v1256 = vsel %vm1224, %v1223, %v903
        %vm1257 = vcmask 785408
        %v1258 = vsel %vm1257, %v1225, %v969
        %v1259 = vsel %vm1257, %v1226, %v971
        %v1260 = vsel %vm1257, %v1227, %v973
        %v1261 = vsel %vm1257, %v1228, %v975
        %v1262 = vsel %vm1257, %v1229, %v977
        %v1263 = vsel %vm1257, %v1230, %v979
        %v1264 = vsel %vm1257, %v1231, %v981
        %v1265 = vsel %vm1257, %v1232, %v983
        %v1266 = vsel %vm1257, %v1233, %v985
        %v1267 = vsel %vm1257, %v1234, %v987
        %v1268 = vsel %vm1257, %v1235, %v989
        %v1269 = vsel %vm1257, %v1236, %v991
        %v1270 = vsel %vm1257, %v1237, %v993
        %v1271 = vsel %vm1257, %v1238, %v995
        %v1272 = vsel %vm1257, %v1239, %v997
        %v1273 = vsel %vm1257, %v1240, %v999
        %v1274 = vsel %vm1257, %v1241, %v1001
        %v1275 = vsel %vm1257, %v1242, %v1003
        %v1276 = vsel %vm1257, %v1243, %v1005
        %v1277 = vsel %vm1257, %v1244, %v1007
        %v1278 = vsel %vm1257, %v1245, %v1009
        %v1279 = vsel %vm1257, %v1246, %v1011
        %v1280 = vsel %vm1257, %v1247, %v1013
        %v1281 = vsel %vm1257, %v1248, %v1015
        %v1282 = vsel %vm1257, %v1249, %v1017
        %v1283 = vsel %vm1257, %v1250, %v1019
        %v1284 = vsel %vm1257, %v1251, %v1021
        %v1285 = vsel %vm1257, %v1252, %v1023
        %v1286 = vsel %vm1257, %v1253, %v1025
        %v1287 = vsel %vm1257, %v1254, %v1027
        %v1288 = vsel %vm1257, %v1255, %v1029
        %v1289 = vsel %vm1257, %v1256, %v1031
        %v1290 = vsel %vm417, %v616, %v1097
        %v1291 = vsel %vm417, %v617, %v1099
        %v1292 = vsel %vm417, %v618, %v1101
        %v1293 = vsel %vm417, %v619, %v1103
        %v1294 = vsel %vm417, %v620, %v1105
        %v1295 = vsel %vm417, %v621, %v1107
        %v1296 = vsel %vm417, %v622, %v1109
        %v1297 = vsel %vm417, %v623, %v1111
        %v1298 = vsel %vm417, %v624, %v1113
        %v1299 = vsel %vm417, %v625, %v1115
        %v1300 = vsel %vm417, %v626, %v1117
        %v1301 = vsel %vm417, %v627, %v1119
        %v1302 = vsel %vm417, %v628, %v1121
        %v1303 = vsel %vm417, %v629, %v1123
        %v1304 = vsel %vm417, %v630, %v1125
        %v1305 = vsel %vm417, %v631, %v1127
        %v1306 = vsel %vm417, %v632, %v1129
        %v1307 = vsel %vm417, %v633, %v1131
        %v1308 = vsel %vm417, %v634, %v1133
        %v1309 = vsel %vm417, %v635, %v1135
        %v1310 = vsel %vm417, %v636, %v1137
        %v1311 = vsel %vm417, %v637, %v1139
        %v1312 = vsel %vm417, %v638, %v1141
        %v1313 = vsel %vm417, %v639, %v1143
        %v1314 = vsel %vm417, %v640, %v1145
        %v1315 = vsel %vm417, %v641, %v1147
        %v1316 = vsel %vm417, %v642, %v1149
        %v1317 = vsel %vm417, %v643, %v1151
        %v1318 = vsel %vm417, %v644, %v1153
        %v1319 = vsel %vm417, %v645, %v1155
        %v1320 = vsel %vm417, %v646, %v1157
        %v1321 = vsel %vm417, %v647, %v1159
        %v1322 = vld [vmem:[%s1] sm:$0xff]
        %v1323 = vld [vmem:[%s1 + $0x8] sm:$0xff]
        %v1324 = vld [vmem:[%s1 + $0x10] sm:$0xff]
        %v1325 = vld [vmem:[%s1 + $0x18] sm:$0xff]
        %v1326 = vld [vmem:[%s1 + $0x20] sm:$0xff]
        %v1327 = vld [vmem:[%s1 + $0x28] sm:$0xff]
        %v1328 = vld [vmem:[%s1 + $0x30] sm:$0xff]
        %v1329 = vld [vmem:[%s1 + $0x38] sm:$0xff]
        %v1330 = vld [vmem:[%s1 + $0x40] sm:$0xff]
        %v1331 = vld [vmem:[%s1 + $0x48] sm:$0xff]
        %v1332 = vld [vmem:[%s1 + $0x50] sm:$0xff]
        %v1333 = vld [vmem:[%s1 + $0x58] sm:$0xff]
        %v1334 = vld [vmem:[%s1 + $0x60] sm:$0xff]
        %v1335 = vld [vmem:[%s1 + $0x68] sm:$0xff]
        %v1336 = vld [vmem:[%s1 + $0x70] sm:$0xff]
        %v1337 = vld [vmem:[%s1 + $0x78] sm:$0xff]
        %v1338 = vld [vmem:[%s1 + $0x80] sm:$0xff]
        %v1339 = vld [vmem:[%s1 + $0x88] sm:$0xff]
        %v1340 = vld [vmem:[%s1 + $0x90] sm:$0xff]
        %v1341 = vld [vmem:[%s1 + $0x98] sm:$0xff]
        %v1342 = vld [vmem:[%s1 + $0xa0] sm:$0xff]
        %v1343 = vld [vmem:[%s1 + $0xa8] sm:$0xff]
        %v1344 = vld [vmem:[%s1 + $0xb0] sm:$0xff]
        %v1345 = vld [vmem:[%s1 + $0xb8] sm:$0xff]
        %v1346 = vld [vmem:[%s3] sm:$0x1]
        %v1348 = vlaneseq
        %v1349 = vshrl.u32 %v1348, 7
        %v1350 = vsub.s32 0, %v1349
        %v1351 = vrot.slane %v1346, %v1350
        %v1354 = vsel %vm1224, %v1290, 0
        %v1357 = vsel %vm1224, %v1291, 0
        %v1360 = vsel %vm1224, %v1292, 0
        %v1363 = vsel %vm1224, %v1293, 0
        %v1366 = vsel %vm1224, %v1294, 0
        %v1369 = vsel %vm1224, %v1295, 0
        %v1372 = vsel %vm1224, %v1296, 0
        %v1375 = vsel %vm1224, %v1297, 0
        %v1378 = vsel %vm1224, %v1298, 0
        %v1381 = vsel %vm1224, %v1299, 0
        %v1384 = vsel %vm1224, %v1300, 0
        %v1387 = vsel %vm1224, %v1301, 0
        %v1390 = vsel %vm1224, %v1302, 0
        %v1393 = vsel %vm1224, %v1303, 0
        %v1396 = vsel %vm1224, %v1304, 0
        %v1399 = vsel %vm1224, %v1305, 0
        %v1402 = vsel %vm1224, %v1306, 0
        %v1405 = vsel %vm1224, %v1307, 0
        %v1408 = vsel %vm1224, %v1308, 0
        %v1411 = vsel %vm1224, %v1309, 0
        %v1414 = vsel %vm1224, %v1310, 0
        %v1417 = vsel %vm1224, %v1311, 0
        %v1420 = vsel %vm1224, %v1312, 0
        %v1423 = vsel %vm1224, %v1313, 0
        %v1426 = vsel %vm1224, %v1314, 0
        %v1429 = vsel %vm1224, %v1315, 0
        %v1432 = vsel %vm1224, %v1316, 0
        %v1435 = vsel %vm1224, %v1317, 0
        %v1438 = vsel %vm1224, %v1318, 0
        %v1441 = vsel %vm1224, %v1319, 0
        %v1444 = vsel %vm1224, %v1320, 0
        %v1447 = vsel %vm1224, %v1321, 0
        %1449 = vmatprep.subr.mxu0 0.0
        %1450 = vmatpush1.msra.mxu0 %v1322
        %1451 = vmatprep.subr.mxu0 0.0
        %1452 = vmatpush1.msra.mxu0 %v1323
        %1453 = vmatprep.subr.mxu0 0.0
        %1454 = vmatpush1.msra.mxu0 %v1324
        %1455 = vmatprep.subr.mxu0 0.0
        %1456 = vmatpush1.msra.mxu0 %v1325
        %1457 = vmatprep.subr.mxu0 0.0
        %1458 = vmatpush1.msra.mxu0 %v1326
        %1459 = vmatprep.subr.mxu0 0.0
        %1460 = vmatpush1.msra.mxu0 %v1327
        %1461 = vmatprep.subr.mxu0 0.0
        %1462 = vmatpush1.msra.mxu0 %v1328
        %1463 = vmatprep.subr.mxu0 0.0
        %1464 = vmatpush1.msra.mxu0 %v1329
        %1465 = vmatprep.subr.mxu0 0.0
        %1466 = vmatpush1.msra.mxu0 %v1330
        %1467 = vmatprep.subr.mxu0 0.0
        %1468 = vmatpush1.msra.mxu0 %v1331
        %1469 = vmatprep.subr.mxu0 0.0
        %1470 = vmatpush1.msra.mxu0 %v1332
        %1471 = vmatprep.subr.mxu0 0.0
        %1472 = vmatpush1.msra.mxu0 %v1333
        %1473 = vmatprep.subr.mxu0 0.0
        %1474 = vmatpush1.msra.mxu0 %v1334
        %1475 = vmatprep.subr.mxu0 0.0
        %1476 = vmatpush1.msra.mxu0 %v1335
        %1477 = vmatprep.subr.mxu0 0.0
        %1478 = vmatpush1.msra.mxu0 %v1336
        %1479 = vmatprep.subr.mxu0 0.0
        %1480 = vmatpush1.msra.mxu0 %v1337
        %1481 = vmatprep.subr.mxu0 0.0
        %1482 = vmatpush1.msra.mxu0 %v1338
        %1483 = vmatprep.subr.mxu0 0.0
        %1484 = vmatpush1.msra.mxu0 %v1339
        %1485 = vmatprep.subr.mxu0 0.0
        %1486 = vmatpush1.msra.mxu0 %v1340
        %1487 = vmatprep.subr.mxu0 0.0
        %1488 = vmatpush1.msra.mxu0 %v1341
        %1489 = vmatprep.subr.mxu0 0.0
        %1490 = vmatpush1.msra.mxu0 %v1342
        %1491 = vmatprep.subr.mxu0 0.0
        %1492 = vmatpush1.msra.mxu0 %v1343
        %1493 = vmatprep.subr.mxu0 0.0
        %1494 = vmatpush1.msra.mxu0 %v1344
        %1495 = vmatprep.subr.mxu0 0.0
        %1496 = vmatpush1.msra.mxu0 %v1345
        %1497 = vmatprep.subr.mxu0 0.0
        %1498 = vmatpush1.msra.mxu0 0.0
        %1499 = vmatprep.subr.mxu0 0.0
        %1500 = vmatpush1.msra.mxu0 0.0
        %1501 = vmatprep.subr.mxu0 0.0
        %1502 = vmatpush1.msra.mxu0 0.0
        %1503 = vmatprep.subr.mxu0 0.0
        %1504 = vmatpush1.msra.mxu0 0.0
        %1505 = vmatprep.subr.mxu0 0.0
        %1506 = vmatpush1.msra.mxu0 0.0
        %1507 = vmatprep.subr.mxu0 0.0
        %1508 = vmatpush1.msra.mxu0 0.0
        %1509 = vmatprep.subr.mxu0 0.0
        %1510 = vmatpush1.msra.mxu0 0.0
        %1511 = vmatprep.subr.mxu0 0.0
        %1512 = vmatpush1.msra.mxu0 0.0
        %1513 = vmatprep.mubr.f32.mxu0 %v1354
        %1514 = vmatmul.mubr.f32.gmra.mrb[0].mxu0 %v1258
        %v1515 = vpop.f32.mrb[0].mxu0
        %v1516 = vadd.f32 %v1351, %v1515
        %v1517 = vpop.f32.mrb[0].mxu0
        %1518 = vmatprep.mubr.f32.mxu0 %v1357
        %1519 = vmatmul.mubr.f32.gmra.mrb[0].mxu0 %v1259
        %v1520 = vpop.f32.mrb[0].mxu0
        %v1521 = vadd.f32 %v1351, %v1520
        %v1522 = vpop.f32.mrb[0].mxu0
        %1523 = vmatprep.mubr.f32.mxu0 %v1360
        %1524 = vmatmul.mubr.f32.gmra.mrb[0].mxu0 %v1260
        %v1525 = vpop.f32.mrb[0].mxu0
        %v1526 = vadd.f32 %v1351, %v1525
        %v1527 = vpop.f32.mrb[0].mxu0
        %1528 = vmatprep.mubr.f32.mxu0 %v1363
        %1529 = vmatmul.mubr.f32.gmra.mrb[0].mxu0 %v1261
        %v1530 = vpop.f32.mrb[0].mxu0
        %v1531 = vadd.f32 %v1351, %v1530
        %v1532 = vpop.f32.mrb[0].mxu0
        %1533 = vmatprep.mubr.f32.mxu0 %v1366
        %1534 = vmatmul.mubr.f32.gmra.mrb[0].mxu0 %v1262
        %v1535 = vpop.f32.mrb[0].mxu0
        %v1536 = vadd.f32 %v1351, %v1535
        %v1537 = vpop.f32.mrb[0].mxu0
        %1538 = vmatprep.mubr.f32.mxu0 %v1369
        %1539 = vmatmul.mubr.f32.gmra.mrb[0].mxu0 %v1263
        %v1540 = vpop.f32.mrb[0].mxu0
        %v1541 = vadd.f32 %v1351, %v1540
        %v1542 = vpop.f32.mrb[0].mxu0
        %1543 = vmatprep.mubr.f32.mxu0 %v1372
        %1544 = vmatmul.mubr.f32.gmra.mrb[0].mxu0 %v1264
        %v1545 = vpop.f32.mrb[0].mxu0
        %v1546 = vadd.f32 %v1351, %v1545
        %v1547 = vpop.f32.mrb[0].mxu0
        %1548 = vmatprep.mubr.f32.mxu0 %v1375
        %1549 = vmatmul.mubr.f32.gmra.mrb[0].mxu0 %v1265
        %v1550 = vpop.f32.mrb[0].mxu0
        %v1551 = vadd.f32 %v1351, %v1550
        %v1552 = vpop.f32.mrb[0].mxu0
        %1553 = vmatprep.mubr.f32.mxu0 %v1378
        %1554 = vmatmul.mubr.f32.gmra.mrb[0].mxu0 %v1266
        %v1555 = vpop.f32.mrb[0].mxu0
        %v1556 = vadd.f32 %v1351, %v1555
        %v1557 = vpop.f32.mrb[0].mxu0
        %1558 = vmatprep.mubr.f32.mxu0 %v1381
        %1559 = vmatmul.mubr.f32.gmra.mrb[0].mxu0 %v1267
        %v1560 = vpop.f32.mrb[0].mxu0
        %v1561 = vadd.f32 %v1351, %v1560
        %v1562 = vpop.f32.mrb[0].mxu0
        %1563 = vmatprep.mubr.f32.mxu0 %v1384
        %1564 = vmatmul.mubr.f32.gmra.mrb[0].mxu0 %v1268
        %v1565 = vpop.f32.mrb[0].mxu0
        %v1566 = vadd.f32 %v1351, %v1565
        %v1567 = vpop.f32.mrb[0].mxu0
        %1568 = vmatprep.mubr.f32.mxu0 %v1387
        %1569 = vmatmul.mubr.f32.gmra.mrb[0].mxu0 %v1269
        %v1570 = vpop.f32.mrb[0].mxu0
        %v1571 = vadd.f32 %v1351, %v1570
        %v1572 = vpop.f32.mrb[0].mxu0
        %1573 = vmatprep.mubr.f32.mxu0 %v1390
        %1574 = vmatmul.mubr.f32.gmra.mrb[0].mxu0 %v1270
        %v1575 = vpop.f32.mrb[0].mxu0
        %v1576 = vadd.f32 %v1351, %v1575
        %v1577 = vpop.f32.mrb[0].mxu0
        %1578 = vmatprep.mubr.f32.mxu0 %v1393
        %1579 = vmatmul.mubr.f32.gmra.mrb[0].mxu0 %v1271
        %v1580 = vpop.f32.mrb[0].mxu0
        %v1581 = vadd.f32 %v1351, %v1580
        %v1582 = vpop.f32.mrb[0].mxu0
        %1583 = vmatprep.mubr.f32.mxu0 %v1396
        %1584 = vmatmul.mubr.f32.gmra.mrb[0].mxu0 %v1272
        %v1585 = vpop.f32.mrb[0].mxu0
        %v1586 = vadd.f32 %v1351, %v1585
        %v1587 = vpop.f32.mrb[0].mxu0
        %1588 = vmatprep.mubr.f32.mxu0 %v1399
        %1589 = vmatmul.mubr.f32.gmra.mrb[0].mxu0 %v1273
        %v1590 = vpop.f32.mrb[0].mxu0
        %v1591 = vadd.f32 %v1351, %v1590
        %v1592 = vpop.f32.mrb[0].mxu0
        %1593 = vmatprep.mubr.f32.mxu0 %v1402
        %1594 = vmatmul.mubr.f32.gmra.mrb[0].mxu0 %v1274
        %v1595 = vpop.f32.mrb[0].mxu0
        %v1596 = vadd.f32 %v1351, %v1595
        %v1597 = vpop.f32.mrb[0].mxu0
        %1598 = vmatprep.mubr.f32.mxu0 %v1405
        %1599 = vmatmul.mubr.f32.gmra.mrb[0].mxu0 %v1275
        %v1600 = vpop.f32.mrb[0].mxu0
        %v1601 = vadd.f32 %v1351, %v1600
        %v1602 = vpop.f32.mrb[0].mxu0
        %1603 = vmatprep.mubr.f32.mxu0 %v1408
        %1604 = vmatmul.mubr.f32.gmra.mrb[0].mxu0 %v1276
        %v1605 = vpop.f32.mrb[0].mxu0
        %v1606 = vadd.f32 %v1351, %v1605
        %v1607 = vpop.f32.mrb[0].mxu0
        %1608 = vmatprep.mubr.f32.mxu0 %v1411
        %1609 = vmatmul.mubr.f32.gmra.mrb[0].mxu0 %v1277
        %v1610 = vpop.f32.mrb[0].mxu0
        %v1611 = vadd.f32 %v1351, %v1610
        %v1612 = vpop.f32.mrb[0].mxu0
        %1613 = vmatprep.mubr.f32.mxu0 %v1414
        %1614 = vmatmul.mubr.f32.gmra.mrb[0].mxu0 %v1278
        %v1615 = vpop.f32.mrb[0].mxu0
        %v1616 = vadd.f32 %v1351, %v1615
        %v1617 = vpop.f32.mrb[0].mxu0
        %1618 = vmatprep.mubr.f32.mxu0 %v1417
        %1619 = vmatmul.mubr.f32.gmra.mrb[0].mxu0 %v1279
        %v1620 = vpop.f32.mrb[0].mxu0
        %v1621 = vadd.f32 %v1351, %v1620
        %v1622 = vpop.f32.mrb[0].mxu0
        %1623 = vmatprep.mubr.f32.mxu0 %v1420
        %1624 = vmatmul.mubr.f32.gmra.mrb[0].mxu0 %v1280
        %v1625 = vpop.f32.mrb[0].mxu0
        %v1626 = vadd.f32 %v1351, %v1625
        %v1627 = vpop.f32.mrb[0].mxu0
        %1628 = vmatprep.mubr.f32.mxu0 %v1423
        %1629 = vmatmul.mubr.f32.gmra.mrb[0].mxu0 %v1281
        %v1630 = vpop.f32.mrb[0].mxu0
        %v1631 = vadd.f32 %v1351, %v1630
        %v1632 = vpop.f32.mrb[0].mxu0
        %1633 = vmatprep.mubr.f32.mxu0 %v1426
        %1634 = vmatmul.mubr.f32.gmra.mrb[0].mxu0 %v1282
        %v1635 = vpop.f32.mrb[0].mxu0
        %v1636 = vadd.f32 %v1351, %v1635
        %v1637 = vpop.f32.mrb[0].mxu0
        %1638 = vmatprep.mubr.f32.mxu0 %v1429
        %1639 = vmatmul.mubr.f32.gmra.mrb[0].mxu0 %v1283
        %v1640 = vpop.f32.mrb[0].mxu0
        %v1641 = vadd.f32 %v1351, %v1640
        %v1642 = vpop.f32.mrb[0].mxu0
        %1643 = vmatprep.mubr.f32.mxu0 %v1432
        %1644 = vmatmul.mubr.f32.gmra.mrb[0].mxu0 %v1284
        %v1645 = vpop.f32.mrb[0].mxu0
        %v1646 = vadd.f32 %v1351, %v1645
        %v1647 = vpop.f32.mrb[0].mxu0
        %1648 = vmatprep.mubr.f32.mxu0 %v1435
        %1649 = vmatmul.mubr.f32.gmra.mrb[0].mxu0 %v1285
        %v1650 = vpop.f32.mrb[0].mxu0
        %v1651 = vadd.f32 %v1351, %v1650
        %v1652 = vpop.f32.mrb[0].mxu0
        %1653 = vmatprep.mubr.f32.mxu0 %v1438
        %1654 = vmatmul.mubr.f32.gmra.mrb[0].mxu0 %v1286
        %v1655 = vpop.f32.mrb[0].mxu0
        %v1656 = vadd.f32 %v1351, %v1655
        %v1657 = vpop.f32.mrb[0].mxu0
        %1658 = vmatprep.mubr.f32.mxu0 %v1441
        %1659 = vmatmul.mubr.f32.gmra.mrb[0].mxu0 %v1287
        %v1660 = vpop.f32.mrb[0].mxu0
        %v1661 = vadd.f32 %v1351, %v1660
        %v1662 = vpop.f32.mrb[0].mxu0
        %1663 = vmatprep.mubr.f32.mxu0 %v1444
        %1664 = vmatmul.mubr.f32.gmra.mrb[0].mxu0 %v1288
        %v1665 = vpop.f32.mrb[0].mxu0
        %v1666 = vadd.f32 %v1351, %v1665
        %v1667 = vpop.f32.mrb[0].mxu0
        %1668 = vmatprep.mubr.f32.mxu0 %v1447
        %1669 = vmatmul.mubr.f32.gmra.mrb[0].mxu0 %v1289
        %v1670 = vpop.f32.mrb[0].mxu0
        %v1671 = vadd.f32 %v1351, %v1670
        %v1672 = vpop.f32.mrb[0].mxu0
        %1673 = vdwg.mxu0
        %v1674 = vld [vmem:[%s2] sm:$0xff]
        %v1675 = vld [vmem:[%s2 + $0x8] sm:$0xff]
        %v1676 = vld [vmem:[%s2 + $0x10] sm:$0xff]
        %v1677 = vld [vmem:[%s2 + $0x18] sm:$0xff]
        %v1678 = vld [vmem:[%s2 + $0x20] sm:$0xff]
        %v1679 = vld [vmem:[%s2 + $0x28] sm:$0xff]
        %v1680 = vld [vmem:[%s2 + $0x30] sm:$0xff]
        %v1681 = vld [vmem:[%s2 + $0x38] sm:$0xff]
        %v1682 = vld [vmem:[%s2 + $0x40] sm:$0xff]
        %v1683 = vld [vmem:[%s2 + $0x48] sm:$0xff]
        %v1684 = vld [vmem:[%s2 + $0x50] sm:$0xff]
        %v1685 = vld [vmem:[%s2 + $0x58] sm:$0xff]
        %v1686 = vld [vmem:[%s2 + $0x60] sm:$0xff]
        %v1687 = vld [vmem:[%s2 + $0x68] sm:$0xff]
        %v1688 = vld [vmem:[%s2 + $0x70] sm:$0xff]
        %v1689 = vld [vmem:[%s2 + $0x78] sm:$0xff]
        %v1690 = vld [vmem:[%s2 + $0x80] sm:$0xff]
        %v1691 = vld [vmem:[%s2 + $0x88] sm:$0xff]
        %v1692 = vld [vmem:[%s2 + $0x90] sm:$0xff]
        %v1693 = vld [vmem:[%s2 + $0x98] sm:$0xff]
        %v1694 = vld [vmem:[%s2 + $0xa0] sm:$0xff]
        %v1695 = vld [vmem:[%s2 + $0xa8] sm:$0xff]
        %v1696 = vld [vmem:[%s2 + $0xb0] sm:$0xff]
        %v1697 = vld [vmem:[%s2 + $0xb8] sm:$0xff]
        %v1698 = vld [vmem:[%s4] sm:$0x1]
        %v1700 = vlaneseq
        %v1701 = vshrl.u32 %v1700, 7
        %v1702 = vsub.s32 0, %v1701
        %v1703 = vrot.slane %v1698, %v1702
        %1705 = vmatprep.subr.mxu0 0.0
        %1706 = vmatpush1.msra.mxu0 %v1674
        %1707 = vmatprep.subr.mxu0 0.0
        %1708 = vmatpush1.msra.mxu0 %v1675
        %1709 = vmatprep.subr.mxu0 0.0
        %1710 = vmatpush1.msra.mxu0 %v1676
        %1711 = vmatprep.subr.mxu0 0.0
        %1712 = vmatpush1.msra.mxu0 %v1677
        %1713 = vmatprep.subr.mxu0 0.0
        %1714 = vmatpush1.msra.mxu0 %v1678
        %1715 = vmatprep.subr.mxu0 0.0
        %1716 = vmatpush1.msra.mxu0 %v1679
        %1717 = vmatprep.subr.mxu0 0.0
        %1718 = vmatpush1.msra.mxu0 %v1680
        %1719 = vmatprep.subr.mxu0 0.0
        %1720 = vmatpush1.msra.mxu0 %v1681
        %1721 = vmatprep.subr.mxu0 0.0
        %1722 = vmatpush1.msra.mxu0 %v1682
        %1723 = vmatprep.subr.mxu0 0.0
        %1724 = vmatpush1.msra.mxu0 %v1683
        %1725 = vmatprep.subr.mxu0 0.0
        %1726 = vmatpush1.msra.mxu0 %v1684
        %1727 = vmatprep.subr.mxu0 0.0
        %1728 = vmatpush1.msra.mxu0 %v1685
        %1729 = vmatprep.subr.mxu0 0.0
        %1730 = vmatpush1.msra.mxu0 %v1686
        %1731 = vmatprep.subr.mxu0 0.0
        %1732 = vmatpush1.msra.mxu0 %v1687
        %1733 = vmatprep.subr.mxu0 0.0
        %1734 = vmatpush1.msra.mxu0 %v1688
        %1735 = vmatprep.subr.mxu0 0.0
        %1736 = vmatpush1.msra.mxu0 %v1689
        %1737 = vmatprep.subr.mxu0 0.0
        %1738 = vmatpush1.msra.mxu0 %v1690
        %1739 = vmatprep.subr.mxu0 0.0
        %1740 = vmatpush1.msra.mxu0 %v1691
        %1741 = vmatprep.subr.mxu0 0.0
        %1742 = vmatpush1.msra.mxu0 %v1692
        %1743 = vmatprep.subr.mxu0 0.0
        %1744 = vmatpush1.msra.mxu0 %v1693
        %1745 = vmatprep.subr.mxu0 0.0
        %1746 = vmatpush1.msra.mxu0 %v1694
        %1747 = vmatprep.subr.mxu0 0.0
        %1748 = vmatpush1.msra.mxu0 %v1695
        %1749 = vmatprep.subr.mxu0 0.0
        %1750 = vmatpush1.msra.mxu0 %v1696
        %1751 = vmatprep.subr.mxu0 0.0
        %1752 = vmatpush1.msra.mxu0 %v1697
        %1753 = vmatprep.subr.mxu0 0.0
        %1754 = vmatpush1.msra.mxu0 0.0
        %1755 = vmatprep.subr.mxu0 0.0
        %1756 = vmatpush1.msra.mxu0 0.0
        %1757 = vmatprep.subr.mxu0 0.0
        %1758 = vmatpush1.msra.mxu0 0.0
        %1759 = vmatprep.subr.mxu0 0.0
        %1760 = vmatpush1.msra.mxu0 0.0
        %1761 = vmatprep.subr.mxu0 0.0
        %1762 = vmatpush1.msra.mxu0 0.0
        %1763 = vmatprep.subr.mxu0 0.0
        %1764 = vmatpush1.msra.mxu0 0.0
        %1765 = vmatprep.subr.mxu0 0.0
        %1766 = vmatpush1.msra.mxu0 0.0
        %1767 = vmatprep.subr.mxu0 0.0
        %1768 = vmatpush1.msra.mxu0 0.0
        %1769 = vmatprep.mubr.f32.mxu0 %v1354
        %1770 = vmatmul.mubr.f32.gmra.mrb[0].mxu0 %v1258
        %v1771 = vpop.f32.mrb[0].mxu0
        %v1772 = vadd.f32 %v1703, %v1771
        %v1773 = vpop.f32.mrb[0].mxu0
        %1774 = vmatprep.mubr.f32.mxu0 %v1357
        %1775 = vmatmul.mubr.f32.gmra.mrb[0].mxu0 %v1259
        %v1776 = vpop.f32.mrb[0].mxu0
        %v1777 = vadd.f32 %v1703, %v1776
        %v1778 = vpop.f32.mrb[0].mxu0
        %1779 = vmatprep.mubr.f32.mxu0 %v1360
        %1780 = vmatmul.mubr.f32.gmra.mrb[0].mxu0 %v1260
        %v1781 = vpop.f32.mrb[0].mxu0
        %v1782 = vadd.f32 %v1703, %v1781
        %v1783 = vpop.f32.mrb[0].mxu0
        %1784 = vmatprep.mubr.f32.mxu0 %v1363
        %1785 = vmatmul.mubr.f32.gmra.mrb[0].mxu0 %v1261
        %v1786 = vpop.f32.mrb[0].mxu0
        %v1787 = vadd.f32 %v1703, %v1786
        %v1788 = vpop.f32.mrb[0].mxu0
        %1789 = vmatprep.mubr.f32.mxu0 %v1366
        %1790 = vmatmul.mubr.f32.gmra.mrb[0].mxu0 %v1262
        %v1791 = vpop.f32.mrb[0].mxu0
        %v1792 = vadd.f32 %v1703, %v1791
        %v1793 = vpop.f32.mrb[0].mxu0
        %1794 = vmatprep.mubr.f32.mxu0 %v1369
        %1795 = vmatmul.mubr.f32.gmra.mrb[0].mxu0 %v1263
        %v1796 = vpop.f32.mrb[0].mxu0
        %v1797 = vadd.f32 %v1703, %v1796
        %v1798 = vpop.f32.mrb[0].mxu0
        %1799 = vmatprep.mubr.f32.mxu0 %v1372
        %1800 = vmatmul.mubr.f32.gmra.mrb[0].mxu0 %v1264
        %v1801 = vpop.f32.mrb[0].mxu0
        %v1802 = vadd.f32 %v1703, %v1801
        %v1803 = vpop.f32.mrb[0].mxu0
        %1804 = vmatprep.mubr.f32.mxu0 %v1375
        %1805 = vmatmul.mubr.f32.gmra.mrb[0].mxu0 %v1265
        %v1806 = vpop.f32.mrb[0].mxu0
        %v1807 = vadd.f32 %v1703, %v1806
        %v1808 = vpop.f32.mrb[0].mxu0
        %1809 = vmatprep.mubr.f32.mxu0 %v1378
        %1810 = vmatmul.mubr.f32.gmra.mrb[0].mxu0 %v1266
        %v1811 = vpop.f32.mrb[0].mxu0
        %v1812 = vadd.f32 %v1703, %v1811
        %v1813 = vpop.f32.mrb[0].mxu0
        %1814 = vmatprep.mubr.f32.mxu0 %v1381
        %1815 = vmatmul.mubr.f32.gmra.mrb[0].mxu0 %v1267
        %v1816 = vpop.f32.mrb[0].mxu0
        %v1817 = vadd.f32 %v1703, %v1816
        %v1818 = vpop.f32.mrb[0].mxu0
        %1819 = vmatprep.mubr.f32.mxu0 %v1384
        %1820 = vmatmul.mubr.f32.gmra.mrb[0].mxu0 %v1268
        %v1821 = vpop.f32.mrb[0].mxu0
        %v1822 = vadd.f32 %v1703, %v1821
        %v1823 = vpop.f32.mrb[0].mxu0
        %1824 = vmatprep.mubr.f32.mxu0 %v1387
        %1825 = vmatmul.mubr.f32.gmra.mrb[0].mxu0 %v1269
        %v1826 = vpop.f32.mrb[0].mxu0
        %v1827 = vadd.f32 %v1703, %v1826
        %v1828 = vpop.f32.mrb[0].mxu0
        %1829 = vmatprep.mubr.f32.mxu0 %v1390
        %1830 = vmatmul.mubr.f32.gmra.mrb[0].mxu0 %v1270
        %v1831 = vpop.f32.mrb[0].mxu0
        %v1832 = vadd.f32 %v1703, %v1831
        %v1833 = vpop.f32.mrb[0].mxu0
        %1834 = vmatprep.mubr.f32.mxu0 %v1393
        %1835 = vmatmul.mubr.f32.gmra.mrb[0].mxu0 %v1271
        %v1836 = vpop.f32.mrb[0].mxu0
        %v1837 = vadd.f32 %v1703, %v1836
        %v1838 = vpop.f32.mrb[0].mxu0
        %1839 = vmatprep.mubr.f32.mxu0 %v1396
        %1840 = vmatmul.mubr.f32.gmra.mrb[0].mxu0 %v1272
        %v1841 = vpop.f32.mrb[0].mxu0
        %v1842 = vadd.f32 %v1703, %v1841
        %v1843 = vpop.f32.mrb[0].mxu0
        %1844 = vmatprep.mubr.f32.mxu0 %v1399
        %1845 = vmatmul.mubr.f32.gmra.mrb[0].mxu0 %v1273
        %v1846 = vpop.f32.mrb[0].mxu0
        %v1847 = vadd.f32 %v1703, %v1846
        %v1848 = vpop.f32.mrb[0].mxu0
        %1849 = vmatprep.mubr.f32.mxu0 %v1402
        %1850 = vmatmul.mubr.f32.gmra.mrb[0].mxu0 %v1274
        %v1851 = vpop.f32.mrb[0].mxu0
        %v1852 = vadd.f32 %v1703, %v1851
        %v1853 = vpop.f32.mrb[0].mxu0
        %1854 = vmatprep.mubr.f32.mxu0 %v1405
        %1855 = vmatmul.mubr.f32.gmra.mrb[0].mxu0 %v1275
        %v1856 = vpop.f32.mrb[0].mxu0
        %v1857 = vadd.f32 %v1703, %v1856
        %v1858 = vpop.f32.mrb[0].mxu0
        %1859 = vmatprep.mubr.f32.mxu0 %v1408
        %1860 = vmatmul.mubr.f32.gmra.mrb[0].mxu0 %v1276
        %v1861 = vpop.f32.mrb[0].mxu0
        %v1862 = vadd.f32 %v1703, %v1861
        %v1863 = vpop.f32.mrb[0].mxu0
        %1864 = vmatprep.mubr.f32.mxu0 %v1411
        %1865 = vmatmul.mubr.f32.gmra.mrb[0].mxu0 %v1277
        %v1866 = vpop.f32.mrb[0].mxu0
        %v1867 = vadd.f32 %v1703, %v1866
        %v1868 = vpop.f32.mrb[0].mxu0
        %1869 = vmatprep.mubr.f32.mxu0 %v1414
        %1870 = vmatmul.mubr.f32.gmra.mrb[0].mxu0 %v1278
        %v1871 = vpop.f32.mrb[0].mxu0
        %v1872 = vadd.f32 %v1703, %v1871
        %v1873 = vpop.f32.mrb[0].mxu0
        %1874 = vmatprep.mubr.f32.mxu0 %v1417
        %1875 = vmatmul.mubr.f32.gmra.mrb[0].mxu0 %v1279
        %v1876 = vpop.f32.mrb[0].mxu0
        %v1877 = vadd.f32 %v1703, %v1876
        %v1878 = vpop.f32.mrb[0].mxu0
        %1879 = vmatprep.mubr.f32.mxu0 %v1420
        %1880 = vmatmul.mubr.f32.gmra.mrb[0].mxu0 %v1280
        %v1881 = vpop.f32.mrb[0].mxu0
        %v1882 = vadd.f32 %v1703, %v1881
        %v1883 = vpop.f32.mrb[0].mxu0
        %1884 = vmatprep.mubr.f32.mxu0 %v1423
        %1885 = vmatmul.mubr.f32.gmra.mrb[0].mxu0 %v1281
        %v1886 = vpop.f32.mrb[0].mxu0
        %v1887 = vadd.f32 %v1703, %v1886
        %v1888 = vpop.f32.mrb[0].mxu0
        %1889 = vmatprep.mubr.f32.mxu0 %v1426
        %1890 = vmatmul.mubr.f32.gmra.mrb[0].mxu0 %v1282
        %v1891 = vpop.f32.mrb[0].mxu0
        %v1892 = vadd.f32 %v1703, %v1891
        %v1893 = vpop.f32.mrb[0].mxu0
        %1894 = vmatprep.mubr.f32.mxu0 %v1429
        %1895 = vmatmul.mubr.f32.gmra.mrb[0].mxu0 %v1283
        %v1896 = vpop.f32.mrb[0].mxu0
        %v1897 = vadd.f32 %v1703, %v1896
        %v1898 = vpop.f32.mrb[0].mxu0
        %1899 = vmatprep.mubr.f32.mxu0 %v1432
        %1900 = vmatmul.mubr.f32.gmra.mrb[0].mxu0 %v1284
        %v1901 = vpop.f32.mrb[0].mxu0
        %v1902 = vadd.f32 %v1703, %v1901
        %v1903 = vpop.f32.mrb[0].mxu0
        %1904 = vmatprep.mubr.f32.mxu0 %v1435
        %1905 = vmatmul.mubr.f32.gmra.mrb[0].mxu0 %v1285
        %v1906 = vpop.f32.mrb[0].mxu0
        %v1907 = vadd.f32 %v1703, %v1906
        %v1908 = vpop.f32.mrb[0].mxu0
        %1909 = vmatprep.mubr.f32.mxu0 %v1438
        %1910 = vmatmul.mubr.f32.gmra.mrb[0].mxu0 %v1286
        %v1911 = vpop.f32.mrb[0].mxu0
        %v1912 = vadd.f32 %v1703, %v1911
        %v1913 = vpop.f32.mrb[0].mxu0
        %1914 = vmatprep.mubr.f32.mxu0 %v1441
        %1915 = vmatmul.mubr.f32.gmra.mrb[0].mxu0 %v1287
        %v1916 = vpop.f32.mrb[0].mxu0
        %v1917 = vadd.f32 %v1703, %v1916
        %v1918 = vpop.f32.mrb[0].mxu0
        %1919 = vmatprep.mubr.f32.mxu0 %v1444
        %1920 = vmatmul.mubr.f32.gmra.mrb[0].mxu0 %v1288
        %v1921 = vpop.f32.mrb[0].mxu0
        %v1922 = vadd.f32 %v1703, %v1921
        %v1923 = vpop.f32.mrb[0].mxu0
        %1924 = vmatprep.mubr.f32.mxu0 %v1447
        %1925 = vmatmul.mubr.f32.gmra.mrb[0].mxu0 %v1289
        %v1926 = vpop.f32.mrb[0].mxu0
        %v1927 = vadd.f32 %v1703, %v1926
        %v1928 = vpop.f32.mrb[0].mxu0
        %1929 = vdwg.mxu0
        %v1930 = vxor.u32 %v1516, 2147483648
        %v1931 = vxor.u32 %v1521, 2147483648
        %v1932 = vxor.u32 %v1526, 2147483648
        %v1933 = vxor.u32 %v1531, 2147483648
        %v1934 = vxor.u32 %v1536, 2147483648
        %v1935 = vxor.u32 %v1541, 2147483648
        %v1936 = vxor.u32 %v1546, 2147483648
        %v1937 = vxor.u32 %v1551, 2147483648
        %v1938 = vxor.u32 %v1556, 2147483648
        %v1939 = vxor.u32 %v1561, 2147483648
        %v1940 = vxor.u32 %v1566, 2147483648
        %v1941 = vxor.u32 %v1571, 2147483648
        %v1942 = vxor.u32 %v1576, 2147483648
        %v1943 = vxor.u32 %v1581, 2147483648
        %v1944 = vxor.u32 %v1586, 2147483648
        %v1945 = vxor.u32 %v1591, 2147483648
        %v1946 = vxor.u32 %v1596, 2147483648
        %v1947 = vxor.u32 %v1601, 2147483648
        %v1948 = vxor.u32 %v1606, 2147483648
        %v1949 = vxor.u32 %v1611, 2147483648
        %v1950 = vxor.u32 %v1616, 2147483648
        %v1951 = vxor.u32 %v1621, 2147483648
        %v1952 = vxor.u32 %v1626, 2147483648
        %v1953 = vxor.u32 %v1631, 2147483648
        %v1954 = vxor.u32 %v1636, 2147483648
        %v1955 = vxor.u32 %v1641, 2147483648
        %v1956 = vxor.u32 %v1646, 2147483648
        %v1957 = vxor.u32 %v1651, 2147483648
        %v1958 = vxor.u32 %v1656, 2147483648
        %v1959 = vxor.u32 %v1661, 2147483648
        %v1960 = vxor.u32 %v1666, 2147483648
        %v1961 = vxor.u32 %v1671, 2147483648
        %v1962 = vmul.f32 %v1930, 1.442695
        %v1963 = vpow.pop %v1962
        %v1964 = vmul.f32 %v1931, 1.442695
        %v1965 = vpow.pop %v1964
        %v1966 = vmul.f32 %v1932, 1.442695
        %v1967 = vpow.pop %v1966
        %v1968 = vmul.f32 %v1933, 1.442695
        %v1969 = vpow.pop %v1968
        %v1970 = vmul.f32 %v1934, 1.442695
        %v1971 = vpow.pop %v1970
        %v1972 = vmul.f32 %v1935, 1.442695
        %v1973 = vpow.pop %v1972
        %v1974 = vmul.f32 %v1936, 1.442695
        %v1975 = vpow.pop %v1974
        %v1976 = vmul.f32 %v1937, 1.442695
        %v1977 = vpow.pop %v1976
        %v1978 = vmul.f32 %v1938, 1.442695
        %v1979 = vpow.pop %v1978
        %v1980 = vmul.f32 %v1939, 1.442695
        %v1981 = vpow.pop %v1980
        %v1982 = vmul.f32 %v1940, 1.442695
        %v1983 = vpow.pop %v1982
        %v1984 = vmul.f32 %v1941, 1.442695
        %v1985 = vpow.pop %v1984
        %v1986 = vmul.f32 %v1942, 1.442695
        %v1987 = vpow.pop %v1986
        %v1988 = vmul.f32 %v1943, 1.442695
        %v1989 = vpow.pop %v1988
        %v1990 = vmul.f32 %v1944, 1.442695
        %v1991 = vpow.pop %v1990
        %v1992 = vmul.f32 %v1945, 1.442695
        %v1993 = vpow.pop %v1992
        %v1994 = vmul.f32 %v1946, 1.442695
        %v1995 = vpow.pop %v1994
        %v1996 = vmul.f32 %v1947, 1.442695
        %v1997 = vpow.pop %v1996
        %v1998 = vmul.f32 %v1948, 1.442695
        %v1999 = vpow.pop %v1998
        %v2000 = vmul.f32 %v1949, 1.442695
        %v2001 = vpow.pop %v2000
        %v2002 = vmul.f32 %v1950, 1.442695
        %v2003 = vpow.pop %v2002
        %v2004 = vmul.f32 %v1951, 1.442695
        %v2005 = vpow.pop %v2004
        %v2006 = vmul.f32 %v1952, 1.442695
        %v2007 = vpow.pop %v2006
        %v2008 = vmul.f32 %v1953, 1.442695
        %v2009 = vpow.pop %v2008
        %v2010 = vmul.f32 %v1954, 1.442695
        %v2011 = vpow.pop %v2010
        %v2012 = vmul.f32 %v1955, 1.442695
        %v2013 = vpow.pop %v2012
        %v2014 = vmul.f32 %v1956, 1.442695
        %v2015 = vpow.pop %v2014
        %v2016 = vmul.f32 %v1957, 1.442695
        %v2017 = vpow.pop %v2016
        %v2018 = vmul.f32 %v1958, 1.442695
        %v2019 = vpow.pop %v2018
        %v2020 = vmul.f32 %v1959, 1.442695
        %v2021 = vpow.pop %v2020
        %v2022 = vmul.f32 %v1960, 1.442695
        %v2023 = vpow.pop %v2022
        %v2024 = vmul.f32 %v1961, 1.442695
        %v2025 = vpow.pop %v2024
        %v2026 = vadd.f32 %v1963, 1.0
        %v2027 = vadd.f32 %v1965, 1.0
        %v2028 = vadd.f32 %v1967, 1.0
        %v2029 = vadd.f32 %v1969, 1.0
        %v2030 = vadd.f32 %v1971, 1.0
        %v2031 = vadd.f32 %v1973, 1.0
        %v2032 = vadd.f32 %v1975, 1.0
        %v2033 = vadd.f32 %v1977, 1.0
        %v2034 = vadd.f32 %v1979, 1.0
        %v2035 = vadd.f32 %v1981, 1.0
        %v2036 = vadd.f32 %v1983, 1.0
        %v2037 = vadd.f32 %v1985, 1.0
        %v2038 = vadd.f32 %v1987, 1.0
        %v2039 = vadd.f32 %v1989, 1.0
        %v2040 = vadd.f32 %v1991, 1.0
        %v2041 = vadd.f32 %v1993, 1.0
        %v2042 = vadd.f32 %v1995, 1.0
        %v2043 = vadd.f32 %v1997, 1.0
        %v2044 = vadd.f32 %v1999, 1.0
        %v2045 = vadd.f32 %v2001, 1.0
        %v2046 = vadd.f32 %v2003, 1.0
        %v2047 = vadd.f32 %v2005, 1.0
        %v2048 = vadd.f32 %v2007, 1.0
        %v2049 = vadd.f32 %v2009, 1.0
        %v2050 = vadd.f32 %v2011, 1.0
        %v2051 = vadd.f32 %v2013, 1.0
        %v2052 = vadd.f32 %v2015, 1.0
        %v2053 = vadd.f32 %v2017, 1.0
        %v2054 = vadd.f32 %v2019, 1.0
        %v2055 = vadd.f32 %v2021, 1.0
        %v2056 = vadd.f32 %v2023, 1.0
        %v2057 = vadd.f32 %v2025, 1.0
        %v2058 = vrcp.pop %v2026
        %v2059 = vmul.f32 1.0, %v2058
        %v2060 = vrcp.pop %v2027
        %v2061 = vmul.f32 1.0, %v2060
        %v2062 = vrcp.pop %v2028
        %v2063 = vmul.f32 1.0, %v2062
        %v2064 = vrcp.pop %v2029
        %v2065 = vmul.f32 1.0, %v2064
        %v2066 = vrcp.pop %v2030
        %v2067 = vmul.f32 1.0, %v2066
        %v2068 = vrcp.pop %v2031
        %v2069 = vmul.f32 1.0, %v2068
        %v2070 = vrcp.pop %v2032
        %v2071 = vmul.f32 1.0, %v2070
        %v2072 = vrcp.pop %v2033
        %v2073 = vmul.f32 1.0, %v2072
        %v2074 = vrcp.pop %v2034
        %v2075 = vmul.f32 1.0, %v2074
        %v2076 = vrcp.pop %v2035
        %v2077 = vmul.f32 1.0, %v2076
        %v2078 = vrcp.pop %v2036
        %v2079 = vmul.f32 1.0, %v2078
        %v2080 = vrcp.pop %v2037
        %v2081 = vmul.f32 1.0, %v2080
        %v2082 = vrcp.pop %v2038
        %v2083 = vmul.f32 1.0, %v2082
        %v2084 = vrcp.pop %v2039
        %v2085 = vmul.f32 1.0, %v2084
        %v2086 = vrcp.pop %v2040
        %v2087 = vmul.f32 1.0, %v2086
        %v2088 = vrcp.pop %v2041
        %v2089 = vmul.f32 1.0, %v2088
        %v2090 = vrcp.pop %v2042
        %v2091 = vmul.f32 1.0, %v2090
        %v2092 = vrcp.pop %v2043
        %v2093 = vmul.f32 1.0, %v2092
        %v2094 = vrcp.pop %v2044
        %v2095 = vmul.f32 1.0, %v2094
        %v2096 = vrcp.pop %v2045
        %v2097 = vmul.f32 1.0, %v2096
        %v2098 = vrcp.pop %v2046
        %v2099 = vmul.f32 1.0, %v2098
        %v2100 = vrcp.pop %v2047
        %v2101 = vmul.f32 1.0, %v2100
        %v2102 = vrcp.pop %v2048
        %v2103 = vmul.f32 1.0, %v2102
        %v2104 = vrcp.pop %v2049
        %v2105 = vmul.f32 1.0, %v2104
        %v2106 = vrcp.pop %v2050
        %v2107 = vmul.f32 1.0, %v2106
        %v2108 = vrcp.pop %v2051
        %v2109 = vmul.f32 1.0, %v2108
        %v2110 = vrcp.pop %v2052
        %v2111 = vmul.f32 1.0, %v2110
        %v2112 = vrcp.pop %v2053
        %v2113 = vmul.f32 1.0, %v2112
        %v2114 = vrcp.pop %v2054
        %v2115 = vmul.f32 1.0, %v2114
        %v2116 = vrcp.pop %v2055
        %v2117 = vmul.f32 1.0, %v2116
        %v2118 = vrcp.pop %v2056
        %v2119 = vmul.f32 1.0, %v2118
        %v2120 = vrcp.pop %v2057
        %v2121 = vmul.f32 1.0, %v2120
        %v2122 = vmul.f32 %v1772, %v2059
        %v2123 = vmul.f32 %v1777, %v2061
        %v2124 = vmul.f32 %v1782, %v2063
        %v2125 = vmul.f32 %v1787, %v2065
        %v2126 = vmul.f32 %v1792, %v2067
        %v2127 = vmul.f32 %v1797, %v2069
        %v2128 = vmul.f32 %v1802, %v2071
        %v2129 = vmul.f32 %v1807, %v2073
        %v2130 = vmul.f32 %v1812, %v2075
        %v2131 = vmul.f32 %v1817, %v2077
        %v2132 = vmul.f32 %v1822, %v2079
        %v2133 = vmul.f32 %v1827, %v2081
        %v2134 = vmul.f32 %v1832, %v2083
        %v2135 = vmul.f32 %v1837, %v2085
        %v2136 = vmul.f32 %v1842, %v2087
        %v2137 = vmul.f32 %v1847, %v2089
        %v2138 = vmul.f32 %v1852, %v2091
        %v2139 = vmul.f32 %v1857, %v2093
        %v2140 = vmul.f32 %v1862, %v2095
        %v2141 = vmul.f32 %v1867, %v2097
        %v2142 = vmul.f32 %v1872, %v2099
        %v2143 = vmul.f32 %v1877, %v2101
        %v2144 = vmul.f32 %v1882, %v2103
        %v2145 = vmul.f32 %v1887, %v2105
        %v2146 = vmul.f32 %v1892, %v2107
        %v2147 = vmul.f32 %v1897, %v2109
        %v2148 = vmul.f32 %v1902, %v2111
        %v2149 = vmul.f32 %v1907, %v2113
        %v2150 = vmul.f32 %v1912, %v2115
        %v2151 = vmul.f32 %v1917, %v2117
        %v2152 = vmul.f32 %v1922, %v2119
        %v2153 = vmul.f32 %v1927, %v2121
        %v2154 = vmax.f32 %v2122, 0.0
        %v2155 = vmax.f32 %v2123, 0.0
        %v2156 = vmax.f32 %v2124, 0.0
        %v2157 = vmax.f32 %v2125, 0.0
        %v2158 = vmax.f32 %v2126, 0.0
        %v2159 = vmax.f32 %v2127, 0.0
        %v2160 = vmax.f32 %v2128, 0.0
        %v2161 = vmax.f32 %v2129, 0.0
        %v2162 = vmax.f32 %v2130, 0.0
        %v2163 = vmax.f32 %v2131, 0.0
        %v2164 = vmax.f32 %v2132, 0.0
        %v2165 = vmax.f32 %v2133, 0.0
        %v2166 = vmax.f32 %v2134, 0.0
        %v2167 = vmax.f32 %v2135, 0.0
        %v2168 = vmax.f32 %v2136, 0.0
        %v2169 = vmax.f32 %v2137, 0.0
        %v2170 = vmax.f32 %v2138, 0.0
        %v2171 = vmax.f32 %v2139, 0.0
        %v2172 = vmax.f32 %v2140, 0.0
        %v2173 = vmax.f32 %v2141, 0.0
        %v2174 = vmax.f32 %v2142, 0.0
        %v2175 = vmax.f32 %v2143, 0.0
        %v2176 = vmax.f32 %v2144, 0.0
        %v2177 = vmax.f32 %v2145, 0.0
        %v2178 = vmax.f32 %v2146, 0.0
        %v2179 = vmax.f32 %v2147, 0.0
        %v2180 = vmax.f32 %v2148, 0.0
        %v2181 = vmax.f32 %v2149, 0.0
        %v2182 = vmax.f32 %v2150, 0.0
        %v2183 = vmax.f32 %v2151, 0.0
        %v2184 = vmax.f32 %v2152, 0.0
        %v2185 = vmax.f32 %v2153, 0.0
        %2186 = vst.msk [vmem:[#allocation3] sm:$0xff] %vm417, 0.0
        %2187 = vst.msk [vmem:[#allocation3 + $0x8] sm:$0xff] %vm417, 0.0
        %2188 = vst.msk [vmem:[#allocation3 + $0x10] sm:$0x3] %vm420, 0.0
        %s2189 = scalar_lea.vmem [#allocation3], 24
        %2190 = vst.msk [vmem:[%s2189] sm:$0x1] %vm423, 0.0
        %2191 = vst.msk [vmem:[%s2189 + $0x18] sm:$0x1] %vm423, 0.0
        %2192 = vst.msk [vmem:[%s2189 + $0x30] sm:$0x1] %vm423, 0.0
        %2193 = vst.msk [vmem:[%s2189 + $0x48] sm:$0x1] %vm423, 0.0
        %2194 = vst.msk [vmem:[%s2189 + $0x60] sm:$0x1] %vm423, 0.0
        %2195 = vst.msk [vmem:[%s2189 + $0x78] sm:$0x1] %vm423, 0.0
        %2196 = vst.msk [vmem:[%s2189 + $0x90] sm:$0x1] %vm423, 0.0
        %2197 = vst.msk [vmem:[%s2189 + $0xa8] sm:$0x1] %vm423, 0.0
        %2198 = vst.msk [vmem:[%s2189 + $0xc0] sm:$0x1] %vm423, 0.0
        %2199 = vst.msk [vmem:[%s2189 + $0xd8] sm:$0x1] %vm423, 0.0
        %2200 = vst.msk [vmem:[%s2189 + $0xf0] sm:$0x1] %vm423, 0.0
        %2201 = vst.msk [vmem:[%s2189 + $0x108] sm:$0x1] %vm423, 0.0
        %2202 = vst.msk [vmem:[%s2189 + $0x120] sm:$0x1] %vm423, 0.0
        %2203 = vst.msk [vmem:[%s2189 + $0x138] sm:$0x1] %vm423, 0.0
        %2204 = vst.msk [vmem:[%s2189 + $0x150] sm:$0x1] %vm423, 0.0
        %2205 = vst.msk [vmem:[%s2189 + $0x168] sm:$0x1] %vm423, 0.0
        %2206 = vst.msk [vmem:[%s2189 + $0x11] sm:$0x1] %vm423, 0.0
        %2207 = vst.msk [vmem:[%s2189 + $0x29] sm:$0x1] %vm423, 0.0
        %2208 = vst.msk [vmem:[%s2189 + $0x41] sm:$0x1] %vm423, 0.0
        %2209 = vst.msk [vmem:[%s2189 + $0x59] sm:$0x1] %vm423, 0.0
        %2210 = vst.msk [vmem:[%s2189 + $0x71] sm:$0x1] %vm423, 0.0
        %2211 = vst.msk [vmem:[%s2189 + $0x89] sm:$0x1] %vm423, 0.0
        %2212 = vst.msk [vmem:[%s2189 + $0xa1] sm:$0x1] %vm423, 0.0
        %2213 = vst.msk [vmem:[%s2189 + $0xb9] sm:$0x1] %vm423, 0.0
        %2214 = vst.msk [vmem:[%s2189 + $0xd1] sm:$0x1] %vm423, 0.0
        %2215 = vst.msk [vmem:[%s2189 + $0xe9] sm:$0x1] %vm423, 0.0
        %2216 = vst.msk [vmem:[%s2189 + $0x101] sm:$0x1] %vm423, 0.0
        %2217 = vst.msk [vmem:[%s2189 + $0x119] sm:$0x1] %vm423, 0.0
        %2218 = vst.msk [vmem:[%s2189 + $0x131] sm:$0x1] %vm423, 0.0
        %2219 = vst.msk [vmem:[%s2189 + $0x149] sm:$0x1] %vm423, 0.0
        %2220 = vst.msk [vmem:[%s2189 + $0x161] sm:$0x1] %vm423, 0.0
        %2221 = vst.msk [vmem:[%s2189 + $0x179] sm:$0x1] %vm423, 0.0
        %2222 = vst.msk [vmem:[%s2189 + $0x1] sm:$0xff] %vm417, %v2154
        %2223 = vst.msk [vmem:[%s2189 + $0x9] sm:$0xff] %vm417, %v2155
        %2224 = vst.msk [vmem:[%s2189 + $0x19] sm:$0xff] %vm417, %v2156
        %2225 = vst.msk [vmem:[%s2189 + $0x21] sm:$0xff] %vm417, %v2157
        %2226 = vst.msk [vmem:[%s2189 + $0x31] sm:$0xff] %vm417, %v2158
        %2227 = vst.msk [vmem:[%s2189 + $0x39] sm:$0xff] %vm417, %v2159
        %2228 = vst.msk [vmem:[%s2189 + $0x49] sm:$0xff] %vm417, %v2160
        %2229 = vst.msk [vmem:[%s2189 + $0x51] sm:$0xff] %vm417, %v2161
        %2230 = vst.msk [vmem:[%s2189 + $0x61] sm:$0xff] %vm417, %v2162
        %2231 = vst.msk [vmem:[%s2189 + $0x69] sm:$0xff] %vm417, %v2163
        %2232 = vst.msk [vmem:[%s2189 + $0x79] sm:$0xff] %vm417, %v2164
        %2233 = vst.msk [vmem:[%s2189 + $0x81] sm:$0xff] %vm417, %v2165
        %2234 = vst.msk [vmem:[%s2189 + $0x91] sm:$0xff] %vm417, %v2166
        %2235 = vst.msk [vmem:[%s2189 + $0x99] sm:$0xff] %vm417, %v2167
        %2236 = vst.msk [vmem:[%s2189 + $0xa9] sm:$0xff] %vm417, %v2168
        %2237 = vst.msk [vmem:[%s2189 + $0xb1] sm:$0xff] %vm417, %v2169
        %2238 = vst.msk [vmem:[%s2189 + $0xc1] sm:$0xff] %vm417, %v2170
        %2239 = vst.msk [vmem:[%s2189 + $0xc9] sm:$0xff] %vm417, %v2171
        %2240 = vst.msk [vmem:[%s2189 + $0xd9] sm:$0xff] %vm417, %v2172
        %2241 = vst.msk [vmem:[%s2189 + $0xe1] sm:$0xff] %vm417, %v2173
        %2242 = vst.msk [vmem:[%s2189 + $0xf1] sm:$0xff] %vm417, %v2174
        %2243 = vst.msk [vmem:[%s2189 + $0xf9] sm:$0xff] %vm417, %v2175
        %2244 = vst.msk [vmem:[%s2189 + $0x109] sm:$0xff] %vm417, %v2176
        %2245 = vst.msk [vmem:[%s2189 + $0x111] sm:$0xff] %vm417, %v2177
        %2246 = vst.msk [vmem:[%s2189 + $0x121] sm:$0xff] %vm417, %v2178
        %2247 = vst.msk [vmem:[%s2189 + $0x129] sm:$0xff] %vm417, %v2179
        %2248 = vst.msk [vmem:[%s2189 + $0x139] sm:$0xff] %vm417, %v2180
        %2249 = vst.msk [vmem:[%s2189 + $0x141] sm:$0xff] %vm417, %v2181
        %2250 = vst.msk [vmem:[%s2189 + $0x151] sm:$0xff] %vm417, %v2182
        %2251 = vst.msk [vmem:[%s2189 + $0x159] sm:$0xff] %vm417, %v2183
        %2252 = vst.msk [vmem:[%s2189 + $0x169] sm:$0xff] %vm417, %v2184
        %2253 = vst.msk [vmem:[%s2189 + $0x171] sm:$0xff] %vm417, %v2185
        %v2254 = vld [vmem:[#allocation3] sm:$0xff]
        %v2255 = vld [vmem:[#allocation3 + $0x8] sm:$0xff]
        %v2256 = vld [vmem:[#allocation3 + $0x18] sm:$0xff]
        %v2257 = vld [vmem:[#allocation3 + $0x20] sm:$0xff]
        %v2258 = vld [vmem:[#allocation3 + $0x30] sm:$0xff]
        %v2259 = vld [vmem:[#allocation3 + $0x38] sm:$0xff]
        %v2260 = vld [vmem:[#allocation3 + $0x48] sm:$0xff]
        %v2261 = vld [vmem:[#allocation3 + $0x50] sm:$0xff]
        %v2262 = vld [vmem:[#allocation3 + $0x60] sm:$0xff]
        %v2263 = vld [vmem:[#allocation3 + $0x68] sm:$0xff]
        %v2264 = vld [vmem:[#allocation3 + $0x78] sm:$0xff]
        %v2265 = vld [vmem:[#allocation3 + $0x80] sm:$0xff]
        %v2266 = vld [vmem:[#allocation3 + $0x90] sm:$0xff]
        %v2267 = vld [vmem:[#allocation3 + $0x98] sm:$0xff]
        %v2268 = vld [vmem:[#allocation3 + $0xa8] sm:$0xff]
        %v2269 = vld [vmem:[#allocation3 + $0xb0] sm:$0xff]
        %v2270 = vld [vmem:[#allocation3 + $0xc0] sm:$0xff]
        %v2271 = vld [vmem:[#allocation3 + $0xc8] sm:$0xff]
        %v2272 = vld [vmem:[#allocation3 + $0xd8] sm:$0xff]
        %v2273 = vld [vmem:[#allocation3 + $0xe0] sm:$0xff]
        %v2274 = vld [vmem:[#allocation3 + $0xf0] sm:$0xff]
        %v2275 = vld [vmem:[#allocation3 + $0xf8] sm:$0xff]
        %v2276 = vld [vmem:[#allocation3 + $0x108] sm:$0xff]
        %v2277 = vld [vmem:[#allocation3 + $0x110] sm:$0xff]
        %v2278 = vld [vmem:[#allocation3 + $0x120] sm:$0xff]
        %v2279 = vld [vmem:[#allocation3 + $0x128] sm:$0xff]
        %v2280 = vld [vmem:[#allocation3 + $0x138] sm:$0xff]
        %v2281 = vld [vmem:[#allocation3 + $0x140] sm:$0xff]
        %v2282 = vld [vmem:[#allocation3 + $0x150] sm:$0xff]
        %v2283 = vld [vmem:[#allocation3 + $0x158] sm:$0xff]
        %v2284 = vld [vmem:[#allocation3 + $0x168] sm:$0xff]
        %v2285 = vld [vmem:[#allocation3 + $0x170] sm:$0xff]
        %v2286 = vld [vmem:[#allocation3 + $0x1] sm:$0xff]
        %v2287 = vld [vmem:[#allocation3 + $0x9] sm:$0xff]
        %v2288 = vld [vmem:[#allocation3 + $0x19] sm:$0xff]
        %v2289 = vld [vmem:[#allocation3 + $0x21] sm:$0xff]
        %v2290 = vld [vmem:[#allocation3 + $0x31] sm:$0xff]
        %v2291 = vld [vmem:[#allocation3 + $0x39] sm:$0xff]
        %v2292 = vld [vmem:[#allocation3 + $0x49] sm:$0xff]
        %v2293 = vld [vmem:[#allocation3 + $0x51] sm:$0xff]
        %v2294 = vld [vmem:[#allocation3 + $0x61] sm:$0xff]
        %v2295 = vld [vmem:[#allocation3 + $0x69] sm:$0xff]
        %v2296 = vld [vmem:[#allocation3 + $0x79] sm:$0xff]
        %v2297 = vld [vmem:[#allocation3 + $0x81] sm:$0xff]
        %v2298 = vld [vmem:[#allocation3 + $0x91] sm:$0xff]
        %v2299 = vld [vmem:[#allocation3 + $0x99] sm:$0xff]
        %v2300 = vld [vmem:[#allocation3 + $0xa9] sm:$0xff]
        %v2301 = vld [vmem:[#allocation3 + $0xb1] sm:$0xff]
        %v2302 = vld [vmem:[#allocation3 + $0xc1] sm:$0xff]
        %v2303 = vld [vmem:[#allocation3 + $0xc9] sm:$0xff]
        %v2304 = vld [vmem:[#allocation3 + $0xd9] sm:$0xff]
        %v2305 = vld [vmem:[#allocation3 + $0xe1] sm:$0xff]
        %v2306 = vld [vmem:[#allocation3 + $0xf1] sm:$0xff]
        %v2307 = vld [vmem:[#allocation3 + $0xf9] sm:$0xff]
        %v2308 = vld [vmem:[#allocation3 + $0x109] sm:$0xff]
        %v2309 = vld [vmem:[#allocation3 + $0x111] sm:$0xff]
        %v2310 = vld [vmem:[#allocation3 + $0x121] sm:$0xff]
        %v2311 = vld [vmem:[#allocation3 + $0x129] sm:$0xff]
        %v2312 = vld [vmem:[#allocation3 + $0x139] sm:$0xff]
        %v2313 = vld [vmem:[#allocation3 + $0x141] sm:$0xff]
        %v2314 = vld [vmem:[#allocation3 + $0x151] sm:$0xff]
        %v2315 = vld [vmem:[#allocation3 + $0x159] sm:$0xff]
        %v2316 = vld [vmem:[#allocation3 + $0x169] sm:$0xff]
        %v2317 = vld [vmem:[#allocation3 + $0x171] sm:$0xff]
        %v2318 = vld [vmem:[#allocation3 + $0x2] sm:$0xff]
        %v2319 = vld [vmem:[#allocation3 + $0xa] sm:$0xff]
        %v2320 = vld [vmem:[#allocation3 + $0x1a] sm:$0xff]
        %v2321 = vld [vmem:[#allocation3 + $0x22] sm:$0xff]
        %v2322 = vld [vmem:[#allocation3 + $0x32] sm:$0xff]
        %v2323 = vld [vmem:[#allocation3 + $0x3a] sm:$0xff]
        %v2324 = vld [vmem:[#allocation3 + $0x4a] sm:$0xff]
        %v2325 = vld [vmem:[#allocation3 + $0x52] sm:$0xff]
        %v2326 = vld [vmem:[#allocation3 + $0x62] sm:$0xff]
        %v2327 = vld [vmem:[#allocation3 + $0x6a] sm:$0xff]
        %v2328 = vld [vmem:[#allocation3 + $0x7a] sm:$0xff]
        %v2329 = vld [vmem:[#allocation3 + $0x82] sm:$0xff]
        %v2330 = vld [vmem:[#allocation3 + $0x92] sm:$0xff]
        %v2331 = vld [vmem:[#allocation3 + $0x9a] sm:$0xff]
        %v2332 = vld [vmem:[#allocation3 + $0xaa] sm:$0xff]
        %v2333 = vld [vmem:[#allocation3 + $0xb2] sm:$0xff]
        %v2334 = vld [vmem:[#allocation3 + $0xc2] sm:$0xff]
        %v2335 = vld [vmem:[#allocation3 + $0xca] sm:$0xff]
        %v2336 = vld [vmem:[#allocation3 + $0xda] sm:$0xff]
        %v2337 = vld [vmem:[#allocation3 + $0xe2] sm:$0xff]
        %v2338 = vld [vmem:[#allocation3 + $0xf2] sm:$0xff]
        %v2339 = vld [vmem:[#allocation3 + $0xfa] sm:$0xff]
        %v2340 = vld [vmem:[#allocation3 + $0x10a] sm:$0xff]
        %v2341 = vld [vmem:[#allocation3 + $0x112] sm:$0xff]
        %v2342 = vld [vmem:[#allocation3 + $0x122] sm:$0xff]
        %v2343 = vld [vmem:[#allocation3 + $0x12a] sm:$0xff]
        %v2344 = vld [vmem:[#allocation3 + $0x13a] sm:$0xff]
        %v2345 = vld [vmem:[#allocation3 + $0x142] sm:$0xff]
        %v2346 = vld [vmem:[#allocation3 + $0x152] sm:$0xff]
        %v2347 = vld [vmem:[#allocation3 + $0x15a] sm:$0xff]
        %v2348 = vld [vmem:[#allocation3 + $0x16a] sm:$0xff]
        %v2349 = vld [vmem:[#allocation3 + $0x172] sm:$0xff]
        %v2350 = vld [vmem:[%s2189] sm:$0xff]
        %v2351 = vld [vmem:[%s2189 + $0x8] sm:$0xff]
        %v2352 = vld [vmem:[%s2189 + $0x18] sm:$0xff]
        %v2353 = vld [vmem:[%s2189 + $0x20] sm:$0xff]
        %v2354 = vld [vmem:[%s2189 + $0x30] sm:$0xff]
        %v2355 = vld [vmem:[%s2189 + $0x38] sm:$0xff]
        %v2356 = vld [vmem:[%s2189 + $0x48] sm:$0xff]
        %v2357 = vld [vmem:[%s2189 + $0x50] sm:$0xff]
        %v2358 = vld [vmem:[%s2189 + $0x60] sm:$0xff]
        %v2359 = vld [vmem:[%s2189 + $0x68] sm:$0xff]
        %v2360 = vld [vmem:[%s2189 + $0x78] sm:$0xff]
        %v2361 = vld [vmem:[%s2189 + $0x80] sm:$0xff]
        %v2362 = vld [vmem:[%s2189 + $0x90] sm:$0xff]
        %v2363 = vld [vmem:[%s2189 + $0x98] sm:$0xff]
        %v2364 = vld [vmem:[%s2189 + $0xa8] sm:$0xff]
        %v2365 = vld [vmem:[%s2189 + $0xb0] sm:$0xff]
        %v2366 = vld [vmem:[%s2189 + $0xc0] sm:$0xff]
        %v2367 = vld [vmem:[%s2189 + $0xc8] sm:$0xff]
        %v2368 = vld [vmem:[%s2189 + $0xd8] sm:$0xff]
        %v2369 = vld [vmem:[%s2189 + $0xe0] sm:$0xff]
        %v2370 = vld [vmem:[%s2189 + $0xf0] sm:$0xff]
        %v2371 = vld [vmem:[%s2189 + $0xf8] sm:$0xff]
        %v2372 = vld [vmem:[%s2189 + $0x108] sm:$0xff]
        %v2373 = vld [vmem:[%s2189 + $0x110] sm:$0xff]
        %v2374 = vld [vmem:[%s2189 + $0x120] sm:$0xff]
        %v2375 = vld [vmem:[%s2189 + $0x128] sm:$0xff]
        %v2376 = vld [vmem:[%s2189 + $0x138] sm:$0xff]
        %v2377 = vld [vmem:[%s2189 + $0x140] sm:$0xff]
        %v2378 = vld [vmem:[%s2189 + $0x150] sm:$0xff]
        %v2379 = vld [vmem:[%s2189 + $0x158] sm:$0xff]
        %v2380 = vld [vmem:[%s2189 + $0x168] sm:$0xff]
        %v2381 = vld [vmem:[%s2189 + $0x170] sm:$0xff]
        %v2382 = vld [vmem:[%s2189 + $0x1] sm:$0xff]
        %v2383 = vld [vmem:[%s2189 + $0x9] sm:$0xff]
        %v2384 = vld [vmem:[%s2189 + $0x19] sm:$0xff]
        %v2385 = vld [vmem:[%s2189 + $0x21] sm:$0xff]
        %v2386 = vld [vmem:[%s2189 + $0x31] sm:$0xff]
        %v2387 = vld [vmem:[%s2189 + $0x39] sm:$0xff]
        %v2388 = vld [vmem:[%s2189 + $0x49] sm:$0xff]
        %v2389 = vld [vmem:[%s2189 + $0x51] sm:$0xff]
        %v2390 = vld [vmem:[%s2189 + $0x61] sm:$0xff]
        %v2391 = vld [vmem:[%s2189 + $0x69] sm:$0xff]
        %v2392 = vld [vmem:[%s2189 + $0x79] sm:$0xff]
        %v2393 = vld [vmem:[%s2189 + $0x81] sm:$0xff]
        %v2394 = vld [vmem:[%s2189 + $0x91] sm:$0xff]
        %v2395 = vld [vmem:[%s2189 + $0x99] sm:$0xff]
        %v2396 = vld [vmem:[%s2189 + $0xa9] sm:$0xff]
        %v2397 = vld [vmem:[%s2189 + $0xb1] sm:$0xff]
        %v2398 = vld [vmem:[%s2189 + $0xc1] sm:$0xff]
        %v2399 = vld [vmem:[%s2189 + $0xc9] sm:$0xff]
        %v2400 = vld [vmem:[%s2189 + $0xd9] sm:$0xff]
        %v2401 = vld [vmem:[%s2189 + $0xe1] sm:$0xff]
        %v2402 = vld [vmem:[%s2189 + $0xf1] sm:$0xff]
        %v2403 = vld [vmem:[%s2189 + $0xf9] sm:$0xff]
        %v2404 = vld [vmem:[%s2189 + $0x109] sm:$0xff]
        %v2405 = vld [vmem:[%s2189 + $0x111] sm:$0xff]
        %v2406 = vld [vmem:[%s2189 + $0x121] sm:$0xff]
        %v2407 = vld [vmem:[%s2189 + $0x129] sm:$0xff]
        %v2408 = vld [vmem:[%s2189 + $0x139] sm:$0xff]
        %v2409 = vld [vmem:[%s2189 + $0x141] sm:$0xff]
        %v2410 = vld [vmem:[%s2189 + $0x151] sm:$0xff]
        %v2411 = vld [vmem:[%s2189 + $0x159] sm:$0xff]
        %v2412 = vld [vmem:[%s2189 + $0x169] sm:$0xff]
        %v2413 = vld [vmem:[%s2189 + $0x171] sm:$0xff]
        %v2414 = vld [vmem:[%s2189 + $0x2] sm:$0xff]
        %v2415 = vld [vmem:[%s2189 + $0xa] sm:$0xff]
        %v2416 = vld [vmem:[%s2189 + $0x1a] sm:$0xff]
        %v2417 = vld [vmem:[%s2189 + $0x22] sm:$0xff]
        %v2418 = vld [vmem:[%s2189 + $0x32] sm:$0xff]
        %v2419 = vld [vmem:[%s2189 + $0x3a] sm:$0xff]
        %v2420 = vld [vmem:[%s2189 + $0x4a] sm:$0xff]
        %v2421 = vld [vmem:[%s2189 + $0x52] sm:$0xff]
        %v2422 = vld [vmem:[%s2189 + $0x62] sm:$0xff]
        %v2423 = vld [vmem:[%s2189 + $0x6a] sm:$0xff]
        %v2424 = vld [vmem:[%s2189 + $0x7a] sm:$0xff]
        %v2425 = vld [vmem:[%s2189 + $0x82] sm:$0xff]
        %v2426 = vld [vmem:[%s2189 + $0x92] sm:$0xff]
        %v2427 = vld [vmem:[%s2189 + $0x9a] sm:$0xff]
        %v2428 = vld [vmem:[%s2189 + $0xaa] sm:$0xff]
        %v2429 = vld [vmem:[%s2189 + $0xb2] sm:$0xff]
        %v2430 = vld [vmem:[%s2189 + $0xc2] sm:$0xff]
        %v2431 = vld [vmem:[%s2189 + $0xca] sm:$0xff]
        %v2432 = vld [vmem:[%s2189 + $0xda] sm:$0xff]
        %v2433 = vld [vmem:[%s2189 + $0xe2] sm:$0xff]
        %v2434 = vld [vmem:[%s2189 + $0xf2] sm:$0xff]
        %v2435 = vld [vmem:[%s2189 + $0xfa] sm:$0xff]
        %v2436 = vld [vmem:[%s2189 + $0x10a] sm:$0xff]
        %v2437 = vld [vmem:[%s2189 + $0x112] sm:$0xff]
        %v2438 = vld [vmem:[%s2189 + $0x122] sm:$0xff]
        %v2439 = vld [vmem:[%s2189 + $0x12a] sm:$0xff]
        %v2440 = vld [vmem:[%s2189 + $0x13a] sm:$0xff]
        %v2441 = vld [vmem:[%s2189 + $0x142] sm:$0xff]
        %v2442 = vld [vmem:[%s2189 + $0x152] sm:$0xff]
        %v2443 = vld [vmem:[%s2189 + $0x15a] sm:$0xff]
        %v2444 = vld [vmem:[%s2189 + $0x16a] sm:$0xff]
        %v2445 = vld [vmem:[%s2189 + $0x172] sm:$0xff]
        %2478 = vrot.lane.b32.xlu0 %v2286, 32
        %v2479 = vpop.permute.xlu0 %2478
        %2480 = vrot.lane.b32.xlu0 %v2287, 32
        %v2481 = vpop.permute.xlu0 %2480
        %2482 = vrot.lane.b32.xlu0 %v2288, 32
        %v2483 = vpop.permute.xlu0 %2482
        %2484 = vrot.lane.b32.xlu0 %v2289, 32
        %v2485 = vpop.permute.xlu0 %2484
        %2486 = vrot.lane.b32.xlu0 %v2290, 32
        %v2487 = vpop.permute.xlu0 %2486
        %2488 = vrot.lane.b32.xlu0 %v2291, 32
        %v2489 = vpop.permute.xlu0 %2488
        %2490 = vrot.lane.b32.xlu0 %v2292, 32
        %v2491 = vpop.permute.xlu0 %2490
        %2492 = vrot.lane.b32.xlu0 %v2293, 32
        %v2493 = vpop.permute.xlu0 %2492
        %2494 = vrot.lane.b32.xlu0 %v2294, 32
        %v2495 = vpop.permute.xlu0 %2494
        %2496 = vrot.lane.b32.xlu0 %v2295, 32
        %v2497 = vpop.permute.xlu0 %2496
        %2498 = vrot.lane.b32.xlu0 %v2296, 32
        %v2499 = vpop.permute.xlu0 %2498
        %2500 = vrot.lane.b32.xlu0 %v2297, 32
        %v2501 = vpop.permute.xlu0 %2500
        %2502 = vrot.lane.b32.xlu0 %v2298, 32
        %v2503 = vpop.permute.xlu0 %2502
        %2504 = vrot.lane.b32.xlu0 %v2299, 32
        %v2505 = vpop.permute.xlu0 %2504
        %2506 = vrot.lane.b32.xlu0 %v2300, 32
        %v2507 = vpop.permute.xlu0 %2506
        %2508 = vrot.lane.b32.xlu0 %v2301, 32
        %v2509 = vpop.permute.xlu0 %2508
        %2510 = vrot.lane.b32.xlu0 %v2302, 32
        %v2511 = vpop.permute.xlu0 %2510
        %2512 = vrot.lane.b32.xlu0 %v2303, 32
        %v2513 = vpop.permute.xlu0 %2512
        %2514 = vrot.lane.b32.xlu0 %v2304, 32
        %v2515 = vpop.permute.xlu0 %2514
        %2516 = vrot.lane.b32.xlu0 %v2305, 32
        %v2517 = vpop.permute.xlu0 %2516
        %2518 = vrot.lane.b32.xlu0 %v2306, 32
        %v2519 = vpop.permute.xlu0 %2518
        %2520 = vrot.lane.b32.xlu0 %v2307, 32
        %v2521 = vpop.permute.xlu0 %2520
        %2522 = vrot.lane.b32.xlu0 %v2308, 32
        %v2523 = vpop.permute.xlu0 %2522
        %2524 = vrot.lane.b32.xlu0 %v2309, 32
        %v2525 = vpop.permute.xlu0 %2524
        %2526 = vrot.lane.b32.xlu0 %v2310, 32
        %v2527 = vpop.permute.xlu0 %2526
        %2528 = vrot.lane.b32.xlu0 %v2311, 32
        %v2529 = vpop.permute.xlu0 %2528
        %2530 = vrot.lane.b32.xlu0 %v2312, 32
        %v2531 = vpop.permute.xlu0 %2530
        %2532 = vrot.lane.b32.xlu0 %v2313, 32
        %v2533 = vpop.permute.xlu0 %2532
        %2534 = vrot.lane.b32.xlu0 %v2314, 32
        %v2535 = vpop.permute.xlu0 %2534
        %2536 = vrot.lane.b32.xlu0 %v2315, 32
        %v2537 = vpop.permute.xlu0 %2536
        %2538 = vrot.lane.b32.xlu0 %v2316, 32
        %v2539 = vpop.permute.xlu0 %2538
        %2540 = vrot.lane.b32.xlu0 %v2317, 32
        %v2541 = vpop.permute.xlu0 %2540
        %2606 = vrot.lane.b32.xlu0 %v2318, 64
        %v2607 = vpop.permute.xlu0 %2606
        %2608 = vrot.lane.b32.xlu0 %v2319, 64
        %v2609 = vpop.permute.xlu0 %2608
        %2610 = vrot.lane.b32.xlu0 %v2320, 64
        %v2611 = vpop.permute.xlu0 %2610
        %2612 = vrot.lane.b32.xlu0 %v2321, 64
        %v2613 = vpop.permute.xlu0 %2612
        %2614 = vrot.lane.b32.xlu0 %v2322, 64
        %v2615 = vpop.permute.xlu0 %2614
        %2616 = vrot.lane.b32.xlu0 %v2323, 64
        %v2617 = vpop.permute.xlu0 %2616
        %2618 = vrot.lane.b32.xlu0 %v2324, 64
        %v2619 = vpop.permute.xlu0 %2618
        %2620 = vrot.lane.b32.xlu0 %v2325, 64
        %v2621 = vpop.permute.xlu0 %2620
        %2622 = vrot.lane.b32.xlu0 %v2326, 64
        %v2623 = vpop.permute.xlu0 %2622
        %2624 = vrot.lane.b32.xlu0 %v2327, 64
        %v2625 = vpop.permute.xlu0 %2624
        %2626 = vrot.lane.b32.xlu0 %v2328, 64
        %v2627 = vpop.permute.xlu0 %2626
        %2628 = vrot.lane.b32.xlu0 %v2329, 64
        %v2629 = vpop.permute.xlu0 %2628
        %2630 = vrot.lane.b32.xlu0 %v2330, 64
        %v2631 = vpop.permute.xlu0 %2630
        %2632 = vrot.lane.b32.xlu0 %v2331, 64
        %v2633 = vpop.permute.xlu0 %2632
        %2634 = vrot.lane.b32.xlu0 %v2332, 64
        %v2635 = vpop.permute.xlu0 %2634
        %2636 = vrot.lane.b32.xlu0 %v2333, 64
        %v2637 = vpop.permute.xlu0 %2636
        %2638 = vrot.lane.b32.xlu0 %v2334, 64
        %v2639 = vpop.permute.xlu0 %2638
        %2640 = vrot.lane.b32.xlu0 %v2335, 64
        %v2641 = vpop.permute.xlu0 %2640
        %2642 = vrot.lane.b32.xlu0 %v2336, 64
        %v2643 = vpop.permute.xlu0 %2642
        %2644 = vrot.lane.b32.xlu0 %v2337, 64
        %v2645 = vpop.permute.xlu0 %2644
        %2646 = vrot.lane.b32.xlu0 %v2338, 64
        %v2647 = vpop.permute.xlu0 %2646
        %2648 = vrot.lane.b32.xlu0 %v2339, 64
        %v2649 = vpop.permute.xlu0 %2648
        %2650 = vrot.lane.b32.xlu0 %v2340, 64
        %v2651 = vpop.permute.xlu0 %2650
        %2652 = vrot.lane.b32.xlu0 %v2341, 64
        %v2653 = vpop.permute.xlu0 %2652
        %2654 = vrot.lane.b32.xlu0 %v2342, 64
        %v2655 = vpop.permute.xlu0 %2654
        %2656 = vrot.lane.b32.xlu0 %v2343, 64
        %v2657 = vpop.permute.xlu0 %2656
        %2658 = vrot.lane.b32.xlu0 %v2344, 64
        %v2659 = vpop.permute.xlu0 %2658
        %2660 = vrot.lane.b32.xlu0 %v2345, 64
        %v2661 = vpop.permute.xlu0 %2660
        %2662 = vrot.lane.b32.xlu0 %v2346, 64
        %v2663 = vpop.permute.xlu0 %2662
        %2664 = vrot.lane.b32.xlu0 %v2347, 64
        %v2665 = vpop.permute.xlu0 %2664
        %2666 = vrot.lane.b32.xlu0 %v2348, 64
        %v2667 = vpop.permute.xlu0 %2666
        %2668 = vrot.lane.b32.xlu0 %v2349, 64
        %v2669 = vpop.permute.xlu0 %2668
        %2734 = vrot.lane.b32.xlu0 %v2350, 96
        %v2735 = vpop.permute.xlu0 %2734
        %2736 = vrot.lane.b32.xlu0 %v2351, 96
        %v2737 = vpop.permute.xlu0 %2736
        %2738 = vrot.lane.b32.xlu0 %v2352, 96
        %v2739 = vpop.permute.xlu0 %2738
        %2740 = vrot.lane.b32.xlu0 %v2353, 96
        %v2741 = vpop.permute.xlu0 %2740
        %2742 = vrot.lane.b32.xlu0 %v2354, 96
        %v2743 = vpop.permute.xlu0 %2742
        %2744 = vrot.lane.b32.xlu0 %v2355, 96
        %v2745 = vpop.permute.xlu0 %2744
        %2746 = vrot.lane.b32.xlu0 %v2356, 96
        %v2747 = vpop.permute.xlu0 %2746
        %2748 = vrot.lane.b32.xlu0 %v2357, 96
        %v2749 = vpop.permute.xlu0 %2748
        %2750 = vrot.lane.b32.xlu0 %v2358, 96
        %v2751 = vpop.permute.xlu0 %2750
        %2752 = vrot.lane.b32.xlu0 %v2359, 96
        %v2753 = vpop.permute.xlu0 %2752
        %2754 = vrot.lane.b32.xlu0 %v2360, 96
        %v2755 = vpop.permute.xlu0 %2754
        %2756 = vrot.lane.b32.xlu0 %v2361, 96
        %v2757 = vpop.permute.xlu0 %2756
        %2758 = vrot.lane.b32.xlu0 %v2362, 96
        %v2759 = vpop.permute.xlu0 %2758
        %2760 = vrot.lane.b32.xlu0 %v2363, 96
        %v2761 = vpop.permute.xlu0 %2760
        %2762 = vrot.lane.b32.xlu0 %v2364, 96
        %v2763 = vpop.permute.xlu0 %2762
        %2764 = vrot.lane.b32.xlu0 %v2365, 96
        %v2765 = vpop.permute.xlu0 %2764
        %2766 = vrot.lane.b32.xlu0 %v2366, 96
        %v2767 = vpop.permute.xlu0 %2766
        %2768 = vrot.lane.b32.xlu0 %v2367, 96
        %v2769 = vpop.permute.xlu0 %2768
        %2770 = vrot.lane.b32.xlu0 %v2368, 96
        %v2771 = vpop.permute.xlu0 %2770
        %2772 = vrot.lane.b32.xlu0 %v2369, 96
        %v2773 = vpop.permute.xlu0 %2772
        %2774 = vrot.lane.b32.xlu0 %v2370, 96
        %v2775 = vpop.permute.xlu0 %2774
        %2776 = vrot.lane.b32.xlu0 %v2371, 96
        %v2777 = vpop.permute.xlu0 %2776
        %2778 = vrot.lane.b32.xlu0 %v2372, 96
        %v2779 = vpop.permute.xlu0 %2778
        %2780 = vrot.lane.b32.xlu0 %v2373, 96
        %v2781 = vpop.permute.xlu0 %2780
        %2782 = vrot.lane.b32.xlu0 %v2374, 96
        %v2783 = vpop.permute.xlu0 %2782
        %2784 = vrot.lane.b32.xlu0 %v2375, 96
        %v2785 = vpop.permute.xlu0 %2784
        %2786 = vrot.lane.b32.xlu0 %v2376, 96
        %v2787 = vpop.permute.xlu0 %2786
        %2788 = vrot.lane.b32.xlu0 %v2377, 96
        %v2789 = vpop.permute.xlu0 %2788
        %2790 = vrot.lane.b32.xlu0 %v2378, 96
        %v2791 = vpop.permute.xlu0 %2790
        %2792 = vrot.lane.b32.xlu0 %v2379, 96
        %v2793 = vpop.permute.xlu0 %2792
        %2794 = vrot.lane.b32.xlu0 %v2380, 96
        %v2795 = vpop.permute.xlu0 %2794
        %2796 = vrot.lane.b32.xlu0 %v2381, 96
        %v2797 = vpop.permute.xlu0 %2796
        %2862 = vrot.lane.b32.xlu0 %v2414, 32
        %v2863 = vpop.permute.xlu0 %2862
        %2864 = vrot.lane.b32.xlu0 %v2415, 32
        %v2865 = vpop.permute.xlu0 %2864
        %2866 = vrot.lane.b32.xlu0 %v2416, 32
        %v2867 = vpop.permute.xlu0 %2866
        %2868 = vrot.lane.b32.xlu0 %v2417, 32
        %v2869 = vpop.permute.xlu0 %2868
        %2870 = vrot.lane.b32.xlu0 %v2418, 32
        %v2871 = vpop.permute.xlu0 %2870
        %2872 = vrot.lane.b32.xlu0 %v2419, 32
        %v2873 = vpop.permute.xlu0 %2872
        %2874 = vrot.lane.b32.xlu0 %v2420, 32
        %v2875 = vpop.permute.xlu0 %2874
        %2876 = vrot.lane.b32.xlu0 %v2421, 32
        %v2877 = vpop.permute.xlu0 %2876
        %2878 = vrot.lane.b32.xlu0 %v2422, 32
        %v2879 = vpop.permute.xlu0 %2878
        %2880 = vrot.lane.b32.xlu0 %v2423, 32
        %v2881 = vpop.permute.xlu0 %2880
        %2882 = vrot.lane.b32.xlu0 %v2424, 32
        %v2883 = vpop.permute.xlu0 %2882
        %2884 = vrot.lane.b32.xlu0 %v2425, 32
        %v2885 = vpop.permute.xlu0 %2884
        %2886 = vrot.lane.b32.xlu0 %v2426, 32
        %v2887 = vpop.permute.xlu0 %2886
        %2888 = vrot.lane.b32.xlu0 %v2427, 32
        %v2889 = vpop.permute.xlu0 %2888
        %2890 = vrot.lane.b32.xlu0 %v2428, 32
        %v2891 = vpop.permute.xlu0 %2890
        %2892 = vrot.lane.b32.xlu0 %v2429, 32
        %v2893 = vpop.permute.xlu0 %2892
        %2894 = vrot.lane.b32.xlu0 %v2430, 32
        %v2895 = vpop.permute.xlu0 %2894
        %2896 = vrot.lane.b32.xlu0 %v2431, 32
        %v2897 = vpop.permute.xlu0 %2896
        %2898 = vrot.lane.b32.xlu0 %v2432, 32
        %v2899 = vpop.permute.xlu0 %2898
        %2900 = vrot.lane.b32.xlu0 %v2433, 32
        %v2901 = vpop.permute.xlu0 %2900
        %2902 = vrot.lane.b32.xlu0 %v2434, 32
        %v2903 = vpop.permute.xlu0 %2902
        %2904 = vrot.lane.b32.xlu0 %v2435, 32
        %v2905 = vpop.permute.xlu0 %2904
        %2906 = vrot.lane.b32.xlu0 %v2436, 32
        %v2907 = vpop.permute.xlu0 %2906
        %2908 = vrot.lane.b32.xlu0 %v2437, 32
        %v2909 = vpop.permute.xlu0 %2908
        %2910 = vrot.lane.b32.xlu0 %v2438, 32
        %v2911 = vpop.permute.xlu0 %2910
        %2912 = vrot.lane.b32.xlu0 %v2439, 32
        %v2913 = vpop.permute.xlu0 %2912
        %2914 = vrot.lane.b32.xlu0 %v2440, 32
        %v2915 = vpop.permute.xlu0 %2914
        %2916 = vrot.lane.b32.xlu0 %v2441, 32
        %v2917 = vpop.permute.xlu0 %2916
        %2918 = vrot.lane.b32.xlu0 %v2442, 32
        %v2919 = vpop.permute.xlu0 %2918
        %2920 = vrot.lane.b32.xlu0 %v2443, 32
        %v2921 = vpop.permute.xlu0 %2920
        %2922 = vrot.lane.b32.xlu0 %v2444, 32
        %v2923 = vpop.permute.xlu0 %2922
        %2924 = vrot.lane.b32.xlu0 %v2445, 32
        %v2925 = vpop.permute.xlu0 %2924
        %v2958 = vsel %vm417, %v2254, %v2479
        %v2959 = vsel %vm417, %v2255, %v2481
        %v2960 = vsel %vm417, %v2256, %v2483
        %v2961 = vsel %vm417, %v2257, %v2485
        %v2962 = vsel %vm417, %v2258, %v2487
        %v2963 = vsel %vm417, %v2259, %v2489
        %v2964 = vsel %vm417, %v2260, %v2491
        %v2965 = vsel %vm417, %v2261, %v2493
        %v2966 = vsel %vm417, %v2262, %v2495
        %v2967 = vsel %vm417, %v2263, %v2497
        %v2968 = vsel %vm417, %v2264, %v2499
        %v2969 = vsel %vm417, %v2265, %v2501
        %v2970 = vsel %vm417, %v2266, %v2503
        %v2971 = vsel %vm417, %v2267, %v2505
        %v2972 = vsel %vm417, %v2268, %v2507
        %v2973 = vsel %vm417, %v2269, %v2509
        %v2974 = vsel %vm417, %v2270, %v2511
        %v2975 = vsel %vm417, %v2271, %v2513
        %v2976 = vsel %vm417, %v2272, %v2515
        %v2977 = vsel %vm417, %v2273, %v2517
        %v2978 = vsel %vm417, %v2274, %v2519
        %v2979 = vsel %vm417, %v2275, %v2521
        %v2980 = vsel %vm417, %v2276, %v2523
        %v2981 = vsel %vm417, %v2277, %v2525
        %v2982 = vsel %vm417, %v2278, %v2527
        %v2983 = vsel %vm417, %v2279, %v2529
        %v2984 = vsel %vm417, %v2280, %v2531
        %v2985 = vsel %vm417, %v2281, %v2533
        %v2986 = vsel %vm417, %v2282, %v2535
        %v2987 = vsel %vm417, %v2283, %v2537
        %v2988 = vsel %vm417, %v2284, %v2539
        %v2989 = vsel %vm417, %v2285, %v2541
        %v2990 = vsel %vm1224, %v2958, %v2607
        %v2991 = vsel %vm1224, %v2959, %v2609
        %v2992 = vsel %vm1224, %v2960, %v2611
        %v2993 = vsel %vm1224, %v2961, %v2613
        %v2994 = vsel %vm1224, %v2962, %v2615
        %v2995 = vsel %vm1224, %v2963, %v2617
        %v2996 = vsel %vm1224, %v2964, %v2619
        %v2997 = vsel %vm1224, %v2965, %v2621
        %v2998 = vsel %vm1224, %v2966, %v2623
        %v2999 = vsel %vm1224, %v2967, %v2625
        %v3000 = vsel %vm1224, %v2968, %v2627
        %v3001 = vsel %vm1224, %v2969, %v2629
        %v3002 = vsel %vm1224, %v2970, %v2631
        %v3003 = vsel %vm1224, %v2971, %v2633
        %v3004 = vsel %vm1224, %v2972, %v2635
        %v3005 = vsel %vm1224, %v2973, %v2637
        %v3006 = vsel %vm1224, %v2974, %v2639
        %v3007 = vsel %vm1224, %v2975, %v2641
        %v3008 = vsel %vm1224, %v2976, %v2643
        %v3009 = vsel %vm1224, %v2977, %v2645
        %v3010 = vsel %vm1224, %v2978, %v2647
        %v3011 = vsel %vm1224, %v2979, %v2649
        %v3012 = vsel %vm1224, %v2980, %v2651
        %v3013 = vsel %vm1224, %v2981, %v2653
        %v3014 = vsel %vm1224, %v2982, %v2655
        %v3015 = vsel %vm1224, %v2983, %v2657
        %v3016 = vsel %vm1224, %v2984, %v2659
        %v3017 = vsel %vm1224, %v2985, %v2661
        %v3018 = vsel %vm1224, %v2986, %v2663
        %v3019 = vsel %vm1224, %v2987, %v2665
        %v3020 = vsel %vm1224, %v2988, %v2667
        %v3021 = vsel %vm1224, %v2989, %v2669
        %v3022 = vsel %vm1257, %v2990, %v2735
        %v3023 = vsel %vm1257, %v2991, %v2737
        %v3024 = vsel %vm1257, %v2992, %v2739
        %v3025 = vsel %vm1257, %v2993, %v2741
        %v3026 = vsel %vm1257, %v2994, %v2743
        %v3027 = vsel %vm1257, %v2995, %v2745
        %v3028 = vsel %vm1257, %v2996, %v2747
        %v3029 = vsel %vm1257, %v2997, %v2749
        %v3030 = vsel %vm1257, %v2998, %v2751
        %v3031 = vsel %vm1257, %v2999, %v2753
        %v3032 = vsel %vm1257, %v3000, %v2755
        %v3033 = vsel %vm1257, %v3001, %v2757
        %v3034 = vsel %vm1257, %v3002, %v2759
        %v3035 = vsel %vm1257, %v3003, %v2761
        %v3036 = vsel %vm1257, %v3004, %v2763
        %v3037 = vsel %vm1257, %v3005, %v2765
        %v3038 = vsel %vm1257, %v3006, %v2767
        %v3039 = vsel %vm1257, %v3007, %v2769
        %v3040 = vsel %vm1257, %v3008, %v2771
        %v3041 = vsel %vm1257, %v3009, %v2773
        %v3042 = vsel %vm1257, %v3010, %v2775
        %v3043 = vsel %vm1257, %v3011, %v2777
        %v3044 = vsel %vm1257, %v3012, %v2779
        %v3045 = vsel %vm1257, %v3013, %v2781
        %v3046 = vsel %vm1257, %v3014, %v2783
        %v3047 = vsel %vm1257, %v3015, %v2785
        %v3048 = vsel %vm1257, %v3016, %v2787
        %v3049 = vsel %vm1257, %v3017, %v2789
        %v3050 = vsel %vm1257, %v3018, %v2791
        %v3051 = vsel %vm1257, %v3019, %v2793
        %v3052 = vsel %vm1257, %v3020, %v2795
        %v3053 = vsel %vm1257, %v3021, %v2797
        %v3054 = vsel %vm417, %v2382, %v2863
        %v3055 = vsel %vm417, %v2383, %v2865
        %v3056 = vsel %vm417, %v2384, %v2867
        %v3057 = vsel %vm417, %v2385, %v2869
        %v3058 = vsel %vm417, %v2386, %v2871
        %v3059 = vsel %vm417, %v2387, %v2873
        %v3060 = vsel %vm417, %v2388, %v2875
        %v3061 = vsel %vm417, %v2389, %v2877
        %v3062 = vsel %vm417, %v2390, %v2879
        %v3063 = vsel %vm417, %v2391, %v2881
        %v3064 = vsel %vm417, %v2392, %v2883
        %v3065 = vsel %vm417, %v2393, %v2885
        %v3066 = vsel %vm417, %v2394, %v2887
        %v3067 = vsel %vm417, %v2395, %v2889
        %v3068 = vsel %vm417, %v2396, %v2891
        %v3069 = vsel %vm417, %v2397, %v2893
        %v3070 = vsel %vm417, %v2398, %v2895
        %v3071 = vsel %vm417, %v2399, %v2897
        %v3072 = vsel %vm417, %v2400, %v2899
        %v3073 = vsel %vm417, %v2401, %v2901
        %v3074 = vsel %vm417, %v2402, %v2903
        %v3075 = vsel %vm417, %v2403, %v2905
        %v3076 = vsel %vm417, %v2404, %v2907
        %v3077 = vsel %vm417, %v2405, %v2909
        %v3078 = vsel %vm417, %v2406, %v2911
        %v3079 = vsel %vm417, %v2407, %v2913
        %v3080 = vsel %vm417, %v2408, %v2915
        %v3081 = vsel %vm417, %v2409, %v2917
        %v3082 = vsel %vm417, %v2410, %v2919
        %v3083 = vsel %vm417, %v2411, %v2921
        %v3084 = vsel %vm417, %v2412, %v2923
        %v3085 = vsel %vm417, %v2413, %v2925
        %v3086 = vld [vmem:[%s5] sm:$0xff]
        %v3087 = vld [vmem:[%s5 + $0x8] sm:$0xff]
        %v3088 = vld [vmem:[%s5 + $0x10] sm:$0xff]
        %v3089 = vld [vmem:[%s5 + $0x18] sm:$0xff]
        %v3090 = vld [vmem:[%s5 + $0x20] sm:$0xff]
        %v3091 = vld [vmem:[%s5 + $0x28] sm:$0xff]
        %v3092 = vld [vmem:[%s5 + $0x30] sm:$0xff]
        %v3093 = vld [vmem:[%s5 + $0x38] sm:$0xff]
        %v3094 = vld [vmem:[%s5 + $0x40] sm:$0xff]
        %v3095 = vld [vmem:[%s5 + $0x48] sm:$0xff]
        %v3096 = vld [vmem:[%s5 + $0x50] sm:$0xff]
        %v3097 = vld [vmem:[%s5 + $0x58] sm:$0xff]
        %v3098 = vld [vmem:[%s5 + $0x60] sm:$0xff]
        %v3099 = vld [vmem:[%s5 + $0x68] sm:$0xff]
        %v3100 = vld [vmem:[%s5 + $0x70] sm:$0xff]
        %v3101 = vld [vmem:[%s5 + $0x78] sm:$0xff]
        %v3102 = vld [vmem:[%s5 + $0x80] sm:$0xff]
        %v3103 = vld [vmem:[%s5 + $0x88] sm:$0xff]
        %v3104 = vld [vmem:[%s5 + $0x90] sm:$0xff]
        %v3105 = vld [vmem:[%s5 + $0x98] sm:$0xff]
        %v3106 = vld [vmem:[%s5 + $0xa0] sm:$0xff]
        %v3107 = vld [vmem:[%s5 + $0xa8] sm:$0xff]
        %v3108 = vld [vmem:[%s5 + $0xb0] sm:$0xff]
        %v3109 = vld [vmem:[%s5 + $0xb8] sm:$0xff]
        %v3110 = vld [vmem:[%s7] sm:$0x1]
        %v3112 = vlaneseq
        %v3113 = vshrl.u32 %v3112, 7
        %v3114 = vsub.s32 0, %v3113
        %v3115 = vrot.slane %v3110, %v3114
        %v3118 = vsel %vm1224, %v3054, 0
        %v3121 = vsel %vm1224, %v3055, 0
        %v3124 = vsel %vm1224, %v3056, 0
        %v3127 = vsel %vm1224, %v3057, 0
        %v3130 = vsel %vm1224, %v3058, 0
        %v3133 = vsel %vm1224, %v3059, 0
        %v3136 = vsel %vm1224, %v3060, 0
        %v3139 = vsel %vm1224, %v3061, 0
        %v3142 = vsel %vm1224, %v3062, 0
        %v3145 = vsel %vm1224, %v3063, 0
        %v3148 = vsel %vm1224, %v3064, 0
        %v3151 = vsel %vm1224, %v3065, 0
        %v3154 = vsel %vm1224, %v3066, 0
        %v3157 = vsel %vm1224, %v3067, 0
        %v3160 = vsel %vm1224, %v3068, 0
        %v3163 = vsel %vm1224, %v3069, 0
        %v3166 = vsel %vm1224, %v3070, 0
        %v3169 = vsel %vm1224, %v3071, 0
        %v3172 = vsel %vm1224, %v3072, 0
        %v3175 = vsel %vm1224, %v3073, 0
        %v3178 = vsel %vm1224, %v3074, 0
        %v3181 = vsel %vm1224, %v3075, 0
        %v3184 = vsel %vm1224, %v3076, 0
        %v3187 = vsel %vm1224, %v3077, 0
        %v3190 = vsel %vm1224, %v3078, 0
        %v3193 = vsel %vm1224, %v3079, 0
        %v3196 = vsel %vm1224, %v3080, 0
        %v3199 = vsel %vm1224, %v3081, 0
        %v3202 = vsel %vm1224, %v3082, 0
        %v3205 = vsel %vm1224, %v3083, 0
        %v3208 = vsel %vm1224, %v3084, 0
        %v3211 = vsel %vm1224, %v3085, 0
        %3213 = vmatprep.subr.mxu0 0.0
        %3214 = vmatpush1.msra.mxu0 %v3086
        %3215 = vmatprep.subr.mxu0 0.0
        %3216 = vmatpush1.msra.mxu0 %v3087
        %3217 = vmatprep.subr.mxu0 0.0
        %3218 = vmatpush1.msra.mxu0 %v3088
        %3219 = vmatprep.subr.mxu0 0.0
        %3220 = vmatpush1.msra.mxu0 %v3089
        %3221 = vmatprep.subr.mxu0 0.0
        %3222 = vmatpush1.msra.mxu0 %v3090
        %3223 = vmatprep.subr.mxu0 0.0
        %3224 = vmatpush1.msra.mxu0 %v3091
        %3225 = vmatprep.subr.mxu0 0.0
        %3226 = vmatpush1.msra.mxu0 %v3092
        %3227 = vmatprep.subr.mxu0 0.0
        %3228 = vmatpush1.msra.mxu0 %v3093
        %3229 = vmatprep.subr.mxu0 0.0
        %3230 = vmatpush1.msra.mxu0 %v3094
        %3231 = vmatprep.subr.mxu0 0.0
        %3232 = vmatpush1.msra.mxu0 %v3095
        %3233 = vmatprep.subr.mxu0 0.0
        %3234 = vmatpush1.msra.mxu0 %v3096
        %3235 = vmatprep.subr.mxu0 0.0
        %3236 = vmatpush1.msra.mxu0 %v3097
        %3237 = vmatprep.subr.mxu0 0.0
        %3238 = vmatpush1.msra.mxu0 %v3098
        %3239 = vmatprep.subr.mxu0 0.0
        %3240 = vmatpush1.msra.mxu0 %v3099
        %3241 = vmatprep.subr.mxu0 0.0
        %3242 = vmatpush1.msra.mxu0 %v3100
        %3243 = vmatprep.subr.mxu0 0.0
        %3244 = vmatpush1.msra.mxu0 %v3101
        %3245 = vmatprep.subr.mxu0 0.0
        %3246 = vmatpush1.msra.mxu0 %v3102
        %3247 = vmatprep.subr.mxu0 0.0
        %3248 = vmatpush1.msra.mxu0 %v3103
        %3249 = vmatprep.subr.mxu0 0.0
        %3250 = vmatpush1.msra.mxu0 %v3104
        %3251 = vmatprep.subr.mxu0 0.0
        %3252 = vmatpush1.msra.mxu0 %v3105
        %3253 = vmatprep.subr.mxu0 0.0
        %3254 = vmatpush1.msra.mxu0 %v3106
        %3255 = vmatprep.subr.mxu0 0.0
        %3256 = vmatpush1.msra.mxu0 %v3107
        %3257 = vmatprep.subr.mxu0 0.0
        %3258 = vmatpush1.msra.mxu0 %v3108
        %3259 = vmatprep.subr.mxu0 0.0
        %3260 = vmatpush1.msra.mxu0 %v3109
        %3261 = vmatprep.subr.mxu0 0.0
        %3262 = vmatpush1.msra.mxu0 0.0
        %3263 = vmatprep.subr.mxu0 0.0
        %3264 = vmatpush1.msra.mxu0 0.0
        %3265 = vmatprep.subr.mxu0 0.0
        %3266 = vmatpush1.msra.mxu0 0.0
        %3267 = vmatprep.subr.mxu0 0.0
        %3268 = vmatpush1.msra.mxu0 0.0
        %3269 = vmatprep.subr.mxu0 0.0
        %3270 = vmatpush1.msra.mxu0 0.0
        %3271 = vmatprep.subr.mxu0 0.0
        %3272 = vmatpush1.msra.mxu0 0.0
        %3273 = vmatprep.subr.mxu0 0.0
        %3274 = vmatpush1.msra.mxu0 0.0
        %3275 = vmatprep.subr.mxu0 0.0
        %3276 = vmatpush1.msra.mxu0 0.0
        %3277 = vmatprep.mubr.f32.mxu0 %v3118
        %3278 = vmatmul.mubr.f32.gmra.mrb[0].mxu0 %v3022
        %v3279 = vpop.f32.mrb[0].mxu0
        %v3280 = vadd.f32 %v3115, %v3279
        %v3281 = vpop.f32.mrb[0].mxu0
        %3282 = vmatprep.mubr.f32.mxu0 %v3121
        %3283 = vmatmul.mubr.f32.gmra.mrb[0].mxu0 %v3023
        %v3284 = vpop.f32.mrb[0].mxu0
        %v3285 = vadd.f32 %v3115, %v3284
        %v3286 = vpop.f32.mrb[0].mxu0
        %3287 = vmatprep.mubr.f32.mxu0 %v3124
        %3288 = vmatmul.mubr.f32.gmra.mrb[0].mxu0 %v3024
        %v3289 = vpop.f32.mrb[0].mxu0
        %v3290 = vadd.f32 %v3115, %v3289
        %v3291 = vpop.f32.mrb[0].mxu0
        %3292 = vmatprep.mubr.f32.mxu0 %v3127
        %3293 = vmatmul.mubr.f32.gmra.mrb[0].mxu0 %v3025
        %v3294 = vpop.f32.mrb[0].mxu0
        %v3295 = vadd.f32 %v3115, %v3294
        %v3296 = vpop.f32.mrb[0].mxu0
        %3297 = vmatprep.mubr.f32.mxu0 %v3130
        %3298 = vmatmul.mubr.f32.gmra.mrb[0].mxu0 %v3026
        %v3299 = vpop.f32.mrb[0].mxu0
        %v3300 = vadd.f32 %v3115, %v3299
        %v3301 = vpop.f32.mrb[0].mxu0
        %3302 = vmatprep.mubr.f32.mxu0 %v3133
        %3303 = vmatmul.mubr.f32.gmra.mrb[0].mxu0 %v3027
        %v3304 = vpop.f32.mrb[0].mxu0
        %v3305 = vadd.f32 %v3115, %v3304
        %v3306 = vpop.f32.mrb[0].mxu0
        %3307 = vmatprep.mubr.f32.mxu0 %v3136
        %3308 = vmatmul.mubr.f32.gmra.mrb[0].mxu0 %v3028
        %v3309 = vpop.f32.mrb[0].mxu0
        %v3310 = vadd.f32 %v3115, %v3309
        %v3311 = vpop.f32.mrb[0].mxu0
        %3312 = vmatprep.mubr.f32.mxu0 %v3139
        %3313 = vmatmul.mubr.f32.gmra.mrb[0].mxu0 %v3029
        %v3314 = vpop.f32.mrb[0].mxu0
        %v3315 = vadd.f32 %v3115, %v3314
        %v3316 = vpop.f32.mrb[0].mxu0
        %3317 = vmatprep.mubr.f32.mxu0 %v3142
        %3318 = vmatmul.mubr.f32.gmra.mrb[0].mxu0 %v3030
        %v3319 = vpop.f32.mrb[0].mxu0
        %v3320 = vadd.f32 %v3115, %v3319
        %v3321 = vpop.f32.mrb[0].mxu0
        %3322 = vmatprep.mubr.f32.mxu0 %v3145
        %3323 = vmatmul.mubr.f32.gmra.mrb[0].mxu0 %v3031
        %v3324 = vpop.f32.mrb[0].mxu0
        %v3325 = vadd.f32 %v3115, %v3324
        %v3326 = vpop.f32.mrb[0].mxu0
        %3327 = vmatprep.mubr.f32.mxu0 %v3148
        %3328 = vmatmul.mubr.f32.gmra.mrb[0].mxu0 %v3032
        %v3329 = vpop.f32.mrb[0].mxu0
        %v3330 = vadd.f32 %v3115, %v3329
        %v3331 = vpop.f32.mrb[0].mxu0
        %3332 = vmatprep.mubr.f32.mxu0 %v3151
        %3333 = vmatmul.mubr.f32.gmra.mrb[0].mxu0 %v3033
        %v3334 = vpop.f32.mrb[0].mxu0
        %v3335 = vadd.f32 %v3115, %v3334
        %v3336 = vpop.f32.mrb[0].mxu0
        %3337 = vmatprep.mubr.f32.mxu0 %v3154
        %3338 = vmatmul.mubr.f32.gmra.mrb[0].mxu0 %v3034
        %v3339 = vpop.f32.mrb[0].mxu0
        %v3340 = vadd.f32 %v3115, %v3339
        %v3341 = vpop.f32.mrb[0].mxu0
        %3342 = vmatprep.mubr.f32.mxu0 %v3157
        %3343 = vmatmul.mubr.f32.gmra.mrb[0].mxu0 %v3035
        %v3344 = vpop.f32.mrb[0].mxu0
        %v3345 = vadd.f32 %v3115, %v3344
        %v3346 = vpop.f32.mrb[0].mxu0
        %3347 = vmatprep.mubr.f32.mxu0 %v3160
        %3348 = vmatmul.mubr.f32.gmra.mrb[0].mxu0 %v3036
        %v3349 = vpop.f32.mrb[0].mxu0
        %v3350 = vadd.f32 %v3115, %v3349
        %v3351 = vpop.f32.mrb[0].mxu0
        %3352 = vmatprep.mubr.f32.mxu0 %v3163
        %3353 = vmatmul.mubr.f32.gmra.mrb[0].mxu0 %v3037
        %v3354 = vpop.f32.mrb[0].mxu0
        %v3355 = vadd.f32 %v3115, %v3354
        %v3356 = vpop.f32.mrb[0].mxu0
        %3357 = vmatprep.mubr.f32.mxu0 %v3166
        %3358 = vmatmul.mubr.f32.gmra.mrb[0].mxu0 %v3038
        %v3359 = vpop.f32.mrb[0].mxu0
        %v3360 = vadd.f32 %v3115, %v3359
        %v3361 = vpop.f32.mrb[0].mxu0
        %3362 = vmatprep.mubr.f32.mxu0 %v3169
        %3363 = vmatmul.mubr.f32.gmra.mrb[0].mxu0 %v3039
        %v3364 = vpop.f32.mrb[0].mxu0
        %v3365 = vadd.f32 %v3115, %v3364
        %v3366 = vpop.f32.mrb[0].mxu0
        %3367 = vmatprep.mubr.f32.mxu0 %v3172
        %3368 = vmatmul.mubr.f32.gmra.mrb[0].mxu0 %v3040
        %v3369 = vpop.f32.mrb[0].mxu0
        %v3370 = vadd.f32 %v3115, %v3369
        %v3371 = vpop.f32.mrb[0].mxu0
        %3372 = vmatprep.mubr.f32.mxu0 %v3175
        %3373 = vmatmul.mubr.f32.gmra.mrb[0].mxu0 %v3041
        %v3374 = vpop.f32.mrb[0].mxu0
        %v3375 = vadd.f32 %v3115, %v3374
        %v3376 = vpop.f32.mrb[0].mxu0
        %3377 = vmatprep.mubr.f32.mxu0 %v3178
        %3378 = vmatmul.mubr.f32.gmra.mrb[0].mxu0 %v3042
        %v3379 = vpop.f32.mrb[0].mxu0
        %v3380 = vadd.f32 %v3115, %v3379
        %v3381 = vpop.f32.mrb[0].mxu0
        %3382 = vmatprep.mubr.f32.mxu0 %v3181
        %3383 = vmatmul.mubr.f32.gmra.mrb[0].mxu0 %v3043
        %v3384 = vpop.f32.mrb[0].mxu0
        %v3385 = vadd.f32 %v3115, %v3384
        %v3386 = vpop.f32.mrb[0].mxu0
        %3387 = vmatprep.mubr.f32.mxu0 %v3184
        %3388 = vmatmul.mubr.f32.gmra.mrb[0].mxu0 %v3044
        %v3389 = vpop.f32.mrb[0].mxu0
        %v3390 = vadd.f32 %v3115, %v3389
        %v3391 = vpop.f32.mrb[0].mxu0
        %3392 = vmatprep.mubr.f32.mxu0 %v3187
        %3393 = vmatmul.mubr.f32.gmra.mrb[0].mxu0 %v3045
        %v3394 = vpop.f32.mrb[0].mxu0
        %v3395 = vadd.f32 %v3115, %v3394
        %v3396 = vpop.f32.mrb[0].mxu0
        %3397 = vmatprep.mubr.f32.mxu0 %v3190
        %3398 = vmatmul.mubr.f32.gmra.mrb[0].mxu0 %v3046
        %v3399 = vpop.f32.mrb[0].mxu0
        %v3400 = vadd.f32 %v3115, %v3399
        %v3401 = vpop.f32.mrb[0].mxu0
        %3402 = vmatprep.mubr.f32.mxu0 %v3193
        %3403 = vmatmul.mubr.f32.gmra.mrb[0].mxu0 %v3047
        %v3404 = vpop.f32.mrb[0].mxu0
        %v3405 = vadd.f32 %v3115, %v3404
        %v3406 = vpop.f32.mrb[0].mxu0
        %3407 = vmatprep.mubr.f32.mxu0 %v3196
        %3408 = vmatmul.mubr.f32.gmra.mrb[0].mxu0 %v3048
        %v3409 = vpop.f32.mrb[0].mxu0
        %v3410 = vadd.f32 %v3115, %v3409
        %v3411 = vpop.f32.mrb[0].mxu0
        %3412 = vmatprep.mubr.f32.mxu0 %v3199
        %3413 = vmatmul.mubr.f32.gmra.mrb[0].mxu0 %v3049
        %v3414 = vpop.f32.mrb[0].mxu0
        %v3415 = vadd.f32 %v3115, %v3414
        %v3416 = vpop.f32.mrb[0].mxu0
        %3417 = vmatprep.mubr.f32.mxu0 %v3202
        %3418 = vmatmul.mubr.f32.gmra.mrb[0].mxu0 %v3050
        %v3419 = vpop.f32.mrb[0].mxu0
        %v3420 = vadd.f32 %v3115, %v3419
        %v3421 = vpop.f32.mrb[0].mxu0
        %3422 = vmatprep.mubr.f32.mxu0 %v3205
        %3423 = vmatmul.mubr.f32.gmra.mrb[0].mxu0 %v3051
        %v3424 = vpop.f32.mrb[0].mxu0
        %v3425 = vadd.f32 %v3115, %v3424
        %v3426 = vpop.f32.mrb[0].mxu0
        %3427 = vmatprep.mubr.f32.mxu0 %v3208
        %3428 = vmatmul.mubr.f32.gmra.mrb[0].mxu0 %v3052
        %v3429 = vpop.f32.mrb[0].mxu0
        %v3430 = vadd.f32 %v3115, %v3429
        %v3431 = vpop.f32.mrb[0].mxu0
        %3432 = vmatprep.mubr.f32.mxu0 %v3211
        %3433 = vmatmul.mubr.f32.gmra.mrb[0].mxu0 %v3053
        %v3434 = vpop.f32.mrb[0].mxu0
        %v3435 = vadd.f32 %v3115, %v3434
        %v3436 = vpop.f32.mrb[0].mxu0
        %3437 = vdwg.mxu0
        %v3438 = vld [vmem:[%s6] sm:$0xff]
        %v3439 = vld [vmem:[%s6 + $0x8] sm:$0xff]
        %v3440 = vld [vmem:[%s6 + $0x10] sm:$0xff]
        %v3441 = vld [vmem:[%s6 + $0x18] sm:$0xff]
        %v3442 = vld [vmem:[%s6 + $0x20] sm:$0xff]
        %v3443 = vld [vmem:[%s6 + $0x28] sm:$0xff]
        %v3444 = vld [vmem:[%s6 + $0x30] sm:$0xff]
        %v3445 = vld [vmem:[%s6 + $0x38] sm:$0xff]
        %v3446 = vld [vmem:[%s6 + $0x40] sm:$0xff]
        %v3447 = vld [vmem:[%s6 + $0x48] sm:$0xff]
        %v3448 = vld [vmem:[%s6 + $0x50] sm:$0xff]
        %v3449 = vld [vmem:[%s6 + $0x58] sm:$0xff]
        %v3450 = vld [vmem:[%s6 + $0x60] sm:$0xff]
        %v3451 = vld [vmem:[%s6 + $0x68] sm:$0xff]
        %v3452 = vld [vmem:[%s6 + $0x70] sm:$0xff]
        %v3453 = vld [vmem:[%s6 + $0x78] sm:$0xff]
        %v3454 = vld [vmem:[%s6 + $0x80] sm:$0xff]
        %v3455 = vld [vmem:[%s6 + $0x88] sm:$0xff]
        %v3456 = vld [vmem:[%s6 + $0x90] sm:$0xff]
        %v3457 = vld [vmem:[%s6 + $0x98] sm:$0xff]
        %v3458 = vld [vmem:[%s6 + $0xa0] sm:$0xff]
        %v3459 = vld [vmem:[%s6 + $0xa8] sm:$0xff]
        %v3460 = vld [vmem:[%s6 + $0xb0] sm:$0xff]
        %v3461 = vld [vmem:[%s6 + $0xb8] sm:$0xff]
        %v3462 = vld [vmem:[%s8] sm:$0x1]
        %v3464 = vlaneseq
        %v3465 = vshrl.u32 %v3464, 7
        %v3466 = vsub.s32 0, %v3465
        %v3467 = vrot.slane %v3462, %v3466
        %3469 = vmatprep.subr.mxu0 0.0
        %3470 = vmatpush1.msra.mxu0 %v3438
        %3471 = vmatprep.subr.mxu0 0.0
        %3472 = vmatpush1.msra.mxu0 %v3439
        %3473 = vmatprep.subr.mxu0 0.0
        %3474 = vmatpush1.msra.mxu0 %v3440
        %3475 = vmatprep.subr.mxu0 0.0
        %3476 = vmatpush1.msra.mxu0 %v3441
        %3477 = vmatprep.subr.mxu0 0.0
        %3478 = vmatpush1.msra.mxu0 %v3442
        %3479 = vmatprep.subr.mxu0 0.0
        %3480 = vmatpush1.msra.mxu0 %v3443
        %3481 = vmatprep.subr.mxu0 0.0
        %3482 = vmatpush1.msra.mxu0 %v3444
        %3483 = vmatprep.subr.mxu0 0.0
        %3484 = vmatpush1.msra.mxu0 %v3445
        %3485 = vmatprep.subr.mxu0 0.0
        %3486 = vmatpush1.msra.mxu0 %v3446
        %3487 = vmatprep.subr.mxu0 0.0
        %3488 = vmatpush1.msra.mxu0 %v3447
        %3489 = vmatprep.subr.mxu0 0.0
        %3490 = vmatpush1.msra.mxu0 %v3448
        %3491 = vmatprep.subr.mxu0 0.0
        %3492 = vmatpush1.msra.mxu0 %v3449
        %3493 = vmatprep.subr.mxu0 0.0
        %3494 = vmatpush1.msra.mxu0 %v3450
        %3495 = vmatprep.subr.mxu0 0.0
        %3496 = vmatpush1.msra.mxu0 %v3451
        %3497 = vmatprep.subr.mxu0 0.0
        %3498 = vmatpush1.msra.mxu0 %v3452
        %3499 = vmatprep.subr.mxu0 0.0
        %3500 = vmatpush1.msra.mxu0 %v3453
        %3501 = vmatprep.subr.mxu0 0.0
        %3502 = vmatpush1.msra.mxu0 %v3454
        %3503 = vmatprep.subr.mxu0 0.0
        %3504 = vmatpush1.msra.mxu0 %v3455
        %3505 = vmatprep.subr.mxu0 0.0
        %3506 = vmatpush1.msra.mxu0 %v3456
        %3507 = vmatprep.subr.mxu0 0.0
        %3508 = vmatpush1.msra.mxu0 %v3457
        %3509 = vmatprep.subr.mxu0 0.0
        %3510 = vmatpush1.msra.mxu0 %v3458
        %3511 = vmatprep.subr.mxu0 0.0
        %3512 = vmatpush1.msra.mxu0 %v3459
        %3513 = vmatprep.subr.mxu0 0.0
        %3514 = vmatpush1.msra.mxu0 %v3460
        %3515 = vmatprep.subr.mxu0 0.0
        %3516 = vmatpush1.msra.mxu0 %v3461
        %3517 = vmatprep.subr.mxu0 0.0
        %3518 = vmatpush1.msra.mxu0 0.0
        %3519 = vmatprep.subr.mxu0 0.0
        %3520 = vmatpush1.msra.mxu0 0.0
        %3521 = vmatprep.subr.mxu0 0.0
        %3522 = vmatpush1.msra.mxu0 0.0
        %3523 = vmatprep.subr.mxu0 0.0
        %3524 = vmatpush1.msra.mxu0 0.0
        %3525 = vmatprep.subr.mxu0 0.0
        %3526 = vmatpush1.msra.mxu0 0.0
        %3527 = vmatprep.subr.mxu0 0.0
        %3528 = vmatpush1.msra.mxu0 0.0
        %3529 = vmatprep.subr.mxu0 0.0
        %3530 = vmatpush1.msra.mxu0 0.0
        %3531 = vmatprep.subr.mxu0 0.0
        %3532 = vmatpush1.msra.mxu0 0.0
        %3533 = vmatprep.mubr.f32.mxu0 %v3118
        %3534 = vmatmul.mubr.f32.gmra.mrb[0].mxu0 %v3022
        %v3535 = vpop.f32.mrb[0].mxu0
        %v3536 = vadd.f32 %v3467, %v3535
        %v3537 = vpop.f32.mrb[0].mxu0
        %3538 = vmatprep.mubr.f32.mxu0 %v3121
        %3539 = vmatmul.mubr.f32.gmra.mrb[0].mxu0 %v3023
        %v3540 = vpop.f32.mrb[0].mxu0
        %v3541 = vadd.f32 %v3467, %v3540
        %v3542 = vpop.f32.mrb[0].mxu0
        %3543 = vmatprep.mubr.f32.mxu0 %v3124
        %3544 = vmatmul.mubr.f32.gmra.mrb[0].mxu0 %v3024
        %v3545 = vpop.f32.mrb[0].mxu0
        %v3546 = vadd.f32 %v3467, %v3545
        %v3547 = vpop.f32.mrb[0].mxu0
        %3548 = vmatprep.mubr.f32.mxu0 %v3127
        %3549 = vmatmul.mubr.f32.gmra.mrb[0].mxu0 %v3025
        %v3550 = vpop.f32.mrb[0].mxu0
        %v3551 = vadd.f32 %v3467, %v3550
        %v3552 = vpop.f32.mrb[0].mxu0
        %3553 = vmatprep.mubr.f32.mxu0 %v3130
        %3554 = vmatmul.mubr.f32.gmra.mrb[0].mxu0 %v3026
        %v3555 = vpop.f32.mrb[0].mxu0
        %v3556 = vadd.f32 %v3467, %v3555
        %v3557 = vpop.f32.mrb[0].mxu0
        %3558 = vmatprep.mubr.f32.mxu0 %v3133
        %3559 = vmatmul.mubr.f32.gmra.mrb[0].mxu0 %v3027
        %v3560 = vpop.f32.mrb[0].mxu0
        %v3561 = vadd.f32 %v3467, %v3560
        %v3562 = vpop.f32.mrb[0].mxu0
        %3563 = vmatprep.mubr.f32.mxu0 %v3136
        %3564 = vmatmul.mubr.f32.gmra.mrb[0].mxu0 %v3028
        %v3565 = vpop.f32.mrb[0].mxu0
        %v3566 = vadd.f32 %v3467, %v3565
        %v3567 = vpop.f32.mrb[0].mxu0
        %3568 = vmatprep.mubr.f32.mxu0 %v3139
        %3569 = vmatmul.mubr.f32.gmra.mrb[0].mxu0 %v3029
        %v3570 = vpop.f32.mrb[0].mxu0
        %v3571 = vadd.f32 %v3467, %v3570
        %v3572 = vpop.f32.mrb[0].mxu0
        %3573 = vmatprep.mubr.f32.mxu0 %v3142
        %3574 = vmatmul.mubr.f32.gmra.mrb[0].mxu0 %v3030
        %v3575 = vpop.f32.mrb[0].mxu0
        %v3576 = vadd.f32 %v3467, %v3575
        %v3577 = vpop.f32.mrb[0].mxu0
        %3578 = vmatprep.mubr.f32.mxu0 %v3145
        %3579 = vmatmul.mubr.f32.gmra.mrb[0].mxu0 %v3031
        %v3580 = vpop.f32.mrb[0].mxu0
        %v3581 = vadd.f32 %v3467, %v3580
        %v3582 = vpop.f32.mrb[0].mxu0
        %3583 = vmatprep.mubr.f32.mxu0 %v3148
        %3584 = vmatmul.mubr.f32.gmra.mrb[0].mxu0 %v3032
        %v3585 = vpop.f32.mrb[0].mxu0
        %v3586 = vadd.f32 %v3467, %v3585
        %v3587 = vpop.f32.mrb[0].mxu0
        %3588 = vmatprep.mubr.f32.mxu0 %v3151
        %3589 = vmatmul.mubr.f32.gmra.mrb[0].mxu0 %v3033
        %v3590 = vpop.f32.mrb[0].mxu0
        %v3591 = vadd.f32 %v3467, %v3590
        %v3592 = vpop.f32.mrb[0].mxu0
        %3593 = vmatprep.mubr.f32.mxu0 %v3154
        %3594 = vmatmul.mubr.f32.gmra.mrb[0].mxu0 %v3034
        %v3595 = vpop.f32.mrb[0].mxu0
        %v3596 = vadd.f32 %v3467, %v3595
        %v3597 = vpop.f32.mrb[0].mxu0
        %3598 = vmatprep.mubr.f32.mxu0 %v3157
        %3599 = vmatmul.mubr.f32.gmra.mrb[0].mxu0 %v3035
        %v3600 = vpop.f32.mrb[0].mxu0
        %v3601 = vadd.f32 %v3467, %v3600
        %v3602 = vpop.f32.mrb[0].mxu0
        %3603 = vmatprep.mubr.f32.mxu0 %v3160
        %3604 = vmatmul.mubr.f32.gmra.mrb[0].mxu0 %v3036
        %v3605 = vpop.f32.mrb[0].mxu0
        %v3606 = vadd.f32 %v3467, %v3605
        %v3607 = vpop.f32.mrb[0].mxu0
        %3608 = vmatprep.mubr.f32.mxu0 %v3163
        %3609 = vmatmul.mubr.f32.gmra.mrb[0].mxu0 %v3037
        %v3610 = vpop.f32.mrb[0].mxu0
        %v3611 = vadd.f32 %v3467, %v3610
        %v3612 = vpop.f32.mrb[0].mxu0
        %3613 = vmatprep.mubr.f32.mxu0 %v3166
        %3614 = vmatmul.mubr.f32.gmra.mrb[0].mxu0 %v3038
        %v3615 = vpop.f32.mrb[0].mxu0
        %v3616 = vadd.f32 %v3467, %v3615
        %v3617 = vpop.f32.mrb[0].mxu0
        %3618 = vmatprep.mubr.f32.mxu0 %v3169
        %3619 = vmatmul.mubr.f32.gmra.mrb[0].mxu0 %v3039
        %v3620 = vpop.f32.mrb[0].mxu0
        %v3621 = vadd.f32 %v3467, %v3620
        %v3622 = vpop.f32.mrb[0].mxu0
        %3623 = vmatprep.mubr.f32.mxu0 %v3172
        %3624 = vmatmul.mubr.f32.gmra.mrb[0].mxu0 %v3040
        %v3625 = vpop.f32.mrb[0].mxu0
        %v3626 = vadd.f32 %v3467, %v3625
        %v3627 = vpop.f32.mrb[0].mxu0
        %3628 = vmatprep.mubr.f32.mxu0 %v3175
        %3629 = vmatmul.mubr.f32.gmra.mrb[0].mxu0 %v3041
        %v3630 = vpop.f32.mrb[0].mxu0
        %v3631 = vadd.f32 %v3467, %v3630
        %v3632 = vpop.f32.mrb[0].mxu0
        %3633 = vmatprep.mubr.f32.mxu0 %v3178
        %3634 = vmatmul.mubr.f32.gmra.mrb[0].mxu0 %v3042
        %v3635 = vpop.f32.mrb[0].mxu0
        %v3636 = vadd.f32 %v3467, %v3635
        %v3637 = vpop.f32.mrb[0].mxu0
        %3638 = vmatprep.mubr.f32.mxu0 %v3181
        %3639 = vmatmul.mubr.f32.gmra.mrb[0].mxu0 %v3043
        %v3640 = vpop.f32.mrb[0].mxu0
        %v3641 = vadd.f32 %v3467, %v3640
        %v3642 = vpop.f32.mrb[0].mxu0
        %3643 = vmatprep.mubr.f32.mxu0 %v3184
        %3644 = vmatmul.mubr.f32.gmra.mrb[0].mxu0 %v3044
        %v3645 = vpop.f32.mrb[0].mxu0
        %v3646 = vadd.f32 %v3467, %v3645
        %v3647 = vpop.f32.mrb[0].mxu0
        %3648 = vmatprep.mubr.f32.mxu0 %v3187
        %3649 = vmatmul.mubr.f32.gmra.mrb[0].mxu0 %v3045
        %v3650 = vpop.f32.mrb[0].mxu0
        %v3651 = vadd.f32 %v3467, %v3650
        %v3652 = vpop.f32.mrb[0].mxu0
        %3653 = vmatprep.mubr.f32.mxu0 %v3190
        %3654 = vmatmul.mubr.f32.gmra.mrb[0].mxu0 %v3046
        %v3655 = vpop.f32.mrb[0].mxu0
        %v3656 = vadd.f32 %v3467, %v3655
        %v3657 = vpop.f32.mrb[0].mxu0
        %3658 = vmatprep.mubr.f32.mxu0 %v3193
        %3659 = vmatmul.mubr.f32.gmra.mrb[0].mxu0 %v3047
        %v3660 = vpop.f32.mrb[0].mxu0
        %v3661 = vadd.f32 %v3467, %v3660
        %v3662 = vpop.f32.mrb[0].mxu0
        %3663 = vmatprep.mubr.f32.mxu0 %v3196
        %3664 = vmatmul.mubr.f32.gmra.mrb[0].mxu0 %v3048
        %v3665 = vpop.f32.mrb[0].mxu0
        %v3666 = vadd.f32 %v3467, %v3665
        %v3667 = vpop.f32.mrb[0].mxu0
        %3668 = vmatprep.mubr.f32.mxu0 %v3199
        %3669 = vmatmul.mubr.f32.gmra.mrb[0].mxu0 %v3049
        %v3670 = vpop.f32.mrb[0].mxu0
        %v3671 = vadd.f32 %v3467, %v3670
        %v3672 = vpop.f32.mrb[0].mxu0
        %3673 = vmatprep.mubr.f32.mxu0 %v3202
        %3674 = vmatmul.mubr.f32.gmra.mrb[0].mxu0 %v3050
        %v3675 = vpop.f32.mrb[0].mxu0
        %v3676 = vadd.f32 %v3467, %v3675
        %v3677 = vpop.f32.mrb[0].mxu0
        %3678 = vmatprep.mubr.f32.mxu0 %v3205
        %3679 = vmatmul.mubr.f32.gmra.mrb[0].mxu0 %v3051
        %v3680 = vpop.f32.mrb[0].mxu0
        %v3681 = vadd.f32 %v3467, %v3680
        %v3682 = vpop.f32.mrb[0].mxu0
        %3683 = vmatprep.mubr.f32.mxu0 %v3208
        %3684 = vmatmul.mubr.f32.gmra.mrb[0].mxu0 %v3052
        %v3685 = vpop.f32.mrb[0].mxu0
        %v3686 = vadd.f32 %v3467, %v3685
        %v3687 = vpop.f32.mrb[0].mxu0
        %3688 = vmatprep.mubr.f32.mxu0 %v3211
        %3689 = vmatmul.mubr.f32.gmra.mrb[0].mxu0 %v3053
        %v3690 = vpop.f32.mrb[0].mxu0
        %v3691 = vadd.f32 %v3467, %v3690
        %v3692 = vpop.f32.mrb[0].mxu0
        %3693 = vdwg.mxu0
        %v3694 = vxor.u32 %v3280, 2147483648
        %v3695 = vxor.u32 %v3285, 2147483648
        %v3696 = vxor.u32 %v3290, 2147483648
        %v3697 = vxor.u32 %v3295, 2147483648
        %v3698 = vxor.u32 %v3300, 2147483648
        %v3699 = vxor.u32 %v3305, 2147483648
        %v3700 = vxor.u32 %v3310, 2147483648
        %v3701 = vxor.u32 %v3315, 2147483648
        %v3702 = vxor.u32 %v3320, 2147483648
        %v3703 = vxor.u32 %v3325, 2147483648
        %v3704 = vxor.u32 %v3330, 2147483648
        %v3705 = vxor.u32 %v3335, 2147483648
        %v3706 = vxor.u32 %v3340, 2147483648
        %v3707 = vxor.u32 %v3345, 2147483648
        %v3708 = vxor.u32 %v3350, 2147483648
        %v3709 = vxor.u32 %v3355, 2147483648
        %v3710 = vxor.u32 %v3360, 2147483648
        %v3711 = vxor.u32 %v3365, 2147483648
        %v3712 = vxor.u32 %v3370, 2147483648
        %v3713 = vxor.u32 %v3375, 2147483648
        %v3714 = vxor.u32 %v3380, 2147483648
        %v3715 = vxor.u32 %v3385, 2147483648
        %v3716 = vxor.u32 %v3390, 2147483648
        %v3717 = vxor.u32 %v3395, 2147483648
        %v3718 = vxor.u32 %v3400, 2147483648
        %v3719 = vxor.u32 %v3405, 2147483648
        %v3720 = vxor.u32 %v3410, 2147483648
        %v3721 = vxor.u32 %v3415, 2147483648
        %v3722 = vxor.u32 %v3420, 2147483648
        %v3723 = vxor.u32 %v3425, 2147483648
        %v3724 = vxor.u32 %v3430, 2147483648
        %v3725 = vxor.u32 %v3435, 2147483648
        %v3726 = vmul.f32 %v3694, 1.442695
        %v3727 = vpow.pop %v3726
        %v3728 = vmul.f32 %v3695, 1.442695
        %v3729 = vpow.pop %v3728
        %v3730 = vmul.f32 %v3696, 1.442695
        %v3731 = vpow.pop %v3730
        %v3732 = vmul.f32 %v3697, 1.442695
        %v3733 = vpow.pop %v3732
        %v3734 = vmul.f32 %v3698, 1.442695
        %v3735 = vpow.pop %v3734
        %v3736 = vmul.f32 %v3699, 1.442695
        %v3737 = vpow.pop %v3736
        %v3738 = vmul.f32 %v3700, 1.442695
        %v3739 = vpow.pop %v3738
        %v3740 = vmul.f32 %v3701, 1.442695
        %v3741 = vpow.pop %v3740
        %v3742 = vmul.f32 %v3702, 1.442695
        %v3743 = vpow.pop %v3742
        %v3744 = vmul.f32 %v3703, 1.442695
        %v3745 = vpow.pop %v3744
        %v3746 = vmul.f32 %v3704, 1.442695
        %v3747 = vpow.pop %v3746
        %v3748 = vmul.f32 %v3705, 1.442695
        %v3749 = vpow.pop %v3748
        %v3750 = vmul.f32 %v3706, 1.442695
        %v3751 = vpow.pop %v3750
        %v3752 = vmul.f32 %v3707, 1.442695
        %v3753 = vpow.pop %v3752
        %v3754 = vmul.f32 %v3708, 1.442695
        %v3755 = vpow.pop %v3754
        %v3756 = vmul.f32 %v3709, 1.442695
        %v3757 = vpow.pop %v3756
        %v3758 = vmul.f32 %v3710, 1.442695
        %v3759 = vpow.pop %v3758
        %v3760 = vmul.f32 %v3711, 1.442695
        %v3761 = vpow.pop %v3760
        %v3762 = vmul.f32 %v3712, 1.442695
        %v3763 = vpow.pop %v3762
        %v3764 = vmul.f32 %v3713, 1.442695
        %v3765 = vpow.pop %v3764
        %v3766 = vmul.f32 %v3714, 1.442695
        %v3767 = vpow.pop %v3766
        %v3768 = vmul.f32 %v3715, 1.442695
        %v3769 = vpow.pop %v3768
        %v3770 = vmul.f32 %v3716, 1.442695
        %v3771 = vpow.pop %v3770
        %v3772 = vmul.f32 %v3717, 1.442695
        %v3773 = vpow.pop %v3772
        %v3774 = vmul.f32 %v3718, 1.442695
        %v3775 = vpow.pop %v3774
        %v3776 = vmul.f32 %v3719, 1.442695
        %v3777 = vpow.pop %v3776
        %v3778 = vmul.f32 %v3720, 1.442695
        %v3779 = vpow.pop %v3778
        %v3780 = vmul.f32 %v3721, 1.442695
        %v3781 = vpow.pop %v3780
        %v3782 = vmul.f32 %v3722, 1.442695
        %v3783 = vpow.pop %v3782
        %v3784 = vmul.f32 %v3723, 1.442695
        %v3785 = vpow.pop %v3784
        %v3786 = vmul.f32 %v3724, 1.442695
        %v3787 = vpow.pop %v3786
        %v3788 = vmul.f32 %v3725, 1.442695
        %v3789 = vpow.pop %v3788
        %v3790 = vadd.f32 %v3727, 1.0
        %v3791 = vadd.f32 %v3729, 1.0
        %v3792 = vadd.f32 %v3731, 1.0
        %v3793 = vadd.f32 %v3733, 1.0
        %v3794 = vadd.f32 %v3735, 1.0
        %v3795 = vadd.f32 %v3737, 1.0
        %v3796 = vadd.f32 %v3739, 1.0
        %v3797 = vadd.f32 %v3741, 1.0
        %v3798 = vadd.f32 %v3743, 1.0
        %v3799 = vadd.f32 %v3745, 1.0
        %v3800 = vadd.f32 %v3747, 1.0
        %v3801 = vadd.f32 %v3749, 1.0
        %v3802 = vadd.f32 %v3751, 1.0
        %v3803 = vadd.f32 %v3753, 1.0
        %v3804 = vadd.f32 %v3755, 1.0
        %v3805 = vadd.f32 %v3757, 1.0
        %v3806 = vadd.f32 %v3759, 1.0
        %v3807 = vadd.f32 %v3761, 1.0
        %v3808 = vadd.f32 %v3763, 1.0
        %v3809 = vadd.f32 %v3765, 1.0
        %v3810 = vadd.f32 %v3767, 1.0
        %v3811 = vadd.f32 %v3769, 1.0
        %v3812 = vadd.f32 %v3771, 1.0
        %v3813 = vadd.f32 %v3773, 1.0
        %v3814 = vadd.f32 %v3775, 1.0
        %v3815 = vadd.f32 %v3777, 1.0
        %v3816 = vadd.f32 %v3779, 1.0
        %v3817 = vadd.f32 %v3781, 1.0
        %v3818 = vadd.f32 %v3783, 1.0
        %v3819 = vadd.f32 %v3785, 1.0
        %v3820 = vadd.f32 %v3787, 1.0
        %v3821 = vadd.f32 %v3789, 1.0
        %v3822 = vrcp.pop %v3790
        %v3823 = vmul.f32 1.0, %v3822
        %v3824 = vrcp.pop %v3791
        %v3825 = vmul.f32 1.0, %v3824
        %v3826 = vrcp.pop %v3792
        %v3827 = vmul.f32 1.0, %v3826
        %v3828 = vrcp.pop %v3793
        %v3829 = vmul.f32 1.0, %v3828
        %v3830 = vrcp.pop %v3794
        %v3831 = vmul.f32 1.0, %v3830
        %v3832 = vrcp.pop %v3795
        %v3833 = vmul.f32 1.0, %v3832
        %v3834 = vrcp.pop %v3796
        %v3835 = vmul.f32 1.0, %v3834
        %v3836 = vrcp.pop %v3797
        %v3837 = vmul.f32 1.0, %v3836
        %v3838 = vrcp.pop %v3798
        %v3839 = vmul.f32 1.0, %v3838
        %v3840 = vrcp.pop %v3799
        %v3841 = vmul.f32 1.0, %v3840
        %v3842 = vrcp.pop %v3800
        %v3843 = vmul.f32 1.0, %v3842
        %v3844 = vrcp.pop %v3801
        %v3845 = vmul.f32 1.0, %v3844
        %v3846 = vrcp.pop %v3802
        %v3847 = vmul.f32 1.0, %v3846
        %v3848 = vrcp.pop %v3803
        %v3849 = vmul.f32 1.0, %v3848
        %v3850 = vrcp.pop %v3804
        %v3851 = vmul.f32 1.0, %v3850
        %v3852 = vrcp.pop %v3805
        %v3853 = vmul.f32 1.0, %v3852
        %v3854 = vrcp.pop %v3806
        %v3855 = vmul.f32 1.0, %v3854
        %v3856 = vrcp.pop %v3807
        %v3857 = vmul.f32 1.0, %v3856
        %v3858 = vrcp.pop %v3808
        %v3859 = vmul.f32 1.0, %v3858
        %v3860 = vrcp.pop %v3809
        %v3861 = vmul.f32 1.0, %v3860
        %v3862 = vrcp.pop %v3810
        %v3863 = vmul.f32 1.0, %v3862
        %v3864 = vrcp.pop %v3811
        %v3865 = vmul.f32 1.0, %v3864
        %v3866 = vrcp.pop %v3812
        %v3867 = vmul.f32 1.0, %v3866
        %v3868 = vrcp.pop %v3813
        %v3869 = vmul.f32 1.0, %v3868
        %v3870 = vrcp.pop %v3814
        %v3871 = vmul.f32 1.0, %v3870
        %v3872 = vrcp.pop %v3815
        %v3873 = vmul.f32 1.0, %v3872
        %v3874 = vrcp.pop %v3816
        %v3875 = vmul.f32 1.0, %v3874
        %v3876 = vrcp.pop %v3817
        %v3877 = vmul.f32 1.0, %v3876
        %v3878 = vrcp.pop %v3818
        %v3879 = vmul.f32 1.0, %v3878
        %v3880 = vrcp.pop %v3819
        %v3881 = vmul.f32 1.0, %v3880
        %v3882 = vrcp.pop %v3820
        %v3883 = vmul.f32 1.0, %v3882
        %v3884 = vrcp.pop %v3821
        %v3885 = vmul.f32 1.0, %v3884
        %v3886 = vmul.f32 %v3536, %v3823
        %v3887 = vmul.f32 %v3541, %v3825
        %v3888 = vmul.f32 %v3546, %v3827
        %v3889 = vmul.f32 %v3551, %v3829
        %v3890 = vmul.f32 %v3556, %v3831
        %v3891 = vmul.f32 %v3561, %v3833
        %v3892 = vmul.f32 %v3566, %v3835
        %v3893 = vmul.f32 %v3571, %v3837
        %v3894 = vmul.f32 %v3576, %v3839
        %v3895 = vmul.f32 %v3581, %v3841
        %v3896 = vmul.f32 %v3586, %v3843
        %v3897 = vmul.f32 %v3591, %v3845
        %v3898 = vmul.f32 %v3596, %v3847
        %v3899 = vmul.f32 %v3601, %v3849
        %v3900 = vmul.f32 %v3606, %v3851
        %v3901 = vmul.f32 %v3611, %v3853
        %v3902 = vmul.f32 %v3616, %v3855
        %v3903 = vmul.f32 %v3621, %v3857
        %v3904 = vmul.f32 %v3626, %v3859
        %v3905 = vmul.f32 %v3631, %v3861
        %v3906 = vmul.f32 %v3636, %v3863
        %v3907 = vmul.f32 %v3641, %v3865
        %v3908 = vmul.f32 %v3646, %v3867
        %v3909 = vmul.f32 %v3651, %v3869
        %v3910 = vmul.f32 %v3656, %v3871
        %v3911 = vmul.f32 %v3661, %v3873
        %v3912 = vmul.f32 %v3666, %v3875
        %v3913 = vmul.f32 %v3671, %v3877
        %v3914 = vmul.f32 %v3676, %v3879
        %v3915 = vmul.f32 %v3681, %v3881
        %v3916 = vmul.f32 %v3686, %v3883
        %v3917 = vmul.f32 %v3691, %v3885
        %v3918 = vmax.f32 %v3886, 0.0
        %v3919 = vmax.f32 %v3887, 0.0
        %v3920 = vmax.f32 %v3888, 0.0
        %v3921 = vmax.f32 %v3889, 0.0
        %v3922 = vmax.f32 %v3890, 0.0
        %v3923 = vmax.f32 %v3891, 0.0
        %v3924 = vmax.f32 %v3892, 0.0
        %v3925 = vmax.f32 %v3893, 0.0
        %v3926 = vmax.f32 %v3894, 0.0
        %v3927 = vmax.f32 %v3895, 0.0
        %v3928 = vmax.f32 %v3896, 0.0
        %v3929 = vmax.f32 %v3897, 0.0
        %v3930 = vmax.f32 %v3898, 0.0
        %v3931 = vmax.f32 %v3899, 0.0
        %v3932 = vmax.f32 %v3900, 0.0
        %v3933 = vmax.f32 %v3901, 0.0
        %v3934 = vmax.f32 %v3902, 0.0
        %v3935 = vmax.f32 %v3903, 0.0
        %v3936 = vmax.f32 %v3904, 0.0
        %v3937 = vmax.f32 %v3905, 0.0
        %v3938 = vmax.f32 %v3906, 0.0
        %v3939 = vmax.f32 %v3907, 0.0
        %v3940 = vmax.f32 %v3908, 0.0
        %v3941 = vmax.f32 %v3909, 0.0
        %v3942 = vmax.f32 %v3910, 0.0
        %v3943 = vmax.f32 %v3911, 0.0
        %v3944 = vmax.f32 %v3912, 0.0
        %v3945 = vmax.f32 %v3913, 0.0
        %v3946 = vmax.f32 %v3914, 0.0
        %v3947 = vmax.f32 %v3915, 0.0
        %v3948 = vmax.f32 %v3916, 0.0
        %v3949 = vmax.f32 %v3917, 0.0
        %v3950 = vadd.f32 %v3918, %v385
        %v3951 = vadd.f32 %v3919, %v386
        %v3952 = vadd.f32 %v3920, %v387
        %v3953 = vadd.f32 %v3921, %v388
        %v3954 = vadd.f32 %v3922, %v389
        %v3955 = vadd.f32 %v3923, %v390
        %v3956 = vadd.f32 %v3924, %v391
        %v3957 = vadd.f32 %v3925, %v392
        %v3958 = vadd.f32 %v3926, %v393
        %v3959 = vadd.f32 %v3927, %v394
        %v3960 = vadd.f32 %v3928, %v395
        %v3961 = vadd.f32 %v3929, %v396
        %v3962 = vadd.f32 %v3930, %v397
        %v3963 = vadd.f32 %v3931, %v398
        %v3964 = vadd.f32 %v3932, %v399
        %v3965 = vadd.f32 %v3933, %v400
        %v3966 = vadd.f32 %v3934, %v401
        %v3967 = vadd.f32 %v3935, %v402
        %v3968 = vadd.f32 %v3936, %v403
        %v3969 = vadd.f32 %v3937, %v404
        %v3970 = vadd.f32 %v3938, %v405
        %v3971 = vadd.f32 %v3939, %v406
        %v3972 = vadd.f32 %v3940, %v407
        %v3973 = vadd.f32 %v3941, %v408
        %v3974 = vadd.f32 %v3942, %v409
        %v3975 = vadd.f32 %v3943, %v410
        %v3976 = vadd.f32 %v3944, %v411
        %v3977 = vadd.f32 %v3945, %v412
        %v3978 = vadd.f32 %v3946, %v413
        %v3979 = vadd.f32 %v3947, %v414
        %v3980 = vadd.f32 %v3948, %v415
        %v3981 = vadd.f32 %v3949, %v416
        %v3982 = vmul.f32 %v3950, 0.70710677
        %v3983 = vmul.f32 %v3951, 0.70710677
        %v3984 = vmul.f32 %v3952, 0.70710677
        %v3985 = vmul.f32 %v3953, 0.70710677
        %v3986 = vmul.f32 %v3954, 0.70710677
        %v3987 = vmul.f32 %v3955, 0.70710677
        %v3988 = vmul.f32 %v3956, 0.70710677
        %v3989 = vmul.f32 %v3957, 0.70710677
        %v3990 = vmul.f32 %v3958, 0.70710677
        %v3991 = vmul.f32 %v3959, 0.70710677
        %v3992 = vmul.f32 %v3960, 0.70710677
        %v3993 = vmul.f32 %v3961, 0.70710677
        %v3994 = vmul.f32 %v3962, 0.70710677
        %v3995 = vmul.f32 %v3963, 0.70710677
        %v3996 = vmul.f32 %v3964, 0.70710677
        %v3997 = vmul.f32 %v3965, 0.70710677
        %v3998 = vmul.f32 %v3966, 0.70710677
        %v3999 = vmul.f32 %v3967, 0.70710677
        %v4000 = vmul.f32 %v3968, 0.70710677
        %v4001 = vmul.f32 %v3969, 0.70710677
        %v4002 = vmul.f32 %v3970, 0.70710677
        %v4003 = vmul.f32 %v3971, 0.70710677
        %v4004 = vmul.f32 %v3972, 0.70710677
        %v4005 = vmul.f32 %v3973, 0.70710677
        %v4006 = vmul.f32 %v3974, 0.70710677
        %v4007 = vmul.f32 %v3975, 0.70710677
        %v4008 = vmul.f32 %v3976, 0.70710677
        %v4009 = vmul.f32 %v3977, 0.70710677
        %v4010 = vmul.f32 %v3978, 0.70710677
        %v4011 = vmul.f32 %v3979, 0.70710677
        %v4012 = vmul.f32 %v3980, 0.70710677
        %v4013 = vmul.f32 %v3981, 0.70710677
        %v4014 = vmax.f32 %v3982, 0.0
        %v4015 = vmax.f32 %v3983, 0.0
        %v4016 = vmax.f32 %v3984, 0.0
        %v4017 = vmax.f32 %v3985, 0.0
        %v4018 = vmax.f32 %v3986, 0.0
        %v4019 = vmax.f32 %v3987, 0.0
        %v4020 = vmax.f32 %v3988, 0.0
        %v4021 = vmax.f32 %v3989, 0.0
        %v4022 = vmax.f32 %v3990, 0.0
        %v4023 = vmax.f32 %v3991, 0.0
        %v4024 = vmax.f32 %v3992, 0.0
        %v4025 = vmax.f32 %v3993, 0.0
        %v4026 = vmax.f32 %v3994, 0.0
        %v4027 = vmax.f32 %v3995, 0.0
        %v4028 = vmax.f32 %v3996, 0.0
        %v4029 = vmax.f32 %v3997, 0.0
        %v4030 = vmax.f32 %v3998, 0.0
        %v4031 = vmax.f32 %v3999, 0.0
        %v4032 = vmax.f32 %v4000, 0.0
        %v4033 = vmax.f32 %v4001, 0.0
        %v4034 = vmax.f32 %v4002, 0.0
        %v4035 = vmax.f32 %v4003, 0.0
        %v4036 = vmax.f32 %v4004, 0.0
        %v4037 = vmax.f32 %v4005, 0.0
        %v4038 = vmax.f32 %v4006, 0.0
        %v4039 = vmax.f32 %v4007, 0.0
        %v4040 = vmax.f32 %v4008, 0.0
        %v4041 = vmax.f32 %v4009, 0.0
        %v4042 = vmax.f32 %v4010, 0.0
        %v4043 = vmax.f32 %v4011, 0.0
        %v4044 = vmax.f32 %v4012, 0.0
        %v4045 = vmax.f32 %v4013, 0.0
        %v4046 = vsel %vm417, %v4014, 0.0
        %4047 = vadd.xlane.f32.xlu0 %v4046
        %v4048 = vpop.xlane.xlu0 %4047
        %v4049 = vsel %vm417, %v4015, 0.0
        %4050 = vadd.xlane.f32.xlu0 %v4049
        %v4051 = vpop.xlane.xlu0 %4050
        %v4052 = vsel %vm417, %v4016, 0.0
        %4053 = vadd.xlane.f32.xlu0 %v4052
        %v4054 = vpop.xlane.xlu0 %4053
        %v4055 = vsel %vm417, %v4017, 0.0
        %4056 = vadd.xlane.f32.xlu0 %v4055
        %v4057 = vpop.xlane.xlu0 %4056
        %v4058 = vsel %vm417, %v4018, 0.0
        %4059 = vadd.xlane.f32.xlu0 %v4058
        %v4060 = vpop.xlane.xlu0 %4059
        %v4061 = vsel %vm417, %v4019, 0.0
        %4062 = vadd.xlane.f32.xlu0 %v4061
        %v4063 = vpop.xlane.xlu0 %4062
        %v4064 = vsel %vm417, %v4020, 0.0
        %4065 = vadd.xlane.f32.xlu0 %v4064
        %v4066 = vpop.xlane.xlu0 %4065
        %v4067 = vsel %vm417, %v4021, 0.0
        %4068 = vadd.xlane.f32.xlu0 %v4067
        %v4069 = vpop.xlane.xlu0 %4068
        %v4070 = vsel %vm417, %v4022, 0.0
        %4071 = vadd.xlane.f32.xlu0 %v4070
        %v4072 = vpop.xlane.xlu0 %4071
        %v4073 = vsel %vm417, %v4023, 0.0
        %4074 = vadd.xlane.f32.xlu0 %v4073
        %v4075 = vpop.xlane.xlu0 %4074
        %v4076 = vsel %vm417, %v4024, 0.0
        %4077 = vadd.xlane.f32.xlu0 %v4076
        %v4078 = vpop.xlane.xlu0 %4077
        %v4079 = vsel %vm417, %v4025, 0.0
        %4080 = vadd.xlane.f32.xlu0 %v4079
        %v4081 = vpop.xlane.xlu0 %4080
        %v4082 = vsel %vm417, %v4026, 0.0
        %4083 = vadd.xlane.f32.xlu0 %v4082
        %v4084 = vpop.xlane.xlu0 %4083
        %v4085 = vsel %vm417, %v4027, 0.0
        %4086 = vadd.xlane.f32.xlu0 %v4085
        %v4087 = vpop.xlane.xlu0 %4086
        %v4088 = vsel %vm417, %v4028, 0.0
        %4089 = vadd.xlane.f32.xlu0 %v4088
        %v4090 = vpop.xlane.xlu0 %4089
        %v4091 = vsel %vm417, %v4029, 0.0
        %4092 = vadd.xlane.f32.xlu0 %v4091
        %v4093 = vpop.xlane.xlu0 %4092
        %v4094 = vsel %vm417, %v4030, 0.0
        %4095 = vadd.xlane.f32.xlu0 %v4094
        %v4096 = vpop.xlane.xlu0 %4095
        %v4097 = vsel %vm417, %v4031, 0.0
        %4098 = vadd.xlane.f32.xlu0 %v4097
        %v4099 = vpop.xlane.xlu0 %4098
        %v4100 = vsel %vm417, %v4032, 0.0
        %4101 = vadd.xlane.f32.xlu0 %v4100
        %v4102 = vpop.xlane.xlu0 %4101
        %v4103 = vsel %vm417, %v4033, 0.0
        %4104 = vadd.xlane.f32.xlu0 %v4103
        %v4105 = vpop.xlane.xlu0 %4104
        %v4106 = vsel %vm417, %v4034, 0.0
        %4107 = vadd.xlane.f32.xlu0 %v4106
        %v4108 = vpop.xlane.xlu0 %4107
        %v4109 = vsel %vm417, %v4035, 0.0
        %4110 = vadd.xlane.f32.xlu0 %v4109
        %v4111 = vpop.xlane.xlu0 %4110
        %v4112 = vsel %vm417, %v4036, 0.0
        %4113 = vadd.xlane.f32.xlu0 %v4112
        %v4114 = vpop.xlane.xlu0 %4113
        %v4115 = vsel %vm417, %v4037, 0.0
        %4116 = vadd.xlane.f32.xlu0 %v4115
        %v4117 = vpop.xlane.xlu0 %4116
        %v4118 = vsel %vm417, %v4038, 0.0
        %4119 = vadd.xlane.f32.xlu0 %v4118
        %v4120 = vpop.xlane.xlu0 %4119
        %v4121 = vsel %vm417, %v4039, 0.0
        %4122 = vadd.xlane.f32.xlu0 %v4121
        %v4123 = vpop.xlane.xlu0 %4122
        %v4124 = vsel %vm417, %v4040, 0.0
        %4125 = vadd.xlane.f32.xlu0 %v4124
        %v4126 = vpop.xlane.xlu0 %4125
        %v4127 = vsel %vm417, %v4041, 0.0
        %4128 = vadd.xlane.f32.xlu0 %v4127
        %v4129 = vpop.xlane.xlu0 %4128
        %v4130 = vsel %vm417, %v4042, 0.0
        %4131 = vadd.xlane.f32.xlu0 %v4130
        %v4132 = vpop.xlane.xlu0 %4131
        %v4133 = vsel %vm417, %v4043, 0.0
        %4134 = vadd.xlane.f32.xlu0 %v4133
        %v4135 = vpop.xlane.xlu0 %4134
        %v4136 = vsel %vm417, %v4044, 0.0
        %4137 = vadd.xlane.f32.xlu0 %v4136
        %v4138 = vpop.xlane.xlu0 %4137
        %v4139 = vsel %vm417, %v4045, 0.0
        %4140 = vadd.xlane.f32.xlu0 %v4139
        %v4141 = vpop.xlane.xlu0 %4140
        %v4142 = vrcp.pop 32.0
        %v4143 = vmul.f32 %v4048, %v4142
        %v4144 = vmul.f32 %v4051, %v4142
        %v4145 = vmul.f32 %v4054, %v4142
        %v4146 = vmul.f32 %v4057, %v4142
        %v4147 = vmul.f32 %v4060, %v4142
        %v4148 = vmul.f32 %v4063, %v4142
        %v4149 = vmul.f32 %v4066, %v4142
        %v4150 = vmul.f32 %v4069, %v4142
        %v4151 = vmul.f32 %v4072, %v4142
        %v4152 = vmul.f32 %v4075, %v4142
        %v4153 = vmul.f32 %v4078, %v4142
        %v4154 = vmul.f32 %v4081, %v4142
        %v4155 = vmul.f32 %v4084, %v4142
        %v4156 = vmul.f32 %v4087, %v4142
        %v4157 = vmul.f32 %v4090, %v4142
        %v4158 = vmul.f32 %v4093, %v4142
        %v4159 = vmul.f32 %v4096, %v4142
        %v4160 = vmul.f32 %v4099, %v4142
        %v4161 = vmul.f32 %v4102, %v4142
        %v4162 = vmul.f32 %v4105, %v4142
        %v4163 = vmul.f32 %v4108, %v4142
        %v4164 = vmul.f32 %v4111, %v4142
        %v4165 = vmul.f32 %v4114, %v4142
        %v4166 = vmul.f32 %v4117, %v4142
        %v4167 = vmul.f32 %v4120, %v4142
        %v4168 = vmul.f32 %v4123, %v4142
        %v4169 = vmul.f32 %v4126, %v4142
        %v4170 = vmul.f32 %v4129, %v4142
        %v4171 = vmul.f32 %v4132, %v4142
        %v4172 = vmul.f32 %v4135, %v4142
        %v4173 = vmul.f32 %v4138, %v4142
        %v4174 = vmul.f32 %v4141, %v4142
        %v4175 = vsub.f32 %v4014, %v4143
        %v4176 = vsub.f32 %v4015, %v4144
        %v4177 = vsub.f32 %v4016, %v4145
        %v4178 = vsub.f32 %v4017, %v4146
        %v4179 = vsub.f32 %v4018, %v4147
        %v4180 = vsub.f32 %v4019, %v4148
        %v4181 = vsub.f32 %v4020, %v4149
        %v4182 = vsub.f32 %v4021, %v4150
        %v4183 = vsub.f32 %v4022, %v4151
        %v4184 = vsub.f32 %v4023, %v4152
        %v4185 = vsub.f32 %v4024, %v4153
        %v4186 = vsub.f32 %v4025, %v4154
        %v4187 = vsub.f32 %v4026, %v4155
        %v4188 = vsub.f32 %v4027, %v4156
        %v4189 = vsub.f32 %v4028, %v4157
        %v4190 = vsub.f32 %v4029, %v4158
        %v4191 = vsub.f32 %v4030, %v4159
        %v4192 = vsub.f32 %v4031, %v4160
        %v4193 = vsub.f32 %v4032, %v4161
        %v4194 = vsub.f32 %v4033, %v4162
        %v4195 = vsub.f32 %v4034, %v4163
        %v4196 = vsub.f32 %v4035, %v4164
        %v4197 = vsub.f32 %v4036, %v4165
        %v4198 = vsub.f32 %v4037, %v4166
        %v4199 = vsub.f32 %v4038, %v4167
        %v4200 = vsub.f32 %v4039, %v4168
        %v4201 = vsub.f32 %v4040, %v4169
        %v4202 = vsub.f32 %v4041, %v4170
        %v4203 = vsub.f32 %v4042, %v4171
        %v4204 = vsub.f32 %v4043, %v4172
        %v4205 = vsub.f32 %v4044, %v4173
        %v4206 = vsub.f32 %v4045, %v4174
        %v4207 = vmul.f32 %v4175, %v4175
        %v4208 = vmul.f32 %v4176, %v4176
        %v4209 = vmul.f32 %v4177, %v4177
        %v4210 = vmul.f32 %v4178, %v4178
        %v4211 = vmul.f32 %v4179, %v4179
        %v4212 = vmul.f32 %v4180, %v4180
        %v4213 = vmul.f32 %v4181, %v4181
        %v4214 = vmul.f32 %v4182, %v4182
        %v4215 = vmul.f32 %v4183, %v4183
        %v4216 = vmul.f32 %v4184, %v4184
        %v4217 = vmul.f32 %v4185, %v4185
        %v4218 = vmul.f32 %v4186, %v4186
        %v4219 = vmul.f32 %v4187, %v4187
        %v4220 = vmul.f32 %v4188, %v4188
        %v4221 = vmul.f32 %v4189, %v4189
        %v4222 = vmul.f32 %v4190, %v4190
        %v4223 = vmul.f32 %v4191, %v4191
        %v4224 = vmul.f32 %v4192, %v4192
        %v4225 = vmul.f32 %v4193, %v4193
        %v4226 = vmul.f32 %v4194, %v4194
        %v4227 = vmul.f32 %v4195, %v4195
        %v4228 = vmul.f32 %v4196, %v4196
        %v4229 = vmul.f32 %v4197, %v4197
        %v4230 = vmul.f32 %v4198, %v4198
        %v4231 = vmul.f32 %v4199, %v4199
        %v4232 = vmul.f32 %v4200, %v4200
        %v4233 = vmul.f32 %v4201, %v4201
        %v4234 = vmul.f32 %v4202, %v4202
        %v4235 = vmul.f32 %v4203, %v4203
        %v4236 = vmul.f32 %v4204, %v4204
        %v4237 = vmul.f32 %v4205, %v4205
        %v4238 = vmul.f32 %v4206, %v4206
        %v4239 = vsel %vm417, %v4207, 0.0
        %4240 = vadd.xlane.f32.xlu0 %v4239
        %v4241 = vpop.xlane.xlu0 %4240
        %v4242 = vsel %vm417, %v4208, 0.0
        %4243 = vadd.xlane.f32.xlu0 %v4242
        %v4244 = vpop.xlane.xlu0 %4243
        %v4245 = vsel %vm417, %v4209, 0.0
        %4246 = vadd.xlane.f32.xlu0 %v4245
        %v4247 = vpop.xlane.xlu0 %4246
        %v4248 = vsel %vm417, %v4210, 0.0
        %4249 = vadd.xlane.f32.xlu0 %v4248
        %v4250 = vpop.xlane.xlu0 %4249
        %v4251 = vsel %vm417, %v4211, 0.0
        %4252 = vadd.xlane.f32.xlu0 %v4251
        %v4253 = vpop.xlane.xlu0 %4252
        %v4254 = vsel %vm417, %v4212, 0.0
        %4255 = vadd.xlane.f32.xlu0 %v4254
        %v4256 = vpop.xlane.xlu0 %4255
        %v4257 = vsel %vm417, %v4213, 0.0
        %4258 = vadd.xlane.f32.xlu0 %v4257
        %v4259 = vpop.xlane.xlu0 %4258
        %v4260 = vsel %vm417, %v4214, 0.0
        %4261 = vadd.xlane.f32.xlu0 %v4260
        %v4262 = vpop.xlane.xlu0 %4261
        %v4263 = vsel %vm417, %v4215, 0.0
        %4264 = vadd.xlane.f32.xlu0 %v4263
        %v4265 = vpop.xlane.xlu0 %4264
        %v4266 = vsel %vm417, %v4216, 0.0
        %4267 = vadd.xlane.f32.xlu0 %v4266
        %v4268 = vpop.xlane.xlu0 %4267
        %v4269 = vsel %vm417, %v4217, 0.0
        %4270 = vadd.xlane.f32.xlu0 %v4269
        %v4271 = vpop.xlane.xlu0 %4270
        %v4272 = vsel %vm417, %v4218, 0.0
        %4273 = vadd.xlane.f32.xlu0 %v4272
        %v4274 = vpop.xlane.xlu0 %4273
        %v4275 = vsel %vm417, %v4219, 0.0
        %4276 = vadd.xlane.f32.xlu0 %v4275
        %v4277 = vpop.xlane.xlu0 %4276
        %v4278 = vsel %vm417, %v4220, 0.0
        %4279 = vadd.xlane.f32.xlu0 %v4278
        %v4280 = vpop.xlane.xlu0 %4279
        %v4281 = vsel %vm417, %v4221, 0.0
        %4282 = vadd.xlane.f32.xlu0 %v4281
        %v4283 = vpop.xlane.xlu0 %4282
        %v4284 = vsel %vm417, %v4222, 0.0
        %4285 = vadd.xlane.f32.xlu0 %v4284
        %v4286 = vpop.xlane.xlu0 %4285
        %v4287 = vsel %vm417, %v4223, 0.0
        %4288 = vadd.xlane.f32.xlu0 %v4287
        %v4289 = vpop.xlane.xlu0 %4288
        %v4290 = vsel %vm417, %v4224, 0.0
        %4291 = vadd.xlane.f32.xlu0 %v4290
        %v4292 = vpop.xlane.xlu0 %4291
        %v4293 = vsel %vm417, %v4225, 0.0
        %4294 = vadd.xlane.f32.xlu0 %v4293
        %v4295 = vpop.xlane.xlu0 %4294
        %v4296 = vsel %vm417, %v4226, 0.0
        %4297 = vadd.xlane.f32.xlu0 %v4296
        %v4298 = vpop.xlane.xlu0 %4297
        %v4299 = vsel %vm417, %v4227, 0.0
        %4300 = vadd.xlane.f32.xlu0 %v4299
        %v4301 = vpop.xlane.xlu0 %4300
        %v4302 = vsel %vm417, %v4228, 0.0
        %4303 = vadd.xlane.f32.xlu0 %v4302
        %v4304 = vpop.xlane.xlu0 %4303
        %v4305 = vsel %vm417, %v4229, 0.0
        %4306 = vadd.xlane.f32.xlu0 %v4305
        %v4307 = vpop.xlane.xlu0 %4306
        %v4308 = vsel %vm417, %v4230, 0.0
        %4309 = vadd.xlane.f32.xlu0 %v4308
        %v4310 = vpop.xlane.xlu0 %4309
        %v4311 = vsel %vm417, %v4231, 0.0
        %4312 = vadd.xlane.f32.xlu0 %v4311
        %v4313 = vpop.xlane.xlu0 %4312
        %v4314 = vsel %vm417, %v4232, 0.0
        %4315 = vadd.xlane.f32.xlu0 %v4314
        %v4316 = vpop.xlane.xlu0 %4315
        %v4317 = vsel %vm417, %v4233, 0.0
        %4318 = vadd.xlane.f32.xlu0 %v4317
        %v4319 = vpop.xlane.xlu0 %4318
        %v4320 = vsel %vm417, %v4234, 0.0
        %4321 = vadd.xlane.f32.xlu0 %v4320
        %v4322 = vpop.xlane.xlu0 %4321
        %v4323 = vsel %vm417, %v4235, 0.0
        %4324 = vadd.xlane.f32.xlu0 %v4323
        %v4325 = vpop.xlane.xlu0 %4324
        %v4326 = vsel %vm417, %v4236, 0.0
        %4327 = vadd.xlane.f32.xlu0 %v4326
        %v4328 = vpop.xlane.xlu0 %4327
        %v4329 = vsel %vm417, %v4237, 0.0
        %4330 = vadd.xlane.f32.xlu0 %v4329
        %v4331 = vpop.xlane.xlu0 %4330
        %v4332 = vsel %vm417, %v4238, 0.0
        %4333 = vadd.xlane.f32.xlu0 %v4332
        %v4334 = vpop.xlane.xlu0 %4333
        %v4335 = vrcp.pop 31.0
        %v4336 = vmul.f32 %v4241, %v4335
        %v4337 = vmul.f32 %v4244, %v4335
        %v4338 = vmul.f32 %v4247, %v4335
        %v4339 = vmul.f32 %v4250, %v4335
        %v4340 = vmul.f32 %v4253, %v4335
        %v4341 = vmul.f32 %v4256, %v4335
        %v4342 = vmul.f32 %v4259, %v4335
        %v4343 = vmul.f32 %v4262, %v4335
        %v4344 = vmul.f32 %v4265, %v4335
        %v4345 = vmul.f32 %v4268, %v4335
        %v4346 = vmul.f32 %v4271, %v4335
        %v4347 = vmul.f32 %v4274, %v4335
        %v4348 = vmul.f32 %v4277, %v4335
        %v4349 = vmul.f32 %v4280, %v4335
        %v4350 = vmul.f32 %v4283, %v4335
        %v4351 = vmul.f32 %v4286, %v4335
        %v4352 = vmul.f32 %v4289, %v4335
        %v4353 = vmul.f32 %v4292, %v4335
        %v4354 = vmul.f32 %v4295, %v4335
        %v4355 = vmul.f32 %v4298, %v4335
        %v4356 = vmul.f32 %v4301, %v4335
        %v4357 = vmul.f32 %v4304, %v4335
        %v4358 = vmul.f32 %v4307, %v4335
        %v4359 = vmul.f32 %v4310, %v4335
        %v4360 = vmul.f32 %v4313, %v4335
        %v4361 = vmul.f32 %v4316, %v4335
        %v4362 = vmul.f32 %v4319, %v4335
        %v4363 = vmul.f32 %v4322, %v4335
        %v4364 = vmul.f32 %v4325, %v4335
        %v4365 = vmul.f32 %v4328, %v4335
        %v4366 = vmul.f32 %v4331, %v4335
        %v4367 = vmul.f32 %v4334, %v4335
        %v4368 = vrsqrt.pop %v4336
        %v4369 = vmul.f32 %v4336, %v4368
        %vm4370 = vcmp.eq.f32.partialorder %v4336, inf
        %v4371 = vsel %vm4370, %v4336, %v4369
        %vm4372 = vcmp.eq.f32.partialorder %v4336, 0.0
        %v4373 = vand.u32 %v4336, 2147483648
        %v4374 = vsel %vm4372, %v4373, %v4371
        %v4375 = vrsqrt.pop %v4337
        %v4376 = vmul.f32 %v4337, %v4375
        %vm4377 = vcmp.eq.f32.partialorder %v4337, inf
        %v4378 = vsel %vm4377, %v4337, %v4376
        %vm4379 = vcmp.eq.f32.partialorder %v4337, 0.0
        %v4380 = vand.u32 %v4337, 2147483648
        %v4381 = vsel %vm4379, %v4380, %v4378
        %v4382 = vrsqrt.pop %v4338
        %v4383 = vmul.f32 %v4338, %v4382
        %vm4384 = vcmp.eq.f32.partialorder %v4338, inf
        %v4385 = vsel %vm4384, %v4338, %v4383
        %vm4386 = vcmp.eq.f32.partialorder %v4338, 0.0
        %v4387 = vand.u32 %v4338, 2147483648
        %v4388 = vsel %vm4386, %v4387, %v4385
        %v4389 = vrsqrt.pop %v4339
        %v4390 = vmul.f32 %v4339, %v4389
        %vm4391 = vcmp.eq.f32.partialorder %v4339, inf
        %v4392 = vsel %vm4391, %v4339, %v4390
        %vm4393 = vcmp.eq.f32.partialorder %v4339, 0.0
        %v4394 = vand.u32 %v4339, 2147483648
        %v4395 = vsel %vm4393, %v4394, %v4392
        %v4396 = vrsqrt.pop %v4340
        %v4397 = vmul.f32 %v4340, %v4396
        %vm4398 = vcmp.eq.f32.partialorder %v4340, inf
        %v4399 = vsel %vm4398, %v4340, %v4397
        %vm4400 = vcmp.eq.f32.partialorder %v4340, 0.0
        %v4401 = vand.u32 %v4340, 2147483648
        %v4402 = vsel %vm4400, %v4401, %v4399
        %v4403 = vrsqrt.pop %v4341
        %v4404 = vmul.f32 %v4341, %v4403
        %vm4405 = vcmp.eq.f32.partialorder %v4341, inf
        %v4406 = vsel %vm4405, %v4341, %v4404
        %vm4407 = vcmp.eq.f32.partialorder %v4341, 0.0
        %v4408 = vand.u32 %v4341, 2147483648
        %v4409 = vsel %vm4407, %v4408, %v4406
        %v4410 = vrsqrt.pop %v4342
        %v4411 = vmul.f32 %v4342, %v4410
        %vm4412 = vcmp.eq.f32.partialorder %v4342, inf
        %v4413 = vsel %vm4412, %v4342, %v4411
        %vm4414 = vcmp.eq.f32.partialorder %v4342, 0.0
        %v4415 = vand.u32 %v4342, 2147483648
        %v4416 = vsel %vm4414, %v4415, %v4413
        %v4417 = vrsqrt.pop %v4343
        %v4418 = vmul.f32 %v4343, %v4417
        %vm4419 = vcmp.eq.f32.partialorder %v4343, inf
        %v4420 = vsel %vm4419, %v4343, %v4418
        %vm4421 = vcmp.eq.f32.partialorder %v4343, 0.0
        %v4422 = vand.u32 %v4343, 2147483648
        %v4423 = vsel %vm4421, %v4422, %v4420
        %v4424 = vrsqrt.pop %v4344
        %v4425 = vmul.f32 %v4344, %v4424
        %vm4426 = vcmp.eq.f32.partialorder %v4344, inf
        %v4427 = vsel %vm4426, %v4344, %v4425
        %vm4428 = vcmp.eq.f32.partialorder %v4344, 0.0
        %v4429 = vand.u32 %v4344, 2147483648
        %v4430 = vsel %vm4428, %v4429, %v4427
        %v4431 = vrsqrt.pop %v4345
        %v4432 = vmul.f32 %v4345, %v4431
        %vm4433 = vcmp.eq.f32.partialorder %v4345, inf
        %v4434 = vsel %vm4433, %v4345, %v4432
        %vm4435 = vcmp.eq.f32.partialorder %v4345, 0.0
        %v4436 = vand.u32 %v4345, 2147483648
        %v4437 = vsel %vm4435, %v4436, %v4434
        %v4438 = vrsqrt.pop %v4346
        %v4439 = vmul.f32 %v4346, %v4438
        %vm4440 = vcmp.eq.f32.partialorder %v4346, inf
        %v4441 = vsel %vm4440, %v4346, %v4439
        %vm4442 = vcmp.eq.f32.partialorder %v4346, 0.0
        %v4443 = vand.u32 %v4346, 2147483648
        %v4444 = vsel %vm4442, %v4443, %v4441
        %v4445 = vrsqrt.pop %v4347
        %v4446 = vmul.f32 %v4347, %v4445
        %vm4447 = vcmp.eq.f32.partialorder %v4347, inf
        %v4448 = vsel %vm4447, %v4347, %v4446
        %vm4449 = vcmp.eq.f32.partialorder %v4347, 0.0
        %v4450 = vand.u32 %v4347, 2147483648
        %v4451 = vsel %vm4449, %v4450, %v4448
        %v4452 = vrsqrt.pop %v4348
        %v4453 = vmul.f32 %v4348, %v4452
        %vm4454 = vcmp.eq.f32.partialorder %v4348, inf
        %v4455 = vsel %vm4454, %v4348, %v4453
        %vm4456 = vcmp.eq.f32.partialorder %v4348, 0.0
        %v4457 = vand.u32 %v4348, 2147483648
        %v4458 = vsel %vm4456, %v4457, %v4455
        %v4459 = vrsqrt.pop %v4349
        %v4460 = vmul.f32 %v4349, %v4459
        %vm4461 = vcmp.eq.f32.partialorder %v4349, inf
        %v4462 = vsel %vm4461, %v4349, %v4460
        %vm4463 = vcmp.eq.f32.partialorder %v4349, 0.0
        %v4464 = vand.u32 %v4349, 2147483648
        %v4465 = vsel %vm4463, %v4464, %v4462
        %v4466 = vrsqrt.pop %v4350
        %v4467 = vmul.f32 %v4350, %v4466
        %vm4468 = vcmp.eq.f32.partialorder %v4350, inf
        %v4469 = vsel %vm4468, %v4350, %v4467
        %vm4470 = vcmp.eq.f32.partialorder %v4350, 0.0
        %v4471 = vand.u32 %v4350, 2147483648
        %v4472 = vsel %vm4470, %v4471, %v4469
        %v4473 = vrsqrt.pop %v4351
        %v4474 = vmul.f32 %v4351, %v4473
        %vm4475 = vcmp.eq.f32.partialorder %v4351, inf
        %v4476 = vsel %vm4475, %v4351, %v4474
        %vm4477 = vcmp.eq.f32.partialorder %v4351, 0.0
        %v4478 = vand.u32 %v4351, 2147483648
        %v4479 = vsel %vm4477, %v4478, %v4476
        %v4480 = vrsqrt.pop %v4352
        %v4481 = vmul.f32 %v4352, %v4480
        %vm4482 = vcmp.eq.f32.partialorder %v4352, inf
        %v4483 = vsel %vm4482, %v4352, %v4481
        %vm4484 = vcmp.eq.f32.partialorder %v4352, 0.0
        %v4485 = vand.u32 %v4352, 2147483648
        %v4486 = vsel %vm4484, %v4485, %v4483
        %v4487 = vrsqrt.pop %v4353
        %v4488 = vmul.f32 %v4353, %v4487
        %vm4489 = vcmp.eq.f32.partialorder %v4353, inf
        %v4490 = vsel %vm4489, %v4353, %v4488
        %vm4491 = vcmp.eq.f32.partialorder %v4353, 0.0
        %v4492 = vand.u32 %v4353, 2147483648
        %v4493 = vsel %vm4491, %v4492, %v4490
        %v4494 = vrsqrt.pop %v4354
        %v4495 = vmul.f32 %v4354, %v4494
        %vm4496 = vcmp.eq.f32.partialorder %v4354, inf
        %v4497 = vsel %vm4496, %v4354, %v4495
        %vm4498 = vcmp.eq.f32.partialorder %v4354, 0.0
        %v4499 = vand.u32 %v4354, 2147483648
        %v4500 = vsel %vm4498, %v4499, %v4497
        %v4501 = vrsqrt.pop %v4355
        %v4502 = vmul.f32 %v4355, %v4501
        %vm4503 = vcmp.eq.f32.partialorder %v4355, inf
        %v4504 = vsel %vm4503, %v4355, %v4502
        %vm4505 = vcmp.eq.f32.partialorder %v4355, 0.0
        %v4506 = vand.u32 %v4355, 2147483648
        %v4507 = vsel %vm4505, %v4506, %v4504
        %v4508 = vrsqrt.pop %v4356
        %v4509 = vmul.f32 %v4356, %v4508
        %vm4510 = vcmp.eq.f32.partialorder %v4356, inf
        %v4511 = vsel %vm4510, %v4356, %v4509
        %vm4512 = vcmp.eq.f32.partialorder %v4356, 0.0
        %v4513 = vand.u32 %v4356, 2147483648
        %v4514 = vsel %vm4512, %v4513, %v4511
        %v4515 = vrsqrt.pop %v4357
        %v4516 = vmul.f32 %v4357, %v4515
        %vm4517 = vcmp.eq.f32.partialorder %v4357, inf
        %v4518 = vsel %vm4517, %v4357, %v4516
        %vm4519 = vcmp.eq.f32.partialorder %v4357, 0.0
        %v4520 = vand.u32 %v4357, 2147483648
        %v4521 = vsel %vm4519, %v4520, %v4518
        %v4522 = vrsqrt.pop %v4358
        %v4523 = vmul.f32 %v4358, %v4522
        %vm4524 = vcmp.eq.f32.partialorder %v4358, inf
        %v4525 = vsel %vm4524, %v4358, %v4523
        %vm4526 = vcmp.eq.f32.partialorder %v4358, 0.0
        %v4527 = vand.u32 %v4358, 2147483648
        %v4528 = vsel %vm4526, %v4527, %v4525
        %v4529 = vrsqrt.pop %v4359
        %v4530 = vmul.f32 %v4359, %v4529
        %vm4531 = vcmp.eq.f32.partialorder %v4359, inf
        %v4532 = vsel %vm4531, %v4359, %v4530
        %vm4533 = vcmp.eq.f32.partialorder %v4359, 0.0
        %v4534 = vand.u32 %v4359, 2147483648
        %v4535 = vsel %vm4533, %v4534, %v4532
        %v4536 = vrsqrt.pop %v4360
        %v4537 = vmul.f32 %v4360, %v4536
        %vm4538 = vcmp.eq.f32.partialorder %v4360, inf
        %v4539 = vsel %vm4538, %v4360, %v4537
        %vm4540 = vcmp.eq.f32.partialorder %v4360, 0.0
        %v4541 = vand.u32 %v4360, 2147483648
        %v4542 = vsel %vm4540, %v4541, %v4539
        %v4543 = vrsqrt.pop %v4361
        %v4544 = vmul.f32 %v4361, %v4543
        %vm4545 = vcmp.eq.f32.partialorder %v4361, inf
        %v4546 = vsel %vm4545, %v4361, %v4544
        %vm4547 = vcmp.eq.f32.partialorder %v4361, 0.0
        %v4548 = vand.u32 %v4361, 2147483648
        %v4549 = vsel %vm4547, %v4548, %v4546
        %v4550 = vrsqrt.pop %v4362
        %v4551 = vmul.f32 %v4362, %v4550
        %vm4552 = vcmp.eq.f32.partialorder %v4362, inf
        %v4553 = vsel %vm4552, %v4362, %v4551
        %vm4554 = vcmp.eq.f32.partialorder %v4362, 0.0
        %v4555 = vand.u32 %v4362, 2147483648
        %v4556 = vsel %vm4554, %v4555, %v4553
        %v4557 = vrsqrt.pop %v4363
        %v4558 = vmul.f32 %v4363, %v4557
        %vm4559 = vcmp.eq.f32.partialorder %v4363, inf
        %v4560 = vsel %vm4559, %v4363, %v4558
        %vm4561 = vcmp.eq.f32.partialorder %v4363, 0.0
        %v4562 = vand.u32 %v4363, 2147483648
        %v4563 = vsel %vm4561, %v4562, %v4560
        %v4564 = vrsqrt.pop %v4364
        %v4565 = vmul.f32 %v4364, %v4564
        %vm4566 = vcmp.eq.f32.partialorder %v4364, inf
        %v4567 = vsel %vm4566, %v4364, %v4565
        %vm4568 = vcmp.eq.f32.partialorder %v4364, 0.0
        %v4569 = vand.u32 %v4364, 2147483648
        %v4570 = vsel %vm4568, %v4569, %v4567
        %v4571 = vrsqrt.pop %v4365
        %v4572 = vmul.f32 %v4365, %v4571
        %vm4573 = vcmp.eq.f32.partialorder %v4365, inf
        %v4574 = vsel %vm4573, %v4365, %v4572
        %vm4575 = vcmp.eq.f32.partialorder %v4365, 0.0
        %v4576 = vand.u32 %v4365, 2147483648
        %v4577 = vsel %vm4575, %v4576, %v4574
        %v4578 = vrsqrt.pop %v4366
        %v4579 = vmul.f32 %v4366, %v4578
        %vm4580 = vcmp.eq.f32.partialorder %v4366, inf
        %v4581 = vsel %vm4580, %v4366, %v4579
        %vm4582 = vcmp.eq.f32.partialorder %v4366, 0.0
        %v4583 = vand.u32 %v4366, 2147483648
        %v4584 = vsel %vm4582, %v4583, %v4581
        %v4585 = vrsqrt.pop %v4367
        %v4586 = vmul.f32 %v4367, %v4585
        %vm4587 = vcmp.eq.f32.partialorder %v4367, inf
        %v4588 = vsel %vm4587, %v4367, %v4586
        %vm4589 = vcmp.eq.f32.partialorder %v4367, 0.0
        %v4590 = vand.u32 %v4367, 2147483648
        %v4591 = vsel %vm4589, %v4590, %v4588
        %v4592 = vadd.f32 %v4374, 0.001
        %v4593 = vadd.f32 %v4381, 0.001
        %v4594 = vadd.f32 %v4388, 0.001
        %v4595 = vadd.f32 %v4395, 0.001
        %v4596 = vadd.f32 %v4402, 0.001
        %v4597 = vadd.f32 %v4409, 0.001
        %v4598 = vadd.f32 %v4416, 0.001
        %v4599 = vadd.f32 %v4423, 0.001
        %v4600 = vadd.f32 %v4430, 0.001
        %v4601 = vadd.f32 %v4437, 0.001
        %v4602 = vadd.f32 %v4444, 0.001
        %v4603 = vadd.f32 %v4451, 0.001
        %v4604 = vadd.f32 %v4458, 0.001
        %v4605 = vadd.f32 %v4465, 0.001
        %v4606 = vadd.f32 %v4472, 0.001
        %v4607 = vadd.f32 %v4479, 0.001
        %v4608 = vadd.f32 %v4486, 0.001
        %v4609 = vadd.f32 %v4493, 0.001
        %v4610 = vadd.f32 %v4500, 0.001
        %v4611 = vadd.f32 %v4507, 0.001
        %v4612 = vadd.f32 %v4514, 0.001
        %v4613 = vadd.f32 %v4521, 0.001
        %v4614 = vadd.f32 %v4528, 0.001
        %v4615 = vadd.f32 %v4535, 0.001
        %v4616 = vadd.f32 %v4542, 0.001
        %v4617 = vadd.f32 %v4549, 0.001
        %v4618 = vadd.f32 %v4556, 0.001
        %v4619 = vadd.f32 %v4563, 0.001
        %v4620 = vadd.f32 %v4570, 0.001
        %v4621 = vadd.f32 %v4577, 0.001
        %v4622 = vadd.f32 %v4584, 0.001
        %v4623 = vadd.f32 %v4591, 0.001
        %v4624 = vrcp.pop %v4592
        %v4625 = vrcp.pop %v4593
        %v4626 = vrcp.pop %v4594
        %v4627 = vrcp.pop %v4595
        %v4628 = vrcp.pop %v4596
        %v4629 = vrcp.pop %v4597
        %v4630 = vrcp.pop %v4598
        %v4631 = vrcp.pop %v4599
        %v4632 = vrcp.pop %v4600
        %v4633 = vrcp.pop %v4601
        %v4634 = vrcp.pop %v4602
        %v4635 = vrcp.pop %v4603
        %v4636 = vrcp.pop %v4604
        %v4637 = vrcp.pop %v4605
        %v4638 = vrcp.pop %v4606
        %v4639 = vrcp.pop %v4607
        %v4640 = vrcp.pop %v4608
        %v4641 = vrcp.pop %v4609
        %v4642 = vrcp.pop %v4610
        %v4643 = vrcp.pop %v4611
        %v4644 = vrcp.pop %v4612
        %v4645 = vrcp.pop %v4613
        %v4646 = vrcp.pop %v4614
        %v4647 = vrcp.pop %v4615
        %v4648 = vrcp.pop %v4616
        %v4649 = vrcp.pop %v4617
        %v4650 = vrcp.pop %v4618
        %v4651 = vrcp.pop %v4619
        %v4652 = vrcp.pop %v4620
        %v4653 = vrcp.pop %v4621
        %v4654 = vrcp.pop %v4622
        %v4655 = vrcp.pop %v4623
        %v4656 = vmul.f32 %v4175, %v4624
        %v4657 = vmul.f32 %v4176, %v4625
        %v4658 = vmul.f32 %v4177, %v4626
        %v4659 = vmul.f32 %v4178, %v4627
        %v4660 = vmul.f32 %v4179, %v4628
        %v4661 = vmul.f32 %v4180, %v4629
        %v4662 = vmul.f32 %v4181, %v4630
        %v4663 = vmul.f32 %v4182, %v4631
        %v4664 = vmul.f32 %v4183, %v4632
        %v4665 = vmul.f32 %v4184, %v4633
        %v4666 = vmul.f32 %v4185, %v4634
        %v4667 = vmul.f32 %v4186, %v4635
        %v4668 = vmul.f32 %v4187, %v4636
        %v4669 = vmul.f32 %v4188, %v4637
        %v4670 = vmul.f32 %v4189, %v4638
        %v4671 = vmul.f32 %v4190, %v4639
        %v4672 = vmul.f32 %v4191, %v4640
        %v4673 = vmul.f32 %v4192, %v4641
        %v4674 = vmul.f32 %v4193, %v4642
        %v4675 = vmul.f32 %v4194, %v4643
        %v4676 = vmul.f32 %v4195, %v4644
        %v4677 = vmul.f32 %v4196, %v4645
        %v4678 = vmul.f32 %v4197, %v4646
        %v4679 = vmul.f32 %v4198, %v4647
        %v4680 = vmul.f32 %v4199, %v4648
        %v4681 = vmul.f32 %v4200, %v4649
        %v4682 = vmul.f32 %v4201, %v4650
        %v4683 = vmul.f32 %v4202, %v4651
        %v4684 = vmul.f32 %v4203, %v4652
        %v4685 = vmul.f32 %v4204, %v4653
        %v4686 = vmul.f32 %v4205, %v4654
        %v4687 = vmul.f32 %v4206, %v4655
        %v4688 = vld [vmem:[%s9] sm:$0x1]
        %v4690 = vlaneseq
        %v4691 = vshrl.u32 %v4690, 7
        %v4692 = vsub.s32 0, %v4691
        %v4693 = vrot.slane %v4688, %v4692
        %v4695 = vmul.f32 %v4656, %v4693
        %v4696 = vmul.f32 %v4657, %v4693
        %v4697 = vmul.f32 %v4658, %v4693
        %v4698 = vmul.f32 %v4659, %v4693
        %v4699 = vmul.f32 %v4660, %v4693
        %v4700 = vmul.f32 %v4661, %v4693
        %v4701 = vmul.f32 %v4662, %v4693
        %v4702 = vmul.f32 %v4663, %v4693
        %v4703 = vmul.f32 %v4664, %v4693
        %v4704 = vmul.f32 %v4665, %v4693
        %v4705 = vmul.f32 %v4666, %v4693
        %v4706 = vmul.f32 %v4667, %v4693
        %v4707 = vmul.f32 %v4668, %v4693
        %v4708 = vmul.f32 %v4669, %v4693
        %v4709 = vmul.f32 %v4670, %v4693
        %v4710 = vmul.f32 %v4671, %v4693
        %v4711 = vmul.f32 %v4672, %v4693
        %v4712 = vmul.f32 %v4673, %v4693
        %v4713 = vmul.f32 %v4674, %v4693
        %v4714 = vmul.f32 %v4675, %v4693
        %v4715 = vmul.f32 %v4676, %v4693
        %v4716 = vmul.f32 %v4677, %v4693
        %v4717 = vmul.f32 %v4678, %v4693
        %v4718 = vmul.f32 %v4679, %v4693
        %v4719 = vmul.f32 %v4680, %v4693
        %v4720 = vmul.f32 %v4681, %v4693
        %v4721 = vmul.f32 %v4682, %v4693
        %v4722 = vmul.f32 %v4683, %v4693
        %v4723 = vmul.f32 %v4684, %v4693
        %v4724 = vmul.f32 %v4685, %v4693
        %v4725 = vmul.f32 %v4686, %v4693
        %v4726 = vmul.f32 %v4687, %v4693
        %v4727 = vld [vmem:[%s10] sm:$0x1]
        %v4729 = vlaneseq
        %v4730 = vshrl.u32 %v4729, 7
        %v4731 = vsub.s32 0, %v4730
        %v4732 = vrot.slane %v4727, %v4731
        %v4734 = vadd.f32 %v4695, %v4732
        %v4735 = vadd.f32 %v4696, %v4732
        %v4736 = vadd.f32 %v4697, %v4732
        %v4737 = vadd.f32 %v4698, %v4732
        %v4738 = vadd.f32 %v4699, %v4732
        %v4739 = vadd.f32 %v4700, %v4732
        %v4740 = vadd.f32 %v4701, %v4732
        %v4741 = vadd.f32 %v4702, %v4732
        %v4742 = vadd.f32 %v4703, %v4732
        %v4743 = vadd.f32 %v4704, %v4732
        %v4744 = vadd.f32 %v4705, %v4732
        %v4745 = vadd.f32 %v4706, %v4732
        %v4746 = vadd.f32 %v4707, %v4732
        %v4747 = vadd.f32 %v4708, %v4732
        %v4748 = vadd.f32 %v4709, %v4732
        %v4749 = vadd.f32 %v4710, %v4732
        %v4750 = vadd.f32 %v4711, %v4732
        %v4751 = vadd.f32 %v4712, %v4732
        %v4752 = vadd.f32 %v4713, %v4732
        %v4753 = vadd.f32 %v4714, %v4732
        %v4754 = vadd.f32 %v4715, %v4732
        %v4755 = vadd.f32 %v4716, %v4732
        %v4756 = vadd.f32 %v4717, %v4732
        %v4757 = vadd.f32 %v4718, %v4732
        %v4758 = vadd.f32 %v4719, %v4732
        %v4759 = vadd.f32 %v4720, %v4732
        %v4760 = vadd.f32 %v4721, %v4732
        %v4761 = vadd.f32 %v4722, %v4732
        %v4762 = vadd.f32 %v4723, %v4732
        %v4763 = vadd.f32 %v4724, %v4732
        %v4764 = vadd.f32 %v4725, %v4732
        %v4765 = vadd.f32 %v4726, %v4732
        %4766 = vst.msk [vmem:[%s379] sm:$0xff] %vm417, %v4734
        %4767 = vst.msk [vmem:[%s379 + $0x8] sm:$0xff] %vm417, %v4735
        %4768 = vst.msk [vmem:[%s379 + $0x10] sm:$0xff] %vm417, %v4736
        %4769 = vst.msk [vmem:[%s379 + $0x18] sm:$0xff] %vm417, %v4737
        %4770 = vst.msk [vmem:[%s379 + $0x20] sm:$0xff] %vm417, %v4738
        %4771 = vst.msk [vmem:[%s379 + $0x28] sm:$0xff] %vm417, %v4739
        %4772 = vst.msk [vmem:[%s379 + $0x30] sm:$0xff] %vm417, %v4740
        %4773 = vst.msk [vmem:[%s379 + $0x38] sm:$0xff] %vm417, %v4741
        %4774 = vst.msk [vmem:[%s379 + $0x40] sm:$0xff] %vm417, %v4742
        %4775 = vst.msk [vmem:[%s379 + $0x48] sm:$0xff] %vm417, %v4743
        %4776 = vst.msk [vmem:[%s379 + $0x50] sm:$0xff] %vm417, %v4744
        %4777 = vst.msk [vmem:[%s379 + $0x58] sm:$0xff] %vm417, %v4745
        %4778 = vst.msk [vmem:[%s379 + $0x60] sm:$0xff] %vm417, %v4746
        %4779 = vst.msk [vmem:[%s379 + $0x68] sm:$0xff] %vm417, %v4747
        %4780 = vst.msk [vmem:[%s379 + $0x70] sm:$0xff] %vm417, %v4748
        %4781 = vst.msk [vmem:[%s379 + $0x78] sm:$0xff] %vm417, %v4749
        %4782 = vst.msk [vmem:[%s379 + $0x80] sm:$0xff] %vm417, %v4750
        %4783 = vst.msk [vmem:[%s379 + $0x88] sm:$0xff] %vm417, %v4751
        %4784 = vst.msk [vmem:[%s379 + $0x90] sm:$0xff] %vm417, %v4752
        %4785 = vst.msk [vmem:[%s379 + $0x98] sm:$0xff] %vm417, %v4753
        %4786 = vst.msk [vmem:[%s379 + $0xa0] sm:$0xff] %vm417, %v4754
        %4787 = vst.msk [vmem:[%s379 + $0xa8] sm:$0xff] %vm417, %v4755
        %4788 = vst.msk [vmem:[%s379 + $0xb0] sm:$0xff] %vm417, %v4756
        %4789 = vst.msk [vmem:[%s379 + $0xb8] sm:$0xff] %vm417, %v4757
        %4790 = vst.msk [vmem:[%s379 + $0xc0] sm:$0xff] %vm417, %v4758
        %4791 = vst.msk [vmem:[%s379 + $0xc8] sm:$0xff] %vm417, %v4759
        %4792 = vst.msk [vmem:[%s379 + $0xd0] sm:$0xff] %vm417, %v4760
        %4793 = vst.msk [vmem:[%s379 + $0xd8] sm:$0xff] %vm417, %v4761
        %4794 = vst.msk [vmem:[%s379 + $0xe0] sm:$0xff] %vm417, %v4762
        %4795 = vst.msk [vmem:[%s379 + $0xe8] sm:$0xff] %vm417, %v4763
        %4796 = vst.msk [vmem:[%s379 + $0xf0] sm:$0xff] %vm417, %v4764
        %4797 = vst.msk [vmem:[%s379 + $0xf8] sm:$0xff] %vm417, %v4765
        %s4798 = sand.u32 %s269, 1
        %s4799 = scalar_lea.sflag [#allocation5], %s4798
        %s4800 = sand.u32 %s269, 1
        %s4801 = smul.addr %s4800, 256
        %s4802 = scalar_lea.vmem [#allocation4], %s4801
        // Predicated region
        $region65: #{tpu_custom_call.1} parent=63 // pred_check
          %p4803 = pneg %p279
        $region66: #{tpu_custom_call.1} parent=63 // pred_check_branch
          %4805 = sbr.rel (%p4803) target = $region68
        $region67: #{tpu_custom_call.1} parent=63 // pred_region
          %s4807 = ssub.s32 4096, 4096
          %4808 = vsyncadd %s4799, %s4807
          %s4809 = smul.addr %s25, 32
          %s4810 = smul.addr %s4809, 128
          %s4811 = scalar_lea.hbm %s11, %s4810
          %s4812 = sshll.u32 %s4802, 4
          %s4813 = int_to_ptr.vmem [resolvable:$true] %s4812
          %4818 = dma.vmem_to_hbm [thread:$0]  %s4813, 4096, %s4811, %s4799, 128, 128, 8
        $region68: #{tpu_custom_call.1} parent=63 // pred_fallthru
          _
      $region64: #{tpu_custom_call.1} parent=5 // pred_fallthru
        _
      %p4819 = scmp.le.s32.totalorder 2, %s20
      // Predicated region
      $region69: #{tpu_custom_call.1} parent=5 // pred_check
        %p4820 = pneg %p4819
      $region70: #{tpu_custom_call.1} parent=5 // pred_check_branch
        %4822 = sbr.rel (%p4820) target = $region72
      $region71: #{tpu_custom_call.1} parent=5 // pred_region
        %s4823 = ssub.s32 %s20, 2
        // Predicated region
        $region73: #{tpu_custom_call.1} parent=71 // pred_check
          %p4824 = pneg %p285
        $region74: #{tpu_custom_call.1} parent=71 // pred_check_branch
          %4826 = sbr.rel (%p4824) target = $region76
        $region75: #{tpu_custom_call.1} parent=71 // pred_region
          %s4827 = sand.u32 %s270, 1
          %s4828 = scalar_lea.sflag [#allocation5], %s4827
          %s4829 = sand.u32 %s270, 1
          %s4830 = smul.addr %s4829, 256
          %s4831 = scalar_lea.vmem [#allocation4], %s4830
          %4832 = dma.done %s4828, 4096
        $region76: #{tpu_custom_call.1} parent=71 // pred_fallthru
          _
      $region72: #{tpu_custom_call.1} parent=5 // pred_fallthru
        _
    $region6: #{tpu_custom_call.1} parent=1 // loop_footer
      %s24 = sadd.s32 1, %s20
    $region7: #{tpu_custom_call.1} parent=1 // loop_footer_branch
      %19 = sbr.rel target = $region3
    $region8: #{tpu_custom_call.1} parent=1 // loop_exit
      _
    %4833 = vsyncpa [#allocation5], 1
    %s4834 = scalar_lea.sflag [#allocation5], 1
    %4835 = vsyncpa %s4834, 1

</llo_original>
